<compile_context>
chip_gen: v7x
topology: tpu7x:2x2x1
jax: 0.10.0
libtpu: 0.0.40
codegen_flags: <defaults>
</compile_context>

<pallas_src>
import functools

import jax
import jax.numpy as jnp
from jax.experimental import pallas as pl
from jax.experimental.pallas import tpu as pltpu


# ----------------------------------------------------------------------------
# Options (mirrors the PyTorch module's `options`)
# ----------------------------------------------------------------------------
class Options:
    use_batchnorm = True
    dropout_probability_1 = 0.25
    dropout_probability_2 = 0.25
    dropout_probability_3 = 0.25


B_TILE = 8  # images per grid step; keeps lane-padded f32 blocks well under VMEM


def _round_up(n, m):
    return ((n + m - 1) // m) * m


# ----------------------------------------------------------------------------
# Pallas kernels
# ----------------------------------------------------------------------------
def _elu(x):
    # ELU(alpha=1): x if x > 0 else exp(x) - 1  (clamped exp arg for safety)
    return jnp.where(x > 0, x, jnp.exp(jnp.minimum(x, 0.0)) - 1.0)


def conv_bn_elu_pool_kernel(p_ref, w_ref, scale_ref, shift_ref, o_ref, *, bt, gpad):
    # p_ref:     (bt*4*gpad, 9*Cin)  patches, rows ordered [img][pool-offset q][pixel]
    # w_ref:     (9*Cin, Cout)
    # scale_ref: (1, Cout)           folded BN scale
    # shift_ref: (1, Cout)           folded conv-bias + BN shift
    # o_ref:     (bt*gpad, Cout)     pooled output (gpad rows per image, tail is padding)
    y = jnp.dot(p_ref[...], w_ref[...], preferred_element_type=jnp.float32)
    y = _elu(y * scale_ref[...] + shift_ref[...])
    for b in range(bt):  # static unroll; all slice offsets are multiples of 8
        base = b * 4 * gpad
        m0 = jnp.maximum(y[base:base + gpad], y[base + gpad:base + 2 * gpad])
        m1 = jnp.maximum(y[base + 2 * gpad:base + 3 * gpad],
                         y[base + 3 * gpad:base + 4 * gpad])
        o_ref[pl.ds(b * gpad, gpad), :] = jnp.maximum(m0, m1)


def conv_bn_elu_kernel(p_ref, w_ref, scale_ref, shift_ref, o_ref):
    y = jnp.dot(p_ref[...], w_ref[...], preferred_element_type=jnp.float32)
    o_ref[...] = _elu(y * scale_ref[...] + shift_ref[...])


def fc_head_kernel(x_ref, w1_ref, b1_ref, w2_ref, b2_ref, w3_ref, b3_ref, o_ref):
    # Fused fc1 + ELU + fc2 + ELU + fc3; intermediates stay on-chip.
    h = _elu(jnp.dot(x_ref[...], w1_ref[...], preferred_element_type=jnp.float32)
             + b1_ref[...])
    h = _elu(jnp.dot(h, w2_ref[...], preferred_element_type=jnp.float32) + b2_ref[...])
    o_ref[...] = jnp.dot(h, w3_ref[...], preferred_element_type=jnp.float32) + b3_ref[...]


# ----------------------------------------------------------------------------
# Pallas wrappers
# ----------------------------------------------------------------------------
def conv_pool_layer(patches, w, scale, shift, bt, gpad):
    """patches: (Bp*4*gpad, 9*Cin) -> pooled (Bp*gpad, Cout)."""
    M, K = patches.shape
    C = w.shape[1]
    rows_in = bt * 4 * gpad
    nb = M // rows_in
    return pl.pallas_call(
        functools.partial(conv_bn_elu_pool_kernel, bt=bt, gpad=gpad),
        out_shape=jax.ShapeDtypeStruct((nb * bt * gpad, C), jnp.float32),
        grid=(nb,),
        in_specs=[
            pl.BlockSpec((rows_in, K), lambda i: (i, 0)),
            pl.BlockSpec((K, C), lambda i: (0, 0)),
            pl.BlockSpec((1, C), lambda i: (0, 0)),
            pl.BlockSpec((1, C), lambda i: (0, 0)),
        ],
        out_specs=pl.BlockSpec((bt * gpad, C), lambda i: (i, 0)),
        compiler_params=pltpu.CompilerParams(dimension_semantics=("parallel",)),
    )(patches, w, scale, shift)


def conv_layer(patches, w, scale, shift, bt, rows):
    """patches: (Bp*rows, 9*Cin) -> (Bp*rows, Cout), no pooling."""
    M, K = patches.shape
    C = w.shape[1]
    nb = M // (bt * rows)
    return pl.pallas_call(
        conv_bn_elu_kernel,
        out_shape=jax.ShapeDtypeStruct((M, C), jnp.float32),
        grid=(nb,),
        in_specs=[
            pl.BlockSpec((bt * rows, K), lambda i: (i, 0)),
            pl.BlockSpec((K, C), lambda i: (0, 0)),
            pl.BlockSpec((1, C), lambda i: (0, 0)),
            pl.BlockSpec((1, C), lambda i: (0, 0)),
        ],
        out_specs=pl.BlockSpec((bt * rows, C), lambda i: (i, 0)),
        compiler_params=pltpu.CompilerParams(dimension_semantics=("parallel",)),
    )(patches, w, scale, shift)


def fc_head(x, w1, b1, w2, b2, w3, b3, bt):
    """x: (Bp, 1568) -> (Bp, 25), fused fc1+ELU+fc2+ELU+fc3."""
    Bp, K = x.shape
    N = w3.shape[1]
    nb = Bp // bt
    return pl.pallas_call(
        fc_head_kernel,
        out_shape=jax.ShapeDtypeStruct((Bp, N), jnp.float32),
        grid=(nb,),
        in_specs=[
            pl.BlockSpec((bt, K), lambda i: (i, 0)),
            pl.BlockSpec(w1.shape, lambda i: (0, 0)),
            pl.BlockSpec(b1.shape, lambda i: (0, 0)),
            pl.BlockSpec(w2.shape, lambda i: (0, 0)),
            pl.BlockSpec(b2.shape, lambda i: (0, 0)),
            pl.BlockSpec(w3.shape, lambda i: (0, 0)),
            pl.BlockSpec(b3.shape, lambda i: (0, 0)),
        ],
        out_specs=pl.BlockSpec((bt, N), lambda i: (i, 0)),
        compiler_params=pltpu.CompilerParams(dimension_semantics=("parallel",)),
    )(x, w1, b1, w2, b2, w3, b3)


# ----------------------------------------------------------------------------
# Glue: im2col (pool-group ordered), parameter folding
# ----------------------------------------------------------------------------
def im2col_3x3(x):
    """(B,H,W,C) -> (B,H,W,9*C), 'same' padding=1; feature index (ky*3+kx)*C + c."""
    B, H, W, C = x.shape
    xp = jnp.pad(x, ((0, 0), (1, 1), (1, 1), (0, 0)))
    cols = [xp[:, dy:dy + H, dx:dx + W, :] for dy in range(3) for dx in range(3)]
    return jnp.concatenate(cols, axis=-1)


def patches_pool_order(x):
    """(B,H,W,C) -> ((B*4*gpad, 9*C), gpad). Rows ordered [image][pool-offset q=dy*2+dx]
    [output pixel ho*Wo+wo]; each group zero-padded to gpad (multiple of 8) rows so the
    in-kernel pool max uses only sublane-aligned static slices."""
    B, H, W, C = x.shape
    Ho, Wo = H // 2, W // 2
    g = Ho * Wo
    gpad = _round_up(g, 8)
    pat = im2col_3x3(x)  # (B,H,W,9C)
    groups = []
    for dy in range(2):
        for dx in range(2):
            gq = pat[:, dy::2, dx::2, :].reshape(B, g, 9 * C)
            gq = jnp.pad(gq, ((0, 0), (0, gpad - g), (0, 0)))
            groups.append(gq)
    out = jnp.concatenate(groups, axis=1)  # (B, 4*gpad, 9C)
    return out.reshape(B * 4 * gpad, 9 * C), gpad


def patches_plain(x):
    """(B,H,W,C) -> ((B*rows, 9*C), rows) with rows = round_up(H*W, 8)."""
    B, H, W, C = x.shape
    n = H * W
    rows = _round_up(n, 8)
    pat = im2col_3x3(x).reshape(B, n, 9 * C)
    pat = jnp.pad(pat, ((0, 0), (0, rows - n), (0, 0)))
    return pat.reshape(B * rows, 9 * C), rows


def conv_w_to_mat(w):
    """PyTorch conv weight (Cout, Cin, 3, 3) -> (9*Cin, Cout) matching im2col order."""
    cout, cin = w.shape[0], w.shape[1]
    return jnp.transpose(w, (2, 3, 1, 0)).reshape(9 * cin, cout)


def fold_bn(bias, gamma, beta, mean, var, use_batchnorm, eps=1e-5):
    """Fold conv bias + (inference-mode) BatchNorm into per-channel scale/shift."""
    if use_batchnorm:
        s = gamma / jnp.sqrt(var + eps)
        shift = (bias - mean) * s + beta
    else:
        s = jnp.ones_like(bias)
        shift = bias
    return s.reshape(1, -1), shift.reshape(1, -1)


def prepare_params(params, use_batchnorm):
    """One-time (outside jit) weight folding / transposition for the kernels."""
    prep = {}
    prep["w1"] = conv_w_to_mat(params["conv1_w"])
    prep["s1"], prep["t1"] = fold_bn(params["conv1_b"], params["bn1_g"], params["bn1_b"],
                                     params["bn1_m"], params["bn1_v"], use_batchnorm)
    prep["w2"] = conv_w_to_mat(params["conv2_w"])
    prep["s2"], prep["t2"] = fold_bn(params["conv2_b"], params["bn2_g"], params["bn2_b"],
                                     params["bn2_m"], params["bn2_v"], use_batchnorm)
    prep["w3"] = conv_w_to_mat(params["conv3_w"])
    prep["s3"], prep["t3"] = fold_bn(params["conv3_b"], params["bn3_g"], params["bn3_b"],
                                     params["bn3_m"], params["bn3_v"], use_batchnorm)
    # fc1: PyTorch flatten order is c*49 + hw; our features are laid out hw*32 + c,
    # so permute the weight columns accordingly, then transpose to (K, N).
    w1 = params["fc1_w"].reshape(64, 32, 49).transpose(0, 2, 1).reshape(64, 49 * 32)
    prep["fc1_wt"] = w1.T
    prep["fc1_b"] = params["fc1_b"].reshape(1, -1)
    prep["fc2_wt"] = params["fc2_w"].T
    prep["fc2_b"] = params["fc2_b"].reshape(1, -1)
    prep["fc3_wt"] = params["fc3_w"].T
    prep["fc3_b"] = params["fc3_b"].reshape(1, -1)
    return prep


def init_params(key):
    ks = jax.random.split(key, 24)
    p = {}

    def conv(kw, kb, cout, cin):
        return (jax.random.normal(kw, (cout, cin, 3, 3), jnp.float32) * 0.1,
                jax.random.normal(kb, (cout,), jnp.float32) * 0.05)

    def bn(kg, kb, km, kv, c):
        return (jax.random.uniform(kg, (c,), jnp.float32, 0.5, 1.5),
                jax.random.normal(kb, (c,), jnp.float32) * 0.05,
                jax.random.normal(km, (c,), jnp.float32) * 0.05,
                jax.random.uniform(kv, (c,), jnp.float32, 0.5, 1.5))

    def linear(kw, kb, nout, nin):
        return (jax.random.normal(kw, (nout, nin), jnp.float32) * 0.05,
                jax.random.normal(kb, (nout,), jnp.float32) * 0.05)

    p["conv1_w"], p["conv1_b"] = conv(ks[0], ks[1], 8, 1)
    p["bn1_g"], p["bn1_b"], p["bn1_m"], p["bn1_v"] = bn(ks[2], ks[3], ks[4], ks[5], 8)
    p["conv2_w"], p["conv2_b"] = conv(ks[6], ks[7], 16, 8)
    p["bn2_g"], p["bn2_b"], p["bn2_m"], p["bn2_v"] = bn(ks[8], ks[9], ks[10], ks[11], 16)
    p["conv3_w"], p["conv3_b"] = conv(ks[12], ks[13], 32, 16)
    p["bn3_g"], p["bn3_b"], p["bn3_m"], p["bn3_v"] = bn(ks[14], ks[15], ks[16], ks[17], 32)
    p["fc1_w"], p["fc1_b"] = linear(ks[18], ks[19], 64, 32 * 7 * 7)
    p["fc2_w"], p["fc2_b"] = linear(ks[20], ks[21], 32, 64)
    p["fc3_w"], p["fc3_b"] = linear(ks[22], ks[23], 25, 32)
    return p


# ----------------------------------------------------------------------------
# Forward pass (mirrors DeepCNN.forward, eval mode)
# ----------------------------------------------------------------------------
def make_forward(b_tile=B_TILE):
    @jax.jit
    def forward(x_nchw, prep):
        B = x_nchw.shape[0]
        bt = min(b_tile, B)
        Bp = _round_up(B, bt)
        x = jnp.transpose(x_nchw, (0, 2, 3, 1)).astype(jnp.float32)  # NHWC (B,28,28,1)
        if Bp != B:
            x = jnp.pad(x, ((0, Bp - B), (0, 0), (0, 0), (0, 0)))

        # conv1 + BN + ELU + 2x2 pool : 28x28x1 -> 14x14x8
        p, g = patches_pool_order(x)                               # (Bp*800, 9), g=200
        h = conv_pool_layer(p, prep["w1"], prep["s1"], prep["t1"], bt, g)
        h = h.reshape(Bp, g, 8)[:, :14 * 14, :].reshape(Bp, 14, 14, 8)

        # conv2 + BN + ELU + 2x2 pool : 14x14x8 -> 7x7x16
        p, g = patches_pool_order(h)                               # (Bp*224, 72), g=56
        h = conv_pool_layer(p, prep["w2"], prep["s2"], prep["t2"], bt, g)
        h = h.reshape(Bp, g, 16)[:, :7 * 7, :].reshape(Bp, 7, 7, 16)

        # conv3 + BN + ELU : 7x7x16 -> 7x7x32 (no pool)
        p, r = patches_plain(h)                                    # (Bp*56, 144), r=56
        h = conv_layer(p, prep["w3"], prep["s3"], prep["t3"], bt, r)
        feat = h.reshape(Bp, r, 32)[:, :49, :].reshape(Bp, 49 * 32)

        # dropout1/2/3 = identity (eval mode); fused fc1+ELU -> fc2+ELU -> fc3
        out = fc_head(feat, prep["fc1_wt"], prep["fc1_b"],
                      prep["fc2_wt"], prep["fc2_b"],
                      prep["fc3_wt"], prep["fc3_b"], bt)
        return out[:B]

    return forward


if __name__ == "__main__":
    opts = Options()
    key = jax.random.PRNGKey(0)
    k_x, k_p = jax.random.split(key)

    # Input must be 28x28 single-channel for the 32*7*7 flatten to hold.
    x = jax.random.normal(k_x, (2, 1, 28, 28), jnp.float32)
    params = init_params(k_p)
    prep = prepare_params(params, opts.use_batchnorm)

    forward = make_forward()
    out = jax.block_until_ready(forward(x, prep))

    assert out.shape == (2, 25), out.shape
    assert bool(jnp.all(jnp.isfinite(out)))
    print("KERNEL_OK")
</pallas_src>

<mosaic_0001>
module attributes {stable_mosaic.version = 11 : i64} {
  func.func @conv_bn_elu_pool_kernel(%arg0: i32, %arg1: memref<1600x9xf32, #tpu.memory_space<vmem>>, %arg2: memref<9x8xf32, #tpu.memory_space<vmem>>, %arg3: memref<1x8xf32, #tpu.memory_space<vmem>>, %arg4: memref<1x8xf32, #tpu.memory_space<vmem>>, %arg5: memref<400x8xf32, #tpu.memory_space<vmem>>) attributes {dimension_semantics = [#tpu.dimension_semantics<parallel>], iteration_bounds = array<i64: 1>, scalar_prefetch = 0 : i64, scratch_operands = 0 : i64, tpu.core_type = #tpu.core_type<tc>, window_params = [{transform_indices = @transform_0, window_bounds = array<i64: 1600, 9>}, {pipeline_mode = #tpu.pipeline_mode<synchronous>, transform_indices = @transform_1, window_bounds = array<i64: 9, 8>}, {pipeline_mode = #tpu.pipeline_mode<synchronous>, transform_indices = @transform_2, window_bounds = array<i64: 1, 8>}, {pipeline_mode = #tpu.pipeline_mode<synchronous>, transform_indices = @transform_3, window_bounds = array<i64: 1, 8>}, {transform_indices = @transform_4, window_bounds = array<i64: 400, 8>}]} {
    %c0 = arith.constant 0 : index
    %c0_0 = arith.constant 0 : index
    %0 = vector.load %arg1[%c0, %c0_0] : memref<1600x9xf32, #tpu.memory_space<vmem>>, vector<1600x9xf32>
    %c0_1 = arith.constant 0 : index
    %c0_2 = arith.constant 0 : index
    %1 = vector.load %arg2[%c0_1, %c0_2] : memref<9x8xf32, #tpu.memory_space<vmem>>, vector<9x8xf32>
    %cst = arith.constant dense<0.000000e+00> : vector<1600x8xf32>
    %2 = tpu.matmul %0, %1, %cst {dimension_numbers = #tpu.dot_dimension_numbers<[1], [0], [0], [1], [0, 0, 1, 1], [], []>} : vector<1600x9xf32>, vector<9x8xf32>, vector<1600x8xf32> -> vector<1600x8xf32>
    %c0_3 = arith.constant 0 : index
    %c0_4 = arith.constant 0 : index
    %3 = vector.load %arg3[%c0_3, %c0_4] : memref<1x8xf32, #tpu.memory_space<vmem>>, vector<1x8xf32>
    %4 = vector.broadcast %3 : vector<1x8xf32> to vector<1600x8xf32>
    %5 = arith.mulf %2, %4 : vector<1600x8xf32>
    %c0_5 = arith.constant 0 : index
    %c0_6 = arith.constant 0 : index
    %6 = vector.load %arg4[%c0_5, %c0_6] : memref<1x8xf32, #tpu.memory_space<vmem>>, vector<1x8xf32>
    %7 = vector.broadcast %6 : vector<1x8xf32> to vector<1600x8xf32>
    %8 = arith.addf %5, %7 : vector<1600x8xf32>
    %cst_7 = arith.constant 0.000000e+00 : f32
    %9 = vector.broadcast %cst_7 : f32 to vector<1600x8xf32>
    %10 = arith.cmpf ogt, %8, %9 : vector<1600x8xf32>
    %cst_8 = arith.constant 0.000000e+00 : f32
    %11 = vector.broadcast %cst_8 : f32 to vector<1600x8xf32>
    %12 = arith.minimumf %8, %11 : vector<1600x8xf32>
    %13 = math.exp %12 : vector<1600x8xf32>
    %cst_9 = arith.constant 1.000000e+00 : f32
    %14 = vector.broadcast %cst_9 : f32 to vector<1600x8xf32>
    %15 = arith.subf %13, %14 : vector<1600x8xf32>
    %16 = arith.select %10, %8, %15 : vector<1600x8xi1>, vector<1600x8xf32>
    %17 = vector.extract_strided_slice %16 {offsets = [0, 0], sizes = [200, 8], strides = [1, 1]} : vector<1600x8xf32> to vector<200x8xf32>
    %18 = vector.extract_strided_slice %16 {offsets = [200, 0], sizes = [200, 8], strides = [1, 1]} : vector<1600x8xf32> to vector<200x8xf32>
    %19 = arith.maximumf %17, %18 : vector<200x8xf32>
    %20 = vector.extract_strided_slice %16 {offsets = [400, 0], sizes = [200, 8], strides = [1, 1]} : vector<1600x8xf32> to vector<200x8xf32>
    %21 = vector.extract_strided_slice %16 {offsets = [600, 0], sizes = [200, 8], strides = [1, 1]} : vector<1600x8xf32> to vector<200x8xf32>
    %22 = arith.maximumf %20, %21 : vector<200x8xf32>
    %23 = arith.maximumf %19, %22 : vector<200x8xf32>
    %c0_10 = arith.constant 0 : index
    %c0_11 = arith.constant 0 : index
    %24 = vector.load %arg5[%c0_10, %c0_11] : memref<400x8xf32, #tpu.memory_space<vmem>>, vector<200x8xf32>
    tpu.vector_store %arg5[%c0_10, %c0_11], %23 {strides = array<i32>} : memref<400x8xf32, #tpu.memory_space<vmem>>, vector<200x8xf32>,
    %25 = vector.extract_strided_slice %16 {offsets = [800, 0], sizes = [200, 8], strides = [1, 1]} : vector<1600x8xf32> to vector<200x8xf32>
    %26 = vector.extract_strided_slice %16 {offsets = [1000, 0], sizes = [200, 8], strides = [1, 1]} : vector<1600x8xf32> to vector<200x8xf32>
    %27 = arith.maximumf %25, %26 : vector<200x8xf32>
    %28 = vector.extract_strided_slice %16 {offsets = [1200, 0], sizes = [200, 8], strides = [1, 1]} : vector<1600x8xf32> to vector<200x8xf32>
    %29 = vector.extract_strided_slice %16 {offsets = [1400, 0], sizes = [200, 8], strides = [1, 1]} : vector<1600x8xf32> to vector<200x8xf32>
    %30 = arith.maximumf %28, %29 : vector<200x8xf32>
    %31 = arith.maximumf %27, %30 : vector<200x8xf32>
    %c200 = arith.constant 200 : index
    %c0_12 = arith.constant 0 : index
    %32 = vector.load %arg5[%c200, %c0_12] : memref<400x8xf32, #tpu.memory_space<vmem>>, vector<200x8xf32>
    tpu.vector_store %arg5[%c200, %c0_12], %31 {strides = array<i32>} : memref<400x8xf32, #tpu.memory_space<vmem>>, vector<200x8xf32>,
    return
  }
  func.func @transform_0(%arg0: i32) -> (i32, i32) {
    %c0_i32 = arith.constant 0 : i32
    %c0_i32_0 = arith.constant 0 : i32
    return %arg0, %c0_i32 : i32, i32
  }
  func.func @transform_1(%arg0: i32) -> (i32, i32) {
    %c0_i32 = arith.constant 0 : i32
    %c0_i32_0 = arith.constant 0 : i32
    %c0_i32_1 = arith.constant 0 : i32
    return %c0_i32, %c0_i32_0 : i32, i32
  }
  func.func @transform_2(%arg0: i32) -> (i32, i32) {
    %c0_i32 = arith.constant 0 : i32
    %c0_i32_0 = arith.constant 0 : i32
    %c0_i32_1 = arith.constant 0 : i32
    return %c0_i32, %c0_i32_0 : i32, i32
  }
  func.func @transform_3(%arg0: i32) -> (i32, i32) {
    %c0_i32 = arith.constant 0 : i32
    %c0_i32_0 = arith.constant 0 : i32
    %c0_i32_1 = arith.constant 0 : i32
    return %c0_i32, %c0_i32_0 : i32, i32
  }
  func.func @transform_4(%arg0: i32) -> (i32, i32) {
    %c0_i32 = arith.constant 0 : i32
    %c0_i32_0 = arith.constant 0 : i32
    return %arg0, %c0_i32 : i32, i32
  }
}

module attributes {stable_mosaic.version = 11 : i64} {
  func.func @conv_bn_elu_pool_kernel(%arg0: i32, %arg1: memref<448x72xf32, #tpu.memory_space<vmem>>, %arg2: memref<72x16xf32, #tpu.memory_space<vmem>>, %arg3: memref<1x16xf32, #tpu.memory_space<vmem>>, %arg4: memref<1x16xf32, #tpu.memory_space<vmem>>, %arg5: memref<112x16xf32, #tpu.memory_space<vmem>>) attributes {dimension_semantics = [#tpu.dimension_semantics<parallel>], iteration_bounds = array<i64: 1>, scalar_prefetch = 0 : i64, scratch_operands = 0 : i64, tpu.core_type = #tpu.core_type<tc>, window_params = [{transform_indices = @transform_0, window_bounds = array<i64: 448, 72>}, {pipeline_mode = #tpu.pipeline_mode<synchronous>, transform_indices = @transform_1, window_bounds = array<i64: 72, 16>}, {pipeline_mode = #tpu.pipeline_mode<synchronous>, transform_indices = @transform_2, window_bounds = array<i64: 1, 16>}, {pipeline_mode = #tpu.pipeline_mode<synchronous>, transform_indices = @transform_3, window_bounds = array<i64: 1, 16>}, {transform_indices = @transform_4, window_bounds = array<i64: 112, 16>}]} {
    %c0 = arith.constant 0 : index
    %c0_0 = arith.constant 0 : index
    %0 = vector.load %arg1[%c0, %c0_0] : memref<448x72xf32, #tpu.memory_space<vmem>>, vector<448x72xf32>
    %c0_1 = arith.constant 0 : index
    %c0_2 = arith.constant 0 : index
    %1 = vector.load %arg2[%c0_1, %c0_2] : memref<72x16xf32, #tpu.memory_space<vmem>>, vector<72x16xf32>
    %cst = arith.constant dense<0.000000e+00> : vector<448x16xf32>
    %2 = tpu.matmul %0, %1, %cst {dimension_numbers = #tpu.dot_dimension_numbers<[1], [0], [0], [1], [0, 0, 1, 1], [], []>} : vector<448x72xf32>, vector<72x16xf32>, vector<448x16xf32> -> vector<448x16xf32>
    %c0_3 = arith.constant 0 : index
    %c0_4 = arith.constant 0 : index
    %3 = vector.load %arg3[%c0_3, %c0_4] : memref<1x16xf32, #tpu.memory_space<vmem>>, vector<1x16xf32>
    %4 = vector.broadcast %3 : vector<1x16xf32> to vector<448x16xf32>
    %5 = arith.mulf %2, %4 : vector<448x16xf32>
    %c0_5 = arith.constant 0 : index
    %c0_6 = arith.constant 0 : index
    %6 = vector.load %arg4[%c0_5, %c0_6] : memref<1x16xf32, #tpu.memory_space<vmem>>, vector<1x16xf32>
    %7 = vector.broadcast %6 : vector<1x16xf32> to vector<448x16xf32>
    %8 = arith.addf %5, %7 : vector<448x16xf32>
    %cst_7 = arith.constant 0.000000e+00 : f32
    %9 = vector.broadcast %cst_7 : f32 to vector<448x16xf32>
    %10 = arith.cmpf ogt, %8, %9 : vector<448x16xf32>
    %cst_8 = arith.constant 0.000000e+00 : f32
    %11 = vector.broadcast %cst_8 : f32 to vector<448x16xf32>
    %12 = arith.minimumf %8, %11 : vector<448x16xf32>
    %13 = math.exp %12 : vector<448x16xf32>
    %cst_9 = arith.constant 1.000000e+00 : f32
    %14 = vector.broadcast %cst_9 : f32 to vector<448x16xf32>
    %15 = arith.subf %13, %14 : vector<448x16xf32>
    %16 = arith.select %10, %8, %15 : vector<448x16xi1>, vector<448x16xf32>
    %17 = vector.extract_strided_slice %16 {offsets = [0, 0], sizes = [56, 16], strides = [1, 1]} : vector<448x16xf32> to vector<56x16xf32>
    %18 = vector.extract_strided_slice %16 {offsets = [56, 0], sizes = [56, 16], strides = [1, 1]} : vector<448x16xf32> to vector<56x16xf32>
    %19 = arith.maximumf %17, %18 : vector<56x16xf32>
    %20 = vector.extract_strided_slice %16 {offsets = [112, 0], sizes = [56, 16], strides = [1, 1]} : vector<448x16xf32> to vector<56x16xf32>
    %21 = vector.extract_strided_slice %16 {offsets = [168, 0], sizes = [56, 16], strides = [1, 1]} : vector<448x16xf32> to vector<56x16xf32>
    %22 = arith.maximumf %20, %21 : vector<56x16xf32>
    %23 = arith.maximumf %19, %22 : vector<56x16xf32>
    %c0_10 = arith.constant 0 : index
    %c0_11 = arith.constant 0 : index
    %24 = vector.load %arg5[%c0_10, %c0_11] : memref<112x16xf32, #tpu.memory_space<vmem>>, vector<56x16xf32>
    tpu.vector_store %arg5[%c0_10, %c0_11], %23 {strides = array<i32>} : memref<112x16xf32, #tpu.memory_space<vmem>>, vector<56x16xf32>,
    %25 = vector.extract_strided_slice %16 {offsets = [224, 0], sizes = [56, 16], strides = [1, 1]} : vector<448x16xf32> to vector<56x16xf32>
    %26 = vector.extract_strided_slice %16 {offsets = [280, 0], sizes = [56, 16], strides = [1, 1]} : vector<448x16xf32> to vector<56x16xf32>
    %27 = arith.maximumf %25, %26 : vector<56x16xf32>
    %28 = vector.extract_strided_slice %16 {offsets = [336, 0], sizes = [56, 16], strides = [1, 1]} : vector<448x16xf32> to vector<56x16xf32>
    %29 = vector.extract_strided_slice %16 {offsets = [392, 0], sizes = [56, 16], strides = [1, 1]} : vector<448x16xf32> to vector<56x16xf32>
    %30 = arith.maximumf %28, %29 : vector<56x16xf32>
    %31 = arith.maximumf %27, %30 : vector<56x16xf32>
    %c56 = arith.constant 56 : index
    %c0_12 = arith.constant 0 : index
    %32 = vector.load %arg5[%c56, %c0_12] : memref<112x16xf32, #tpu.memory_space<vmem>>, vector<56x16xf32>
    tpu.vector_store %arg5[%c56, %c0_12], %31 {strides = array<i32>} : memref<112x16xf32, #tpu.memory_space<vmem>>, vector<56x16xf32>,
    return
  }
  func.func @transform_0(%arg0: i32) -> (i32, i32) {
    %c0_i32 = arith.constant 0 : i32
    %c0_i32_0 = arith.constant 0 : i32
    return %arg0, %c0_i32 : i32, i32
  }
  func.func @transform_1(%arg0: i32) -> (i32, i32) {
    %c0_i32 = arith.constant 0 : i32
    %c0_i32_0 = arith.constant 0 : i32
    %c0_i32_1 = arith.constant 0 : i32
    return %c0_i32, %c0_i32_0 : i32, i32
  }
  func.func @transform_2(%arg0: i32) -> (i32, i32) {
    %c0_i32 = arith.constant 0 : i32
    %c0_i32_0 = arith.constant 0 : i32
    %c0_i32_1 = arith.constant 0 : i32
    return %c0_i32, %c0_i32_0 : i32, i32
  }
  func.func @transform_3(%arg0: i32) -> (i32, i32) {
    %c0_i32 = arith.constant 0 : i32
    %c0_i32_0 = arith.constant 0 : i32
    %c0_i32_1 = arith.constant 0 : i32
    return %c0_i32, %c0_i32_0 : i32, i32
  }
  func.func @transform_4(%arg0: i32) -> (i32, i32) {
    %c0_i32 = arith.constant 0 : i32
    %c0_i32_0 = arith.constant 0 : i32
    return %arg0, %c0_i32 : i32, i32
  }
}

module attributes {stable_mosaic.version = 11 : i64} {
  func.func @conv_bn_elu_kernel(%arg0: i32, %arg1: memref<112x144xf32, #tpu.memory_space<vmem>>, %arg2: memref<144x32xf32, #tpu.memory_space<vmem>>, %arg3: memref<1x32xf32, #tpu.memory_space<vmem>>, %arg4: memref<1x32xf32, #tpu.memory_space<vmem>>, %arg5: memref<112x32xf32, #tpu.memory_space<vmem>>) attributes {dimension_semantics = [#tpu.dimension_semantics<parallel>], iteration_bounds = array<i64: 1>, scalar_prefetch = 0 : i64, scratch_operands = 0 : i64, tpu.core_type = #tpu.core_type<tc>, window_params = [{transform_indices = @transform_0, window_bounds = array<i64: 112, 144>}, {pipeline_mode = #tpu.pipeline_mode<synchronous>, transform_indices = @transform_1, window_bounds = array<i64: 144, 32>}, {pipeline_mode = #tpu.pipeline_mode<synchronous>, transform_indices = @transform_2, window_bounds = array<i64: 1, 32>}, {pipeline_mode = #tpu.pipeline_mode<synchronous>, transform_indices = @transform_3, window_bounds = array<i64: 1, 32>}, {transform_indices = @transform_4, window_bounds = array<i64: 112, 32>}]} {
    %c0 = arith.constant 0 : index
    %c0_0 = arith.constant 0 : index
    %0 = vector.load %arg1[%c0, %c0_0] : memref<112x144xf32, #tpu.memory_space<vmem>>, vector<112x144xf32>
    %c0_1 = arith.constant 0 : index
    %c0_2 = arith.constant 0 : index
    %1 = vector.load %arg2[%c0_1, %c0_2] : memref<144x32xf32, #tpu.memory_space<vmem>>, vector<144x32xf32>
    %cst = arith.constant dense<0.000000e+00> : vector<112x32xf32>
    %2 = tpu.matmul %0, %1, %cst {dimension_numbers = #tpu.dot_dimension_numbers<[1], [0], [0], [1], [0, 0, 1, 1], [], []>} : vector<112x144xf32>, vector<144x32xf32>, vector<112x32xf32> -> vector<112x32xf32>
    %c0_3 = arith.constant 0 : index
    %c0_4 = arith.constant 0 : index
    %3 = vector.load %arg3[%c0_3, %c0_4] : memref<1x32xf32, #tpu.memory_space<vmem>>, vector<1x32xf32>
    %4 = vector.broadcast %3 : vector<1x32xf32> to vector<112x32xf32>
    %5 = arith.mulf %2, %4 : vector<112x32xf32>
    %c0_5 = arith.constant 0 : index
    %c0_6 = arith.constant 0 : index
    %6 = vector.load %arg4[%c0_5, %c0_6] : memref<1x32xf32, #tpu.memory_space<vmem>>, vector<1x32xf32>
    %7 = vector.broadcast %6 : vector<1x32xf32> to vector<112x32xf32>
    %8 = arith.addf %5, %7 : vector<112x32xf32>
    %cst_7 = arith.constant 0.000000e+00 : f32
    %9 = vector.broadcast %cst_7 : f32 to vector<112x32xf32>
    %10 = arith.cmpf ogt, %8, %9 : vector<112x32xf32>
    %cst_8 = arith.constant 0.000000e+00 : f32
    %11 = vector.broadcast %cst_8 : f32 to vector<112x32xf32>
    %12 = arith.minimumf %8, %11 : vector<112x32xf32>
    %13 = math.exp %12 : vector<112x32xf32>
    %cst_9 = arith.constant 1.000000e+00 : f32
    %14 = vector.broadcast %cst_9 : f32 to vector<112x32xf32>
    %15 = arith.subf %13, %14 : vector<112x32xf32>
    %16 = arith.select %10, %8, %15 : vector<112x32xi1>, vector<112x32xf32>
    %c0_10 = arith.constant 0 : index
    %c0_11 = arith.constant 0 : index
    %17 = vector.load %arg5[%c0_10, %c0_11] : memref<112x32xf32, #tpu.memory_space<vmem>>, vector<112x32xf32>
    tpu.vector_store %arg5[%c0_10, %c0_11], %16 {strides = array<i32>} : memref<112x32xf32, #tpu.memory_space<vmem>>, vector<112x32xf32>,
    return
  }
  func.func @transform_0(%arg0: i32) -> (i32, i32) {
    %c0_i32 = arith.constant 0 : i32
    %c0_i32_0 = arith.constant 0 : i32
    return %arg0, %c0_i32 : i32, i32
  }
  func.func @transform_1(%arg0: i32) -> (i32, i32) {
    %c0_i32 = arith.constant 0 : i32
    %c0_i32_0 = arith.constant 0 : i32
    %c0_i32_1 = arith.constant 0 : i32
    return %c0_i32, %c0_i32_0 : i32, i32
  }
  func.func @transform_2(%arg0: i32) -> (i32, i32) {
    %c0_i32 = arith.constant 0 : i32
    %c0_i32_0 = arith.constant 0 : i32
    %c0_i32_1 = arith.constant 0 : i32
    return %c0_i32, %c0_i32_0 : i32, i32
  }
  func.func @transform_3(%arg0: i32) -> (i32, i32) {
    %c0_i32 = arith.constant 0 : i32
    %c0_i32_0 = arith.constant 0 : i32
    %c0_i32_1 = arith.constant 0 : i32
    return %c0_i32, %c0_i32_0 : i32, i32
  }
  func.func @transform_4(%arg0: i32) -> (i32, i32) {
    %c0_i32 = arith.constant 0 : i32
    %c0_i32_0 = arith.constant 0 : i32
    return %arg0, %c0_i32 : i32, i32
  }
}

module attributes {stable_mosaic.version = 11 : i64} {
  func.func @fc_head_kernel(%arg0: i32, %arg1: memref<2x1568xf32, #tpu.memory_space<vmem>>, %arg2: memref<1568x64xf32, #tpu.memory_space<vmem>>, %arg3: memref<1x64xf32, #tpu.memory_space<vmem>>, %arg4: memref<64x32xf32, #tpu.memory_space<vmem>>, %arg5: memref<1x32xf32, #tpu.memory_space<vmem>>, %arg6: memref<32x25xf32, #tpu.memory_space<vmem>>, %arg7: memref<1x25xf32, #tpu.memory_space<vmem>>, %arg8: memref<2x25xf32, #tpu.memory_space<vmem>>) attributes {dimension_semantics = [#tpu.dimension_semantics<parallel>], iteration_bounds = array<i64: 1>, scalar_prefetch = 0 : i64, scratch_operands = 0 : i64, tpu.core_type = #tpu.core_type<tc>, window_params = [{transform_indices = @transform_0, window_bounds = array<i64: 2, 1568>}, {pipeline_mode = #tpu.pipeline_mode<synchronous>, transform_indices = @transform_1, window_bounds = array<i64: 1568, 64>}, {pipeline_mode = #tpu.pipeline_mode<synchronous>, transform_indices = @transform_2, window_bounds = array<i64: 1, 64>}, {pipeline_mode = #tpu.pipeline_mode<synchronous>, transform_indices = @transform_3, window_bounds = array<i64: 64, 32>}, {pipeline_mode = #tpu.pipeline_mode<synchronous>, transform_indices = @transform_4, window_bounds = array<i64: 1, 32>}, {pipeline_mode = #tpu.pipeline_mode<synchronous>, transform_indices = @transform_5, window_bounds = array<i64: 32, 25>}, {pipeline_mode = #tpu.pipeline_mode<synchronous>, transform_indices = @transform_6, window_bounds = array<i64: 1, 25>}, {transform_indices = @transform_7, window_bounds = array<i64: 2, 25>}]} {
    %c0 = arith.constant 0 : index
    %c0_0 = arith.constant 0 : index
    %0 = vector.load %arg1[%c0, %c0_0] : memref<2x1568xf32, #tpu.memory_space<vmem>>, vector<2x1568xf32>
    %c0_1 = arith.constant 0 : index
    %c0_2 = arith.constant 0 : index
    %1 = vector.load %arg2[%c0_1, %c0_2] : memref<1568x64xf32, #tpu.memory_space<vmem>>, vector<1568x64xf32>
    %cst = arith.constant dense<0.000000e+00> : vector<2x64xf32>
    %2 = tpu.matmul %0, %1, %cst {dimension_numbers = #tpu.dot_dimension_numbers<[1], [0], [0], [1], [0, 0, 1, 1], [], []>} : vector<2x1568xf32>, vector<1568x64xf32>, vector<2x64xf32> -> vector<2x64xf32>
    %c0_3 = arith.constant 0 : index
    %c0_4 = arith.constant 0 : index
    %3 = vector.load %arg3[%c0_3, %c0_4] : memref<1x64xf32, #tpu.memory_space<vmem>>, vector<1x64xf32>
    %4 = vector.broadcast %3 : vector<1x64xf32> to vector<2x64xf32>
    %5 = arith.addf %2, %4 : vector<2x64xf32>
    %cst_5 = arith.constant 0.000000e+00 : f32
    %6 = vector.broadcast %cst_5 : f32 to vector<2x64xf32>
    %7 = arith.cmpf ogt, %5, %6 : vector<2x64xf32>
    %cst_6 = arith.constant 0.000000e+00 : f32
    %8 = vector.broadcast %cst_6 : f32 to vector<2x64xf32>
    %9 = arith.minimumf %5, %8 : vector<2x64xf32>
    %10 = math.exp %9 : vector<2x64xf32>
    %cst_7 = arith.constant 1.000000e+00 : f32
    %11 = vector.broadcast %cst_7 : f32 to vector<2x64xf32>
    %12 = arith.subf %10, %11 : vector<2x64xf32>
    %13 = arith.select %7, %5, %12 : vector<2x64xi1>, vector<2x64xf32>
    %c0_8 = arith.constant 0 : index
    %c0_9 = arith.constant 0 : index
    %14 = vector.load %arg4[%c0_8, %c0_9] : memref<64x32xf32, #tpu.memory_space<vmem>>, vector<64x32xf32>
    %cst_10 = arith.constant dense<0.000000e+00> : vector<2x32xf32>
    %15 = tpu.matmul %13, %14, %cst_10 {dimension_numbers = #tpu.dot_dimension_numbers<[1], [0], [0], [1], [0, 0, 1, 1], [], []>} : vector<2x64xf32>, vector<64x32xf32>, vector<2x32xf32> -> vector<2x32xf32>
    %c0_11 = arith.constant 0 : index
    %c0_12 = arith.constant 0 : index
    %16 = vector.load %arg5[%c0_11, %c0_12] : memref<1x32xf32, #tpu.memory_space<vmem>>, vector<1x32xf32>
    %17 = vector.broadcast %16 : vector<1x32xf32> to vector<2x32xf32>
    %18 = arith.addf %15, %17 : vector<2x32xf32>
    %cst_13 = arith.constant 0.000000e+00 : f32
    %19 = vector.broadcast %cst_13 : f32 to vector<2x32xf32>
    %20 = arith.cmpf ogt, %18, %19 : vector<2x32xf32>
    %cst_14 = arith.constant 0.000000e+00 : f32
    %21 = vector.broadcast %cst_14 : f32 to vector<2x32xf32>
    %22 = arith.minimumf %18, %21 : vector<2x32xf32>
    %23 = math.exp %22 : vector<2x32xf32>
    %cst_15 = arith.constant 1.000000e+00 : f32
    %24 = vector.broadcast %cst_15 : f32 to vector<2x32xf32>
    %25 = arith.subf %23, %24 : vector<2x32xf32>
    %26 = arith.select %20, %18, %25 : vector<2x32xi1>, vector<2x32xf32>
    %c0_16 = arith.constant 0 : index
    %c0_17 = arith.constant 0 : index
    %27 = vector.load %arg6[%c0_16, %c0_17] : memref<32x25xf32, #tpu.memory_space<vmem>>, vector<32x25xf32>
    %cst_18 = arith.constant dense<0.000000e+00> : vector<2x25xf32>
    %28 = tpu.matmul %26, %27, %cst_18 {dimension_numbers = #tpu.dot_dimension_numbers<[1], [0], [0], [1], [0, 0, 1, 1], [], []>} : vector<2x32xf32>, vector<32x25xf32>, vector<2x25xf32> -> vector<2x25xf32>
    %c0_19 = arith.constant 0 : index
    %c0_20 = arith.constant 0 : index
    %29 = vector.load %arg7[%c0_19, %c0_20] : memref<1x25xf32, #tpu.memory_space<vmem>>, vector<1x25xf32>
    %30 = vector.broadcast %29 : vector<1x25xf32> to vector<2x25xf32>
    %31 = arith.addf %28, %30 : vector<2x25xf32>
    %c0_21 = arith.constant 0 : index
    %c0_22 = arith.constant 0 : index
    %32 = vector.load %arg8[%c0_21, %c0_22] : memref<2x25xf32, #tpu.memory_space<vmem>>, vector<2x25xf32>
    tpu.vector_store %arg8[%c0_21, %c0_22], %31 {strides = array<i32>} : memref<2x25xf32, #tpu.memory_space<vmem>>, vector<2x25xf32>,
    return
  }
  func.func @transform_0(%arg0: i32) -> (i32, i32) {
    %c0_i32 = arith.constant 0 : i32
    %c0_i32_0 = arith.constant 0 : i32
    return %arg0, %c0_i32 : i32, i32
  }
  func.func @transform_1(%arg0: i32) -> (i32, i32) {
    %c0_i32 = arith.constant 0 : i32
    %c0_i32_0 = arith.constant 0 : i32
    %c0_i32_1 = arith.constant 0 : i32
    return %c0_i32, %c0_i32_0 : i32, i32
  }
  func.func @transform_2(%arg0: i32) -> (i32, i32) {
    %c0_i32 = arith.constant 0 : i32
    %c0_i32_0 = arith.constant 0 : i32
    %c0_i32_1 = arith.constant 0 : i32
    return %c0_i32, %c0_i32_0 : i32, i32
  }
  func.func @transform_3(%arg0: i32) -> (i32, i32) {
    %c0_i32 = arith.constant 0 : i32
    %c0_i32_0 = arith.constant 0 : i32
    %c0_i32_1 = arith.constant 0 : i32
    return %c0_i32, %c0_i32_0 : i32, i32
  }
  func.func @transform_4(%arg0: i32) -> (i32, i32) {
    %c0_i32 = arith.constant 0 : i32
    %c0_i32_0 = arith.constant 0 : i32
    %c0_i32_1 = arith.constant 0 : i32
    return %c0_i32, %c0_i32_0 : i32, i32
  }
  func.func @transform_5(%arg0: i32) -> (i32, i32) {
    %c0_i32 = arith.constant 0 : i32
    %c0_i32_0 = arith.constant 0 : i32
    %c0_i32_1 = arith.constant 0 : i32
    return %c0_i32, %c0_i32_0 : i32, i32
  }
  func.func @transform_6(%arg0: i32) -> (i32, i32) {
    %c0_i32 = arith.constant 0 : i32
    %c0_i32_0 = arith.constant 0 : i32
    %c0_i32_1 = arith.constant 0 : i32
    return %c0_i32, %c0_i32_0 : i32, i32
  }
  func.func @transform_7(%arg0: i32) -> (i32, i32) {
    %c0_i32 = arith.constant 0 : i32
    %c0_i32_0 = arith.constant 0 : i32
    return %arg0, %c0_i32 : i32, i32
  }
}

</mosaic_0001>

<llo_original>
// kernel: forward.4
$region0: #{forward.4}
  #allocation0 [shape = 'u32[]', space=smem, size = 0x4, offset = 0x4, fixed_abs, tag = 'smem constant byte address 0x4 - core index']
  #allocation1 [shape = 'u32[144,128]{1,0:T(1,128)}', space=vmem, size = 0x12000, scoped, tag = 'internal scratch']
  %s0 = inlined_call_operand.vmem [shape: f32[1600,9], index: 0, kind: input, shape index: {}]
  %s1 = inlined_call_operand.vmem [shape: f32[9,8], index: 1, kind: input, shape index: {}]
  %s2 = inlined_call_operand.vmem [shape: f32[1,8], index: 2, kind: input, shape index: {}]
  %s3 = inlined_call_operand.vmem [shape: f32[1,8], index: 3, kind: input, shape index: {}]
  %s4 = inlined_call_operand.vmem [shape: f32[400,8], index: 4, kind: output, shape index: {}]
  %s5 = sld [smem:[#allocation0]]
  $region26: #{forward.4} parent=0
    _
  %s7 = ssub.s32 1, %s5
  %s8 = scalar_select 0, %s7, %s5
  // Predicated region
  $region2: #{forward.4} parent=0 // pred_check
    _
  $region3: #{forward.4} parent=0 // pred_check_branch
    %10 = sbr.rel (0) target = $region5
  $region4: #{forward.4} parent=0 // pred_region
    _
  $region5: #{forward.4} parent=0 // pred_fallthru
    _
  // Predicated region
  $region6: #{forward.4} parent=0 // pred_check
    _
  $region7: #{forward.4} parent=0 // pred_check_branch
    %12 = sbr.rel (0) target = $region9
  $region8: #{forward.4} parent=0 // pred_region
    _
  $region9: #{forward.4} parent=0 // pred_fallthru
    _
  // Predicated region
  $region10: #{forward.4} parent=0 // pred_check
    _
  $region11: #{forward.4} parent=0 // pred_check_branch
    %14 = sbr.rel (0) target = $region13
  $region12: #{forward.4} parent=0 // pred_region
    _
  $region13: #{forward.4} parent=0 // pred_fallthru
    _
  // Predicated region
  $region14: #{forward.4} parent=0 // pred_check
    _
  $region15: #{forward.4} parent=0 // pred_check_branch
    %16 = sbr.rel (0) target = $region17
  $region16: #{forward.4} parent=0 // pred_region
    _
  $region17: #{forward.4} parent=0 // pred_fallthru
    _
  %v17 = vld [vmem:[%s0] sm:$0xff]
  %v18 = vld [vmem:[%s0 + $0x8] sm:$0xff]
  %v19 = vld [vmem:[%s0 + $0x10] sm:$0xff]
  %v20 = vld [vmem:[%s0 + $0x18] sm:$0xff]
  %v21 = vld [vmem:[%s0 + $0x20] sm:$0xff]
  %v22 = vld [vmem:[%s0 + $0x28] sm:$0xff]
  %v23 = vld [vmem:[%s0 + $0x30] sm:$0xff]
  %v24 = vld [vmem:[%s0 + $0x38] sm:$0xff]
  %v25 = vld [vmem:[%s0 + $0x40] sm:$0xff]
  %v26 = vld [vmem:[%s0 + $0x48] sm:$0xff]
  %v27 = vld [vmem:[%s0 + $0x50] sm:$0xff]
  %v28 = vld [vmem:[%s0 + $0x58] sm:$0xff]
  %v29 = vld [vmem:[%s0 + $0x60] sm:$0xff]
  %v30 = vld [vmem:[%s0 + $0x68] sm:$0xff]
  %v31 = vld [vmem:[%s0 + $0x70] sm:$0xff]
  %v32 = vld [vmem:[%s0 + $0x78] sm:$0xff]
  %v33 = vld [vmem:[%s0 + $0x80] sm:$0xff]
  %v34 = vld [vmem:[%s0 + $0x88] sm:$0xff]
  %v35 = vld [vmem:[%s0 + $0x90] sm:$0xff]
  %v36 = vld [vmem:[%s0 + $0x98] sm:$0xff]
  %v37 = vld [vmem:[%s0 + $0xa0] sm:$0xff]
  %v38 = vld [vmem:[%s0 + $0xa8] sm:$0xff]
  %v39 = vld [vmem:[%s0 + $0xb0] sm:$0xff]
  %v40 = vld [vmem:[%s0 + $0xb8] sm:$0xff]
  %v41 = vld [vmem:[%s0 + $0xc0] sm:$0xff]
  %v42 = vld [vmem:[%s0 + $0xc8] sm:$0xff]
  %v43 = vld [vmem:[%s0 + $0xd0] sm:$0xff]
  %v44 = vld [vmem:[%s0 + $0xd8] sm:$0xff]
  %v45 = vld [vmem:[%s0 + $0xe0] sm:$0xff]
  %v46 = vld [vmem:[%s0 + $0xe8] sm:$0xff]
  %v47 = vld [vmem:[%s0 + $0xf0] sm:$0xff]
  %v48 = vld [vmem:[%s0 + $0xf8] sm:$0xff]
  %v49 = vld [vmem:[%s0 + $0x100] sm:$0xff]
  %v50 = vld [vmem:[%s0 + $0x108] sm:$0xff]
  %v51 = vld [vmem:[%s0 + $0x110] sm:$0xff]
  %v52 = vld [vmem:[%s0 + $0x118] sm:$0xff]
  %v53 = vld [vmem:[%s0 + $0x120] sm:$0xff]
  %v54 = vld [vmem:[%s0 + $0x128] sm:$0xff]
  %v55 = vld [vmem:[%s0 + $0x130] sm:$0xff]
  %v56 = vld [vmem:[%s0 + $0x138] sm:$0xff]
  %v57 = vld [vmem:[%s0 + $0x140] sm:$0xff]
  %v58 = vld [vmem:[%s0 + $0x148] sm:$0xff]
  %v59 = vld [vmem:[%s0 + $0x150] sm:$0xff]
  %v60 = vld [vmem:[%s0 + $0x158] sm:$0xff]
  %v61 = vld [vmem:[%s0 + $0x160] sm:$0xff]
  %v62 = vld [vmem:[%s0 + $0x168] sm:$0xff]
  %v63 = vld [vmem:[%s0 + $0x170] sm:$0xff]
  %v64 = vld [vmem:[%s0 + $0x178] sm:$0xff]
  %v65 = vld [vmem:[%s0 + $0x180] sm:$0xff]
  %v66 = vld [vmem:[%s0 + $0x188] sm:$0xff]
  %v67 = vld [vmem:[%s0 + $0x190] sm:$0xff]
  %v68 = vld [vmem:[%s0 + $0x198] sm:$0xff]
  %v69 = vld [vmem:[%s0 + $0x1a0] sm:$0xff]
  %v70 = vld [vmem:[%s0 + $0x1a8] sm:$0xff]
  %v71 = vld [vmem:[%s0 + $0x1b0] sm:$0xff]
  %v72 = vld [vmem:[%s0 + $0x1b8] sm:$0xff]
  %v73 = vld [vmem:[%s0 + $0x1c0] sm:$0xff]
  %v74 = vld [vmem:[%s0 + $0x1c8] sm:$0xff]
  %v75 = vld [vmem:[%s0 + $0x1d0] sm:$0xff]
  %v76 = vld [vmem:[%s0 + $0x1d8] sm:$0xff]
  %v77 = vld [vmem:[%s0 + $0x1e0] sm:$0xff]
  %v78 = vld [vmem:[%s0 + $0x1e8] sm:$0xff]
  %v79 = vld [vmem:[%s0 + $0x1f0] sm:$0xff]
  %v80 = vld [vmem:[%s0 + $0x1f8] sm:$0xff]
  %v81 = vld [vmem:[%s0 + $0x200] sm:$0xff]
  %v82 = vld [vmem:[%s0 + $0x208] sm:$0xff]
  %v83 = vld [vmem:[%s0 + $0x210] sm:$0xff]
  %v84 = vld [vmem:[%s0 + $0x218] sm:$0xff]
  %v85 = vld [vmem:[%s0 + $0x220] sm:$0xff]
  %v86 = vld [vmem:[%s0 + $0x228] sm:$0xff]
  %v87 = vld [vmem:[%s0 + $0x230] sm:$0xff]
  %v88 = vld [vmem:[%s0 + $0x238] sm:$0xff]
  %v89 = vld [vmem:[%s0 + $0x240] sm:$0xff]
  %v90 = vld [vmem:[%s0 + $0x248] sm:$0xff]
  %v91 = vld [vmem:[%s0 + $0x250] sm:$0xff]
  %v92 = vld [vmem:[%s0 + $0x258] sm:$0xff]
  %v93 = vld [vmem:[%s0 + $0x260] sm:$0xff]
  %v94 = vld [vmem:[%s0 + $0x268] sm:$0xff]
  %v95 = vld [vmem:[%s0 + $0x270] sm:$0xff]
  %v96 = vld [vmem:[%s0 + $0x278] sm:$0xff]
  %v97 = vld [vmem:[%s0 + $0x280] sm:$0xff]
  %v98 = vld [vmem:[%s0 + $0x288] sm:$0xff]
  %v99 = vld [vmem:[%s0 + $0x290] sm:$0xff]
  %v100 = vld [vmem:[%s0 + $0x298] sm:$0xff]
  %v101 = vld [vmem:[%s0 + $0x2a0] sm:$0xff]
  %v102 = vld [vmem:[%s0 + $0x2a8] sm:$0xff]
  %v103 = vld [vmem:[%s0 + $0x2b0] sm:$0xff]
  %v104 = vld [vmem:[%s0 + $0x2b8] sm:$0xff]
  %v105 = vld [vmem:[%s0 + $0x2c0] sm:$0xff]
  %v106 = vld [vmem:[%s0 + $0x2c8] sm:$0xff]
  %v107 = vld [vmem:[%s0 + $0x2d0] sm:$0xff]
  %v108 = vld [vmem:[%s0 + $0x2d8] sm:$0xff]
  %v109 = vld [vmem:[%s0 + $0x2e0] sm:$0xff]
  %v110 = vld [vmem:[%s0 + $0x2e8] sm:$0xff]
  %v111 = vld [vmem:[%s0 + $0x2f0] sm:$0xff]
  %v112 = vld [vmem:[%s0 + $0x2f8] sm:$0xff]
  %v113 = vld [vmem:[%s0 + $0x300] sm:$0xff]
  %v114 = vld [vmem:[%s0 + $0x308] sm:$0xff]
  %v115 = vld [vmem:[%s0 + $0x310] sm:$0xff]
  %v116 = vld [vmem:[%s0 + $0x318] sm:$0xff]
  %v117 = vld [vmem:[%s0 + $0x320] sm:$0xff]
  %v118 = vld [vmem:[%s0 + $0x328] sm:$0xff]
  %v119 = vld [vmem:[%s0 + $0x330] sm:$0xff]
  %v120 = vld [vmem:[%s0 + $0x338] sm:$0xff]
  %v121 = vld [vmem:[%s0 + $0x340] sm:$0xff]
  %v122 = vld [vmem:[%s0 + $0x348] sm:$0xff]
  %v123 = vld [vmem:[%s0 + $0x350] sm:$0xff]
  %v124 = vld [vmem:[%s0 + $0x358] sm:$0xff]
  %v125 = vld [vmem:[%s0 + $0x360] sm:$0xff]
  %v126 = vld [vmem:[%s0 + $0x368] sm:$0xff]
  %v127 = vld [vmem:[%s0 + $0x370] sm:$0xff]
  %v128 = vld [vmem:[%s0 + $0x378] sm:$0xff]
  %v129 = vld [vmem:[%s0 + $0x380] sm:$0xff]
  %v130 = vld [vmem:[%s0 + $0x388] sm:$0xff]
  %v131 = vld [vmem:[%s0 + $0x390] sm:$0xff]
  %v132 = vld [vmem:[%s0 + $0x398] sm:$0xff]
  %v133 = vld [vmem:[%s0 + $0x3a0] sm:$0xff]
  %v134 = vld [vmem:[%s0 + $0x3a8] sm:$0xff]
  %v135 = vld [vmem:[%s0 + $0x3b0] sm:$0xff]
  %v136 = vld [vmem:[%s0 + $0x3b8] sm:$0xff]
  %v137 = vld [vmem:[%s0 + $0x3c0] sm:$0xff]
  %v138 = vld [vmem:[%s0 + $0x3c8] sm:$0xff]
  %v139 = vld [vmem:[%s0 + $0x3d0] sm:$0xff]
  %v140 = vld [vmem:[%s0 + $0x3d8] sm:$0xff]
  %v141 = vld [vmem:[%s0 + $0x3e0] sm:$0xff]
  %v142 = vld [vmem:[%s0 + $0x3e8] sm:$0xff]
  %v143 = vld [vmem:[%s0 + $0x3f0] sm:$0xff]
  %v144 = vld [vmem:[%s0 + $0x3f8] sm:$0xff]
  %v145 = vld [vmem:[%s0 + $0x400] sm:$0xff]
  %v146 = vld [vmem:[%s0 + $0x408] sm:$0xff]
  %v147 = vld [vmem:[%s0 + $0x410] sm:$0xff]
  %v148 = vld [vmem:[%s0 + $0x418] sm:$0xff]
  %v149 = vld [vmem:[%s0 + $0x420] sm:$0xff]
  %v150 = vld [vmem:[%s0 + $0x428] sm:$0xff]
  %v151 = vld [vmem:[%s0 + $0x430] sm:$0xff]
  %v152 = vld [vmem:[%s0 + $0x438] sm:$0xff]
  %v153 = vld [vmem:[%s0 + $0x440] sm:$0xff]
  %v154 = vld [vmem:[%s0 + $0x448] sm:$0xff]
  %v155 = vld [vmem:[%s0 + $0x450] sm:$0xff]
  %v156 = vld [vmem:[%s0 + $0x458] sm:$0xff]
  %v157 = vld [vmem:[%s0 + $0x460] sm:$0xff]
  %v158 = vld [vmem:[%s0 + $0x468] sm:$0xff]
  %v159 = vld [vmem:[%s0 + $0x470] sm:$0xff]
  %v160 = vld [vmem:[%s0 + $0x478] sm:$0xff]
  %v161 = vld [vmem:[%s0 + $0x480] sm:$0xff]
  %v162 = vld [vmem:[%s0 + $0x488] sm:$0xff]
  %v163 = vld [vmem:[%s0 + $0x490] sm:$0xff]
  %v164 = vld [vmem:[%s0 + $0x498] sm:$0xff]
  %v165 = vld [vmem:[%s0 + $0x4a0] sm:$0xff]
  %v166 = vld [vmem:[%s0 + $0x4a8] sm:$0xff]
  %v167 = vld [vmem:[%s0 + $0x4b0] sm:$0xff]
  %v168 = vld [vmem:[%s0 + $0x4b8] sm:$0xff]
  %v169 = vld [vmem:[%s0 + $0x4c0] sm:$0xff]
  %v170 = vld [vmem:[%s0 + $0x4c8] sm:$0xff]
  %v171 = vld [vmem:[%s0 + $0x4d0] sm:$0xff]
  %v172 = vld [vmem:[%s0 + $0x4d8] sm:$0xff]
  %v173 = vld [vmem:[%s0 + $0x4e0] sm:$0xff]
  %v174 = vld [vmem:[%s0 + $0x4e8] sm:$0xff]
  %v175 = vld [vmem:[%s0 + $0x4f0] sm:$0xff]
  %v176 = vld [vmem:[%s0 + $0x4f8] sm:$0xff]
  %v177 = vld [vmem:[%s0 + $0x500] sm:$0xff]
  %v178 = vld [vmem:[%s0 + $0x508] sm:$0xff]
  %v179 = vld [vmem:[%s0 + $0x510] sm:$0xff]
  %v180 = vld [vmem:[%s0 + $0x518] sm:$0xff]
  %v181 = vld [vmem:[%s0 + $0x520] sm:$0xff]
  %v182 = vld [vmem:[%s0 + $0x528] sm:$0xff]
  %v183 = vld [vmem:[%s0 + $0x530] sm:$0xff]
  %v184 = vld [vmem:[%s0 + $0x538] sm:$0xff]
  %v185 = vld [vmem:[%s0 + $0x540] sm:$0xff]
  %v186 = vld [vmem:[%s0 + $0x548] sm:$0xff]
  %v187 = vld [vmem:[%s0 + $0x550] sm:$0xff]
  %v188 = vld [vmem:[%s0 + $0x558] sm:$0xff]
  %v189 = vld [vmem:[%s0 + $0x560] sm:$0xff]
  %v190 = vld [vmem:[%s0 + $0x568] sm:$0xff]
  %v191 = vld [vmem:[%s0 + $0x570] sm:$0xff]
  %v192 = vld [vmem:[%s0 + $0x578] sm:$0xff]
  %v193 = vld [vmem:[%s0 + $0x580] sm:$0xff]
  %v194 = vld [vmem:[%s0 + $0x588] sm:$0xff]
  %v195 = vld [vmem:[%s0 + $0x590] sm:$0xff]
  %v196 = vld [vmem:[%s0 + $0x598] sm:$0xff]
  %v197 = vld [vmem:[%s0 + $0x5a0] sm:$0xff]
  %v198 = vld [vmem:[%s0 + $0x5a8] sm:$0xff]
  %v199 = vld [vmem:[%s0 + $0x5b0] sm:$0xff]
  %v200 = vld [vmem:[%s0 + $0x5b8] sm:$0xff]
  %v201 = vld [vmem:[%s0 + $0x5c0] sm:$0xff]
  %v202 = vld [vmem:[%s0 + $0x5c8] sm:$0xff]
  %v203 = vld [vmem:[%s0 + $0x5d0] sm:$0xff]
  %v204 = vld [vmem:[%s0 + $0x5d8] sm:$0xff]
  %v205 = vld [vmem:[%s0 + $0x5e0] sm:$0xff]
  %v206 = vld [vmem:[%s0 + $0x5e8] sm:$0xff]
  %v207 = vld [vmem:[%s0 + $0x5f0] sm:$0xff]
  %v208 = vld [vmem:[%s0 + $0x5f8] sm:$0xff]
  %v209 = vld [vmem:[%s0 + $0x600] sm:$0xff]
  %v210 = vld [vmem:[%s0 + $0x608] sm:$0xff]
  %v211 = vld [vmem:[%s0 + $0x610] sm:$0xff]
  %v212 = vld [vmem:[%s0 + $0x618] sm:$0xff]
  %v213 = vld [vmem:[%s0 + $0x620] sm:$0xff]
  %v214 = vld [vmem:[%s0 + $0x628] sm:$0xff]
  %v215 = vld [vmem:[%s0 + $0x630] sm:$0xff]
  %v216 = vld [vmem:[%s0 + $0x638] sm:$0xff]
  %v217 = vld [vmem:[%s1] sm:$0xff]
  %v218 = vld [vmem:[%s1 + $0x8] sm:$0x1]
  %vm219 = vcmask 72704
  %v221 = vsel %vm219, %v17, 0
  %v224 = vsel %vm219, %v18, 0
  %v227 = vsel %vm219, %v19, 0
  %v230 = vsel %vm219, %v20, 0
  %v233 = vsel %vm219, %v21, 0
  %v236 = vsel %vm219, %v22, 0
  %v239 = vsel %vm219, %v23, 0
  %v242 = vsel %vm219, %v24, 0
  %v245 = vsel %vm219, %v25, 0
  %v248 = vsel %vm219, %v26, 0
  %v251 = vsel %vm219, %v27, 0
  %v254 = vsel %vm219, %v28, 0
  %v257 = vsel %vm219, %v29, 0
  %v260 = vsel %vm219, %v30, 0
  %v263 = vsel %vm219, %v31, 0
  %v266 = vsel %vm219, %v32, 0
  %v269 = vsel %vm219, %v33, 0
  %v272 = vsel %vm219, %v34, 0
  %v275 = vsel %vm219, %v35, 0
  %v278 = vsel %vm219, %v36, 0
  %v281 = vsel %vm219, %v37, 0
  %v284 = vsel %vm219, %v38, 0
  %v287 = vsel %vm219, %v39, 0
  %v290 = vsel %vm219, %v40, 0
  %v293 = vsel %vm219, %v41, 0
  %v296 = vsel %vm219, %v42, 0
  %v299 = vsel %vm219, %v43, 0
  %v302 = vsel %vm219, %v44, 0
  %v305 = vsel %vm219, %v45, 0
  %v308 = vsel %vm219, %v46, 0
  %v311 = vsel %vm219, %v47, 0
  %v314 = vsel %vm219, %v48, 0
  %v317 = vsel %vm219, %v49, 0
  %v320 = vsel %vm219, %v50, 0
  %v323 = vsel %vm219, %v51, 0
  %v326 = vsel %vm219, %v52, 0
  %v329 = vsel %vm219, %v53, 0
  %v332 = vsel %vm219, %v54, 0
  %v335 = vsel %vm219, %v55, 0
  %v338 = vsel %vm219, %v56, 0
  %v341 = vsel %vm219, %v57, 0
  %v344 = vsel %vm219, %v58, 0
  %v347 = vsel %vm219, %v59, 0
  %v350 = vsel %vm219, %v60, 0
  %v353 = vsel %vm219, %v61, 0
  %v356 = vsel %vm219, %v62, 0
  %v359 = vsel %vm219, %v63, 0
  %v362 = vsel %vm219, %v64, 0
  %v365 = vsel %vm219, %v65, 0
  %v368 = vsel %vm219, %v66, 0
  %v371 = vsel %vm219, %v67, 0
  %v374 = vsel %vm219, %v68, 0
  %v377 = vsel %vm219, %v69, 0
  %v380 = vsel %vm219, %v70, 0
  %v383 = vsel %vm219, %v71, 0
  %v386 = vsel %vm219, %v72, 0
  %v389 = vsel %vm219, %v73, 0
  %v392 = vsel %vm219, %v74, 0
  %v395 = vsel %vm219, %v75, 0
  %v398 = vsel %vm219, %v76, 0
  %v401 = vsel %vm219, %v77, 0
  %v404 = vsel %vm219, %v78, 0
  %v407 = vsel %vm219, %v79, 0
  %v410 = vsel %vm219, %v80, 0
  %v413 = vsel %vm219, %v81, 0
  %v416 = vsel %vm219, %v82, 0
  %v419 = vsel %vm219, %v83, 0
  %v422 = vsel %vm219, %v84, 0
  %v425 = vsel %vm219, %v85, 0
  %v428 = vsel %vm219, %v86, 0
  %v431 = vsel %vm219, %v87, 0
  %v434 = vsel %vm219, %v88, 0
  %v437 = vsel %vm219, %v89, 0
  %v440 = vsel %vm219, %v90, 0
  %v443 = vsel %vm219, %v91, 0
  %v446 = vsel %vm219, %v92, 0
  %v449 = vsel %vm219, %v93, 0
  %v452 = vsel %vm219, %v94, 0
  %v455 = vsel %vm219, %v95, 0
  %v458 = vsel %vm219, %v96, 0
  %v461 = vsel %vm219, %v97, 0
  %v464 = vsel %vm219, %v98, 0
  %v467 = vsel %vm219, %v99, 0
  %v470 = vsel %vm219, %v100, 0
  %v473 = vsel %vm219, %v101, 0
  %v476 = vsel %vm219, %v102, 0
  %v479 = vsel %vm219, %v103, 0
  %v482 = vsel %vm219, %v104, 0
  %v485 = vsel %vm219, %v105, 0
  %v488 = vsel %vm219, %v106, 0
  %v491 = vsel %vm219, %v107, 0
  %v494 = vsel %vm219, %v108, 0
  %v497 = vsel %vm219, %v109, 0
  %v500 = vsel %vm219, %v110, 0
  %v503 = vsel %vm219, %v111, 0
  %v506 = vsel %vm219, %v112, 0
  %v509 = vsel %vm219, %v113, 0
  %v512 = vsel %vm219, %v114, 0
  %v515 = vsel %vm219, %v115, 0
  %v518 = vsel %vm219, %v116, 0
  %v521 = vsel %vm219, %v117, 0
  %v524 = vsel %vm219, %v118, 0
  %v527 = vsel %vm219, %v119, 0
  %v530 = vsel %vm219, %v120, 0
  %v533 = vsel %vm219, %v121, 0
  %v536 = vsel %vm219, %v122, 0
  %v539 = vsel %vm219, %v123, 0
  %v542 = vsel %vm219, %v124, 0
  %v545 = vsel %vm219, %v125, 0
  %v548 = vsel %vm219, %v126, 0
  %v551 = vsel %vm219, %v127, 0
  %v554 = vsel %vm219, %v128, 0
  %v557 = vsel %vm219, %v129, 0
  %v560 = vsel %vm219, %v130, 0
  %v563 = vsel %vm219, %v131, 0
  %v566 = vsel %vm219, %v132, 0
  %v569 = vsel %vm219, %v133, 0
  %v572 = vsel %vm219, %v134, 0
  %v575 = vsel %vm219, %v135, 0
  %v578 = vsel %vm219, %v136, 0
  %v581 = vsel %vm219, %v137, 0
  %v584 = vsel %vm219, %v138, 0
  %v587 = vsel %vm219, %v139, 0
  %v590 = vsel %vm219, %v140, 0
  %v593 = vsel %vm219, %v141, 0
  %v596 = vsel %vm219, %v142, 0
  %v599 = vsel %vm219, %v143, 0
  %v602 = vsel %vm219, %v144, 0
  %v605 = vsel %vm219, %v145, 0
  %v608 = vsel %vm219, %v146, 0
  %v611 = vsel %vm219, %v147, 0
  %v614 = vsel %vm219, %v148, 0
  %v617 = vsel %vm219, %v149, 0
  %v620 = vsel %vm219, %v150, 0
  %v623 = vsel %vm219, %v151, 0
  %v626 = vsel %vm219, %v152, 0
  %v629 = vsel %vm219, %v153, 0
  %v632 = vsel %vm219, %v154, 0
  %v635 = vsel %vm219, %v155, 0
  %v638 = vsel %vm219, %v156, 0
  %v641 = vsel %vm219, %v157, 0
  %v644 = vsel %vm219, %v158, 0
  %v647 = vsel %vm219, %v159, 0
  %v650 = vsel %vm219, %v160, 0
  %v653 = vsel %vm219, %v161, 0
  %v656 = vsel %vm219, %v162, 0
  %v659 = vsel %vm219, %v163, 0
  %v662 = vsel %vm219, %v164, 0
  %v665 = vsel %vm219, %v165, 0
  %v668 = vsel %vm219, %v166, 0
  %v671 = vsel %vm219, %v167, 0
  %v674 = vsel %vm219, %v168, 0
  %v677 = vsel %vm219, %v169, 0
  %v680 = vsel %vm219, %v170, 0
  %v683 = vsel %vm219, %v171, 0
  %v686 = vsel %vm219, %v172, 0
  %v689 = vsel %vm219, %v173, 0
  %v692 = vsel %vm219, %v174, 0
  %v695 = vsel %vm219, %v175, 0
  %v698 = vsel %vm219, %v176, 0
  %v701 = vsel %vm219, %v177, 0
  %v704 = vsel %vm219, %v178, 0
  %v707 = vsel %vm219, %v179, 0
  %v710 = vsel %vm219, %v180, 0
  %v713 = vsel %vm219, %v181, 0
  %v716 = vsel %vm219, %v182, 0
  %v719 = vsel %vm219, %v183, 0
  %v722 = vsel %vm219, %v184, 0
  %v725 = vsel %vm219, %v185, 0
  %v728 = vsel %vm219, %v186, 0
  %v731 = vsel %vm219, %v187, 0
  %v734 = vsel %vm219, %v188, 0
  %v737 = vsel %vm219, %v189, 0
  %v740 = vsel %vm219, %v190, 0
  %v743 = vsel %vm219, %v191, 0
  %v746 = vsel %vm219, %v192, 0
  %v749 = vsel %vm219, %v193, 0
  %v752 = vsel %vm219, %v194, 0
  %v755 = vsel %vm219, %v195, 0
  %v758 = vsel %vm219, %v196, 0
  %v761 = vsel %vm219, %v197, 0
  %v764 = vsel %vm219, %v198, 0
  %v767 = vsel %vm219, %v199, 0
  %v770 = vsel %vm219, %v200, 0
  %v773 = vsel %vm219, %v201, 0
  %v776 = vsel %vm219, %v202, 0
  %v779 = vsel %vm219, %v203, 0
  %v782 = vsel %vm219, %v204, 0
  %v785 = vsel %vm219, %v205, 0
  %v788 = vsel %vm219, %v206, 0
  %v791 = vsel %vm219, %v207, 0
  %v794 = vsel %vm219, %v208, 0
  %v797 = vsel %vm219, %v209, 0
  %v800 = vsel %vm219, %v210, 0
  %v803 = vsel %vm219, %v211, 0
  %v806 = vsel %vm219, %v212, 0
  %v809 = vsel %vm219, %v213, 0
  %v812 = vsel %vm219, %v214, 0
  %v815 = vsel %vm219, %v215, 0
  %v818 = vsel %vm219, %v216, 0
  %vm820 = vcmask 1040384
  %v822 = vsel %vm820, %v218, 0
  %824 = vmatprep.subr.mxu0 0.0
  %825 = vmatpush1.msra.mxu0 %v217
  %826 = vmatprep.subr.mxu0 0.0
  %827 = vmatpush1.msra.mxu0 %v822
  %828 = vmatprep.subr.mxu0 0.0
  %829 = vmatpush1.msra.mxu0 0.0
  %830 = vmatprep.subr.mxu0 0.0
  %831 = vmatpush1.msra.mxu0 0.0
  %832 = vmatprep.subr.mxu0 0.0
  %833 = vmatpush1.msra.mxu0 0.0
  %834 = vmatprep.subr.mxu0 0.0
  %835 = vmatpush1.msra.mxu0 0.0
  %836 = vmatprep.subr.mxu0 0.0
  %837 = vmatpush1.msra.mxu0 0.0
  %838 = vmatprep.subr.mxu0 0.0
  %839 = vmatpush1.msra.mxu0 0.0
  %840 = vmatprep.subr.mxu0 0.0
  %841 = vmatpush1.msra.mxu0 0.0
  %842 = vmatprep.subr.mxu0 0.0
  %843 = vmatpush1.msra.mxu0 0.0
  %844 = vmatprep.subr.mxu0 0.0
  %845 = vmatpush1.msra.mxu0 0.0
  %846 = vmatprep.subr.mxu0 0.0
  %847 = vmatpush1.msra.mxu0 0.0
  %848 = vmatprep.subr.mxu0 0.0
  %849 = vmatpush1.msra.mxu0 0.0
  %850 = vmatprep.subr.mxu0 0.0
  %851 = vmatpush1.msra.mxu0 0.0
  %852 = vmatprep.subr.mxu0 0.0
  %853 = vmatpush1.msra.mxu0 0.0
  %854 = vmatprep.subr.mxu0 0.0
  %855 = vmatpush1.msra.mxu0 0.0
  %856 = vmatprep.subr.mxu0 0.0
  %857 = vmatpush1.msra.mxu0 0.0
  %858 = vmatprep.subr.mxu0 0.0
  %859 = vmatpush1.msra.mxu0 0.0
  %860 = vmatprep.subr.mxu0 0.0
  %861 = vmatpush1.msra.mxu0 0.0
  %862 = vmatprep.subr.mxu0 0.0
  %863 = vmatpush1.msra.mxu0 0.0
  %864 = vmatprep.subr.mxu0 0.0
  %865 = vmatpush1.msra.mxu0 0.0
  %866 = vmatprep.subr.mxu0 0.0
  %867 = vmatpush1.msra.mxu0 0.0
  %868 = vmatprep.subr.mxu0 0.0
  %869 = vmatpush1.msra.mxu0 0.0
  %870 = vmatprep.subr.mxu0 0.0
  %871 = vmatpush1.msra.mxu0 0.0
  %872 = vmatprep.subr.mxu0 0.0
  %873 = vmatpush1.msra.mxu0 0.0
  %874 = vmatprep.subr.mxu0 0.0
  %875 = vmatpush1.msra.mxu0 0.0
  %876 = vmatprep.subr.mxu0 0.0
  %877 = vmatpush1.msra.mxu0 0.0
  %878 = vmatprep.subr.mxu0 0.0
  %879 = vmatpush1.msra.mxu0 0.0
  %880 = vmatprep.subr.mxu0 0.0
  %881 = vmatpush1.msra.mxu0 0.0
  %882 = vmatprep.subr.mxu0 0.0
  %883 = vmatpush1.msra.mxu0 0.0
  %884 = vmatprep.subr.mxu0 0.0
  %885 = vmatpush1.msra.mxu0 0.0
  %886 = vmatprep.subr.mxu0 0.0
  %887 = vmatpush1.msra.mxu0 0.0
  %888 = vmatprep.mubr.f32.mxu0 0.0
  %889 = vmatmul.mubr.f32.gmra.mrb[0].mxu0 %v221
  %v890 = vpop.f32.mrb[0].mxu0
  %v891 = vadd.f32 0.0, %v890
  %v892 = vpop.f32.mrb[0].mxu0
  %893 = vmatprep.mubr.f32.mxu0 0.0
  %894 = vmatmul.mubr.f32.gmra.mrb[0].mxu0 %v224
  %v895 = vpop.f32.mrb[0].mxu0
  %v896 = vadd.f32 0.0, %v895
  %v897 = vpop.f32.mrb[0].mxu0
  %898 = vmatprep.mubr.f32.mxu0 0.0
  %899 = vmatmul.mubr.f32.gmra.mrb[0].mxu0 %v227
  %v900 = vpop.f32.mrb[0].mxu0
  %v901 = vadd.f32 0.0, %v900
  %v902 = vpop.f32.mrb[0].mxu0
  %903 = vmatprep.mubr.f32.mxu0 0.0
  %904 = vmatmul.mubr.f32.gmra.mrb[0].mxu0 %v230
  %v905 = vpop.f32.mrb[0].mxu0
  %v906 = vadd.f32 0.0, %v905
  %v907 = vpop.f32.mrb[0].mxu0
  %908 = vmatprep.mubr.f32.mxu0 0.0
  %909 = vmatmul.mubr.f32.gmra.mrb[0].mxu0 %v233
  %v910 = vpop.f32.mrb[0].mxu0
  %v911 = vadd.f32 0.0, %v910
  %v912 = vpop.f32.mrb[0].mxu0
  %913 = vmatprep.mubr.f32.mxu0 0.0
  %914 = vmatmul.mubr.f32.gmra.mrb[0].mxu0 %v236
  %v915 = vpop.f32.mrb[0].mxu0
  %v916 = vadd.f32 0.0, %v915
  %v917 = vpop.f32.mrb[0].mxu0
  %918 = vmatprep.mubr.f32.mxu0 0.0
  %919 = vmatmul.mubr.f32.gmra.mrb[0].mxu0 %v239
  %v920 = vpop.f32.mrb[0].mxu0
  %v921 = vadd.f32 0.0, %v920
  %v922 = vpop.f32.mrb[0].mxu0
  %923 = vmatprep.mubr.f32.mxu0 0.0
  %924 = vmatmul.mubr.f32.gmra.mrb[0].mxu0 %v242
  %v925 = vpop.f32.mrb[0].mxu0
  %v926 = vadd.f32 0.0, %v925
  %v927 = vpop.f32.mrb[0].mxu0
  %928 = vmatprep.mubr.f32.mxu0 0.0
  %929 = vmatmul.mubr.f32.gmra.mrb[0].mxu0 %v245
  %v930 = vpop.f32.mrb[0].mxu0
  %v931 = vadd.f32 0.0, %v930
  %v932 = vpop.f32.mrb[0].mxu0
  %933 = vmatprep.mubr.f32.mxu0 0.0
  %934 = vmatmul.mubr.f32.gmra.mrb[0].mxu0 %v248
  %v935 = vpop.f32.mrb[0].mxu0
  %v936 = vadd.f32 0.0, %v935
  %v937 = vpop.f32.mrb[0].mxu0
  %938 = vmatprep.mubr.f32.mxu0 0.0
  %939 = vmatmul.mubr.f32.gmra.mrb[0].mxu0 %v251
  %v940 = vpop.f32.mrb[0].mxu0
  %v941 = vadd.f32 0.0, %v940
  %v942 = vpop.f32.mrb[0].mxu0
  %943 = vmatprep.mubr.f32.mxu0 0.0
  %944 = vmatmul.mubr.f32.gmra.mrb[0].mxu0 %v254
  %v945 = vpop.f32.mrb[0].mxu0
  %v946 = vadd.f32 0.0, %v945
  %v947 = vpop.f32.mrb[0].mxu0
  %948 = vmatprep.mubr.f32.mxu0 0.0
  %949 = vmatmul.mubr.f32.gmra.mrb[0].mxu0 %v257
  %v950 = vpop.f32.mrb[0].mxu0
  %v951 = vadd.f32 0.0, %v950
  %v952 = vpop.f32.mrb[0].mxu0
  %953 = vmatprep.mubr.f32.mxu0 0.0
  %954 = vmatmul.mubr.f32.gmra.mrb[0].mxu0 %v260
  %v955 = vpop.f32.mrb[0].mxu0
  %v956 = vadd.f32 0.0, %v955
  %v957 = vpop.f32.mrb[0].mxu0
  %958 = vmatprep.mubr.f32.mxu0 0.0
  %959 = vmatmul.mubr.f32.gmra.mrb[0].mxu0 %v263
  %v960 = vpop.f32.mrb[0].mxu0
  %v961 = vadd.f32 0.0, %v960
  %v962 = vpop.f32.mrb[0].mxu0
  %963 = vmatprep.mubr.f32.mxu0 0.0
  %964 = vmatmul.mubr.f32.gmra.mrb[0].mxu0 %v266
  %v965 = vpop.f32.mrb[0].mxu0
  %v966 = vadd.f32 0.0, %v965
  %v967 = vpop.f32.mrb[0].mxu0
  %968 = vmatprep.mubr.f32.mxu0 0.0
  %969 = vmatmul.mubr.f32.gmra.mrb[0].mxu0 %v269
  %v970 = vpop.f32.mrb[0].mxu0
  %v971 = vadd.f32 0.0, %v970
  %v972 = vpop.f32.mrb[0].mxu0
  %973 = vmatprep.mubr.f32.mxu0 0.0
  %974 = vmatmul.mubr.f32.gmra.mrb[0].mxu0 %v272
  %v975 = vpop.f32.mrb[0].mxu0
  %v976 = vadd.f32 0.0, %v975
  %v977 = vpop.f32.mrb[0].mxu0
  %978 = vmatprep.mubr.f32.mxu0 0.0
  %979 = vmatmul.mubr.f32.gmra.mrb[0].mxu0 %v275
  %v980 = vpop.f32.mrb[0].mxu0
  %v981 = vadd.f32 0.0, %v980
  %v982 = vpop.f32.mrb[0].mxu0
  %983 = vmatprep.mubr.f32.mxu0 0.0
  %984 = vmatmul.mubr.f32.gmra.mrb[0].mxu0 %v278
  %v985 = vpop.f32.mrb[0].mxu0
  %v986 = vadd.f32 0.0, %v985
  %v987 = vpop.f32.mrb[0].mxu0
  %988 = vmatprep.mubr.f32.mxu0 0.0
  %989 = vmatmul.mubr.f32.gmra.mrb[0].mxu0 %v281
  %v990 = vpop.f32.mrb[0].mxu0
  %v991 = vadd.f32 0.0, %v990
  %v992 = vpop.f32.mrb[0].mxu0
  %993 = vmatprep.mubr.f32.mxu0 0.0
  %994 = vmatmul.mubr.f32.gmra.mrb[0].mxu0 %v284
  %v995 = vpop.f32.mrb[0].mxu0
  %v996 = vadd.f32 0.0, %v995
  %v997 = vpop.f32.mrb[0].mxu0
  %998 = vmatprep.mubr.f32.mxu0 0.0
  %999 = vmatmul.mubr.f32.gmra.mrb[0].mxu0 %v287
  %v1000 = vpop.f32.mrb[0].mxu0
  %v1001 = vadd.f32 0.0, %v1000
  %v1002 = vpop.f32.mrb[0].mxu0
  %1003 = vmatprep.mubr.f32.mxu0 0.0
  %1004 = vmatmul.mubr.f32.gmra.mrb[0].mxu0 %v290
  %v1005 = vpop.f32.mrb[0].mxu0
  %v1006 = vadd.f32 0.0, %v1005
  %v1007 = vpop.f32.mrb[0].mxu0
  %1008 = vmatprep.mubr.f32.mxu0 0.0
  %1009 = vmatmul.mubr.f32.gmra.mrb[0].mxu0 %v293
  %v1010 = vpop.f32.mrb[0].mxu0
  %v1011 = vadd.f32 0.0, %v1010
  %v1012 = vpop.f32.mrb[0].mxu0
  %1013 = vmatprep.mubr.f32.mxu0 0.0
  %1014 = vmatmul.mubr.f32.gmra.mrb[0].mxu0 %v296
  %v1015 = vpop.f32.mrb[0].mxu0
  %v1016 = vadd.f32 0.0, %v1015
  %v1017 = vpop.f32.mrb[0].mxu0
  %1018 = vmatprep.mubr.f32.mxu0 0.0
  %1019 = vmatmul.mubr.f32.gmra.mrb[0].mxu0 %v299
  %v1020 = vpop.f32.mrb[0].mxu0
  %v1021 = vadd.f32 0.0, %v1020
  %v1022 = vpop.f32.mrb[0].mxu0
  %1023 = vmatprep.mubr.f32.mxu0 0.0
  %1024 = vmatmul.mubr.f32.gmra.mrb[0].mxu0 %v302
  %v1025 = vpop.f32.mrb[0].mxu0
  %v1026 = vadd.f32 0.0, %v1025
  %v1027 = vpop.f32.mrb[0].mxu0
  %1028 = vmatprep.mubr.f32.mxu0 0.0
  %1029 = vmatmul.mubr.f32.gmra.mrb[0].mxu0 %v305
  %v1030 = vpop.f32.mrb[0].mxu0
  %v1031 = vadd.f32 0.0, %v1030
  %v1032 = vpop.f32.mrb[0].mxu0
  %1033 = vmatprep.mubr.f32.mxu0 0.0
  %1034 = vmatmul.mubr.f32.gmra.mrb[0].mxu0 %v308
  %v1035 = vpop.f32.mrb[0].mxu0
  %v1036 = vadd.f32 0.0, %v1035
  %v1037 = vpop.f32.mrb[0].mxu0
  %1038 = vmatprep.mubr.f32.mxu0 0.0
  %1039 = vmatmul.mubr.f32.gmra.mrb[0].mxu0 %v311
  %v1040 = vpop.f32.mrb[0].mxu0
  %v1041 = vadd.f32 0.0, %v1040
  %v1042 = vpop.f32.mrb[0].mxu0
  %1043 = vmatprep.mubr.f32.mxu0 0.0
  %1044 = vmatmul.mubr.f32.gmra.mrb[0].mxu0 %v314
  %v1045 = vpop.f32.mrb[0].mxu0
  %v1046 = vadd.f32 0.0, %v1045
  %v1047 = vpop.f32.mrb[0].mxu0
  %1048 = vmatprep.mubr.f32.mxu0 0.0
  %1049 = vmatmul.mubr.f32.gmra.mrb[0].mxu0 %v317
  %v1050 = vpop.f32.mrb[0].mxu0
  %v1051 = vadd.f32 0.0, %v1050
  %v1052 = vpop.f32.mrb[0].mxu0
  %1053 = vmatprep.mubr.f32.mxu0 0.0
  %1054 = vmatmul.mubr.f32.gmra.mrb[0].mxu0 %v320
  %v1055 = vpop.f32.mrb[0].mxu0
  %v1056 = vadd.f32 0.0, %v1055
  %v1057 = vpop.f32.mrb[0].mxu0
  %1058 = vmatprep.mubr.f32.mxu0 0.0
  %1059 = vmatmul.mubr.f32.gmra.mrb[0].mxu0 %v323
  %v1060 = vpop.f32.mrb[0].mxu0
  %v1061 = vadd.f32 0.0, %v1060
  %v1062 = vpop.f32.mrb[0].mxu0
  %1063 = vmatprep.mubr.f32.mxu0 0.0
  %1064 = vmatmul.mubr.f32.gmra.mrb[0].mxu0 %v326
  %v1065 = vpop.f32.mrb[0].mxu0
  %v1066 = vadd.f32 0.0, %v1065
  %v1067 = vpop.f32.mrb[0].mxu0
  %1068 = vmatprep.mubr.f32.mxu0 0.0
  %1069 = vmatmul.mubr.f32.gmra.mrb[0].mxu0 %v329
  %v1070 = vpop.f32.mrb[0].mxu0
  %v1071 = vadd.f32 0.0, %v1070
  %v1072 = vpop.f32.mrb[0].mxu0
  %1073 = vmatprep.mubr.f32.mxu0 0.0
  %1074 = vmatmul.mubr.f32.gmra.mrb[0].mxu0 %v332
  %v1075 = vpop.f32.mrb[0].mxu0
  %v1076 = vadd.f32 0.0, %v1075
  %v1077 = vpop.f32.mrb[0].mxu0
  %1078 = vmatprep.mubr.f32.mxu0 0.0
  %1079 = vmatmul.mubr.f32.gmra.mrb[0].mxu0 %v335
  %v1080 = vpop.f32.mrb[0].mxu0
  %v1081 = vadd.f32 0.0, %v1080
  %v1082 = vpop.f32.mrb[0].mxu0
  %1083 = vmatprep.mubr.f32.mxu0 0.0
  %1084 = vmatmul.mubr.f32.gmra.mrb[0].mxu0 %v338
  %v1085 = vpop.f32.mrb[0].mxu0
  %v1086 = vadd.f32 0.0, %v1085
  %v1087 = vpop.f32.mrb[0].mxu0
  %1088 = vmatprep.mubr.f32.mxu0 0.0
  %1089 = vmatmul.mubr.f32.gmra.mrb[0].mxu0 %v341
  %v1090 = vpop.f32.mrb[0].mxu0
  %v1091 = vadd.f32 0.0, %v1090
  %v1092 = vpop.f32.mrb[0].mxu0
  %1093 = vmatprep.mubr.f32.mxu0 0.0
  %1094 = vmatmul.mubr.f32.gmra.mrb[0].mxu0 %v344
  %v1095 = vpop.f32.mrb[0].mxu0
  %v1096 = vadd.f32 0.0, %v1095
  %v1097 = vpop.f32.mrb[0].mxu0
  %1098 = vmatprep.mubr.f32.mxu0 0.0
  %1099 = vmatmul.mubr.f32.gmra.mrb[0].mxu0 %v347
  %v1100 = vpop.f32.mrb[0].mxu0
  %v1101 = vadd.f32 0.0, %v1100
  %v1102 = vpop.f32.mrb[0].mxu0
  %1103 = vmatprep.mubr.f32.mxu0 0.0
  %1104 = vmatmul.mubr.f32.gmra.mrb[0].mxu0 %v350
  %v1105 = vpop.f32.mrb[0].mxu0
  %v1106 = vadd.f32 0.0, %v1105
  %v1107 = vpop.f32.mrb[0].mxu0
  %1108 = vmatprep.mubr.f32.mxu0 0.0
  %1109 = vmatmul.mubr.f32.gmra.mrb[0].mxu0 %v353
  %v1110 = vpop.f32.mrb[0].mxu0
  %v1111 = vadd.f32 0.0, %v1110
  %v1112 = vpop.f32.mrb[0].mxu0
  %1113 = vmatprep.mubr.f32.mxu0 0.0
  %1114 = vmatmul.mubr.f32.gmra.mrb[0].mxu0 %v356
  %v1115 = vpop.f32.mrb[0].mxu0
  %v1116 = vadd.f32 0.0, %v1115
  %v1117 = vpop.f32.mrb[0].mxu0
  %1118 = vmatprep.mubr.f32.mxu0 0.0
  %1119 = vmatmul.mubr.f32.gmra.mrb[0].mxu0 %v359
  %v1120 = vpop.f32.mrb[0].mxu0
  %v1121 = vadd.f32 0.0, %v1120
  %v1122 = vpop.f32.mrb[0].mxu0
  %1123 = vmatprep.mubr.f32.mxu0 0.0
  %1124 = vmatmul.mubr.f32.gmra.mrb[0].mxu0 %v362
  %v1125 = vpop.f32.mrb[0].mxu0
  %v1126 = vadd.f32 0.0, %v1125
  %v1127 = vpop.f32.mrb[0].mxu0
  %1128 = vmatprep.mubr.f32.mxu0 0.0
  %1129 = vmatmul.mubr.f32.gmra.mrb[0].mxu0 %v365
  %v1130 = vpop.f32.mrb[0].mxu0
  %v1131 = vadd.f32 0.0, %v1130
  %v1132 = vpop.f32.mrb[0].mxu0
  %1133 = vmatprep.mubr.f32.mxu0 0.0
  %1134 = vmatmul.mubr.f32.gmra.mrb[0].mxu0 %v368
  %v1135 = vpop.f32.mrb[0].mxu0
  %v1136 = vadd.f32 0.0, %v1135
  %v1137 = vpop.f32.mrb[0].mxu0
  %1138 = vmatprep.mubr.f32.mxu0 0.0
  %1139 = vmatmul.mubr.f32.gmra.mrb[0].mxu0 %v371
  %v1140 = vpop.f32.mrb[0].mxu0
  %v1141 = vadd.f32 0.0, %v1140
  %v1142 = vpop.f32.mrb[0].mxu0
  %1143 = vmatprep.mubr.f32.mxu0 0.0
  %1144 = vmatmul.mubr.f32.gmra.mrb[0].mxu0 %v374
  %v1145 = vpop.f32.mrb[0].mxu0
  %v1146 = vadd.f32 0.0, %v1145
  %v1147 = vpop.f32.mrb[0].mxu0
  %1148 = vmatprep.mubr.f32.mxu0 0.0
  %1149 = vmatmul.mubr.f32.gmra.mrb[0].mxu0 %v377
  %v1150 = vpop.f32.mrb[0].mxu0
  %v1151 = vadd.f32 0.0, %v1150
  %v1152 = vpop.f32.mrb[0].mxu0
  %1153 = vmatprep.mubr.f32.mxu0 0.0
  %1154 = vmatmul.mubr.f32.gmra.mrb[0].mxu0 %v380
  %v1155 = vpop.f32.mrb[0].mxu0
  %v1156 = vadd.f32 0.0, %v1155
  %v1157 = vpop.f32.mrb[0].mxu0
  %1158 = vmatprep.mubr.f32.mxu0 0.0
  %1159 = vmatmul.mubr.f32.gmra.mrb[0].mxu0 %v383
  %v1160 = vpop.f32.mrb[0].mxu0
  %v1161 = vadd.f32 0.0, %v1160
  %v1162 = vpop.f32.mrb[0].mxu0
  %1163 = vmatprep.mubr.f32.mxu0 0.0
  %1164 = vmatmul.mubr.f32.gmra.mrb[0].mxu0 %v386
  %v1165 = vpop.f32.mrb[0].mxu0
  %v1166 = vadd.f32 0.0, %v1165
  %v1167 = vpop.f32.mrb[0].mxu0
  %1168 = vmatprep.mubr.f32.mxu0 0.0
  %1169 = vmatmul.mubr.f32.gmra.mrb[0].mxu0 %v389
  %v1170 = vpop.f32.mrb[0].mxu0
  %v1171 = vadd.f32 0.0, %v1170
  %v1172 = vpop.f32.mrb[0].mxu0
  %1173 = vmatprep.mubr.f32.mxu0 0.0
  %1174 = vmatmul.mubr.f32.gmra.mrb[0].mxu0 %v392
  %v1175 = vpop.f32.mrb[0].mxu0
  %v1176 = vadd.f32 0.0, %v1175
  %v1177 = vpop.f32.mrb[0].mxu0
  %1178 = vmatprep.mubr.f32.mxu0 0.0
  %1179 = vmatmul.mubr.f32.gmra.mrb[0].mxu0 %v395
  %v1180 = vpop.f32.mrb[0].mxu0
  %v1181 = vadd.f32 0.0, %v1180
  %v1182 = vpop.f32.mrb[0].mxu0
  %1183 = vmatprep.mubr.f32.mxu0 0.0
  %1184 = vmatmul.mubr.f32.gmra.mrb[0].mxu0 %v398
  %v1185 = vpop.f32.mrb[0].mxu0
  %v1186 = vadd.f32 0.0, %v1185
  %v1187 = vpop.f32.mrb[0].mxu0
  %1188 = vmatprep.mubr.f32.mxu0 0.0
  %1189 = vmatmul.mubr.f32.gmra.mrb[0].mxu0 %v401
  %v1190 = vpop.f32.mrb[0].mxu0
  %v1191 = vadd.f32 0.0, %v1190
  %v1192 = vpop.f32.mrb[0].mxu0
  %1193 = vmatprep.mubr.f32.mxu0 0.0
  %1194 = vmatmul.mubr.f32.gmra.mrb[0].mxu0 %v404
  %v1195 = vpop.f32.mrb[0].mxu0
  %v1196 = vadd.f32 0.0, %v1195
  %v1197 = vpop.f32.mrb[0].mxu0
  %1198 = vmatprep.mubr.f32.mxu0 0.0
  %1199 = vmatmul.mubr.f32.gmra.mrb[0].mxu0 %v407
  %v1200 = vpop.f32.mrb[0].mxu0
  %v1201 = vadd.f32 0.0, %v1200
  %v1202 = vpop.f32.mrb[0].mxu0
  %1203 = vmatprep.mubr.f32.mxu0 0.0
  %1204 = vmatmul.mubr.f32.gmra.mrb[0].mxu0 %v410
  %v1205 = vpop.f32.mrb[0].mxu0
  %v1206 = vadd.f32 0.0, %v1205
  %v1207 = vpop.f32.mrb[0].mxu0
  %1208 = vmatprep.mubr.f32.mxu0 0.0
  %1209 = vmatmul.mubr.f32.gmra.mrb[0].mxu0 %v413
  %v1210 = vpop.f32.mrb[0].mxu0
  %v1211 = vadd.f32 0.0, %v1210
  %v1212 = vpop.f32.mrb[0].mxu0
  %1213 = vmatprep.mubr.f32.mxu0 0.0
  %1214 = vmatmul.mubr.f32.gmra.mrb[0].mxu0 %v416
  %v1215 = vpop.f32.mrb[0].mxu0
  %v1216 = vadd.f32 0.0, %v1215
  %v1217 = vpop.f32.mrb[0].mxu0
  %1218 = vmatprep.mubr.f32.mxu0 0.0
  %1219 = vmatmul.mubr.f32.gmra.mrb[0].mxu0 %v419
  %v1220 = vpop.f32.mrb[0].mxu0
  %v1221 = vadd.f32 0.0, %v1220
  %v1222 = vpop.f32.mrb[0].mxu0
  %1223 = vmatprep.mubr.f32.mxu0 0.0
  %1224 = vmatmul.mubr.f32.gmra.mrb[0].mxu0 %v422
  %v1225 = vpop.f32.mrb[0].mxu0
  %v1226 = vadd.f32 0.0, %v1225
  %v1227 = vpop.f32.mrb[0].mxu0
  %1228 = vmatprep.mubr.f32.mxu0 0.0
  %1229 = vmatmul.mubr.f32.gmra.mrb[0].mxu0 %v425
  %v1230 = vpop.f32.mrb[0].mxu0
  %v1231 = vadd.f32 0.0, %v1230
  %v1232 = vpop.f32.mrb[0].mxu0
  %1233 = vmatprep.mubr.f32.mxu0 0.0
  %1234 = vmatmul.mubr.f32.gmra.mrb[0].mxu0 %v428
  %v1235 = vpop.f32.mrb[0].mxu0
  %v1236 = vadd.f32 0.0, %v1235
  %v1237 = vpop.f32.mrb[0].mxu0
  %1238 = vmatprep.mubr.f32.mxu0 0.0
  %1239 = vmatmul.mubr.f32.gmra.mrb[0].mxu0 %v431
  %v1240 = vpop.f32.mrb[0].mxu0
  %v1241 = vadd.f32 0.0, %v1240
  %v1242 = vpop.f32.mrb[0].mxu0
  %1243 = vmatprep.mubr.f32.mxu0 0.0
  %1244 = vmatmul.mubr.f32.gmra.mrb[0].mxu0 %v434
  %v1245 = vpop.f32.mrb[0].mxu0
  %v1246 = vadd.f32 0.0, %v1245
  %v1247 = vpop.f32.mrb[0].mxu0
  %1248 = vmatprep.mubr.f32.mxu0 0.0
  %1249 = vmatmul.mubr.f32.gmra.mrb[0].mxu0 %v437
  %v1250 = vpop.f32.mrb[0].mxu0
  %v1251 = vadd.f32 0.0, %v1250
  %v1252 = vpop.f32.mrb[0].mxu0
  %1253 = vmatprep.mubr.f32.mxu0 0.0
  %1254 = vmatmul.mubr.f32.gmra.mrb[0].mxu0 %v440
  %v1255 = vpop.f32.mrb[0].mxu0
  %v1256 = vadd.f32 0.0, %v1255
  %v1257 = vpop.f32.mrb[0].mxu0
  %1258 = vmatprep.mubr.f32.mxu0 0.0
  %1259 = vmatmul.mubr.f32.gmra.mrb[0].mxu0 %v443
  %v1260 = vpop.f32.mrb[0].mxu0
  %v1261 = vadd.f32 0.0, %v1260
  %v1262 = vpop.f32.mrb[0].mxu0
  %1263 = vmatprep.mubr.f32.mxu0 0.0
  %1264 = vmatmul.mubr.f32.gmra.mrb[0].mxu0 %v446
  %v1265 = vpop.f32.mrb[0].mxu0
  %v1266 = vadd.f32 0.0, %v1265
  %v1267 = vpop.f32.mrb[0].mxu0
  %1268 = vmatprep.mubr.f32.mxu0 0.0
  %1269 = vmatmul.mubr.f32.gmra.mrb[0].mxu0 %v449
  %v1270 = vpop.f32.mrb[0].mxu0
  %v1271 = vadd.f32 0.0, %v1270
  %v1272 = vpop.f32.mrb[0].mxu0
  %1273 = vmatprep.mubr.f32.mxu0 0.0
  %1274 = vmatmul.mubr.f32.gmra.mrb[0].mxu0 %v452
  %v1275 = vpop.f32.mrb[0].mxu0
  %v1276 = vadd.f32 0.0, %v1275
  %v1277 = vpop.f32.mrb[0].mxu0
  %1278 = vmatprep.mubr.f32.mxu0 0.0
  %1279 = vmatmul.mubr.f32.gmra.mrb[0].mxu0 %v455
  %v1280 = vpop.f32.mrb[0].mxu0
  %v1281 = vadd.f32 0.0, %v1280
  %v1282 = vpop.f32.mrb[0].mxu0
  %1283 = vmatprep.mubr.f32.mxu0 0.0
  %1284 = vmatmul.mubr.f32.gmra.mrb[0].mxu0 %v458
  %v1285 = vpop.f32.mrb[0].mxu0
  %v1286 = vadd.f32 0.0, %v1285
  %v1287 = vpop.f32.mrb[0].mxu0
  %1288 = vmatprep.mubr.f32.mxu0 0.0
  %1289 = vmatmul.mubr.f32.gmra.mrb[0].mxu0 %v461
  %v1290 = vpop.f32.mrb[0].mxu0
  %v1291 = vadd.f32 0.0, %v1290
  %v1292 = vpop.f32.mrb[0].mxu0
  %1293 = vmatprep.mubr.f32.mxu0 0.0
  %1294 = vmatmul.mubr.f32.gmra.mrb[0].mxu0 %v464
  %v1295 = vpop.f32.mrb[0].mxu0
  %v1296 = vadd.f32 0.0, %v1295
  %v1297 = vpop.f32.mrb[0].mxu0
  %1298 = vmatprep.mubr.f32.mxu0 0.0
  %1299 = vmatmul.mubr.f32.gmra.mrb[0].mxu0 %v467
  %v1300 = vpop.f32.mrb[0].mxu0
  %v1301 = vadd.f32 0.0, %v1300
  %v1302 = vpop.f32.mrb[0].mxu0
  %1303 = vmatprep.mubr.f32.mxu0 0.0
  %1304 = vmatmul.mubr.f32.gmra.mrb[0].mxu0 %v470
  %v1305 = vpop.f32.mrb[0].mxu0
  %v1306 = vadd.f32 0.0, %v1305
  %v1307 = vpop.f32.mrb[0].mxu0
  %1308 = vmatprep.mubr.f32.mxu0 0.0
  %1309 = vmatmul.mubr.f32.gmra.mrb[0].mxu0 %v473
  %v1310 = vpop.f32.mrb[0].mxu0
  %v1311 = vadd.f32 0.0, %v1310
  %v1312 = vpop.f32.mrb[0].mxu0
  %1313 = vmatprep.mubr.f32.mxu0 0.0
  %1314 = vmatmul.mubr.f32.gmra.mrb[0].mxu0 %v476
  %v1315 = vpop.f32.mrb[0].mxu0
  %v1316 = vadd.f32 0.0, %v1315
  %v1317 = vpop.f32.mrb[0].mxu0
  %1318 = vmatprep.mubr.f32.mxu0 0.0
  %1319 = vmatmul.mubr.f32.gmra.mrb[0].mxu0 %v479
  %v1320 = vpop.f32.mrb[0].mxu0
  %v1321 = vadd.f32 0.0, %v1320
  %v1322 = vpop.f32.mrb[0].mxu0
  %1323 = vmatprep.mubr.f32.mxu0 0.0
  %1324 = vmatmul.mubr.f32.gmra.mrb[0].mxu0 %v482
  %v1325 = vpop.f32.mrb[0].mxu0
  %v1326 = vadd.f32 0.0, %v1325
  %v1327 = vpop.f32.mrb[0].mxu0
  %1328 = vmatprep.mubr.f32.mxu0 0.0
  %1329 = vmatmul.mubr.f32.gmra.mrb[0].mxu0 %v485
  %v1330 = vpop.f32.mrb[0].mxu0
  %v1331 = vadd.f32 0.0, %v1330
  %v1332 = vpop.f32.mrb[0].mxu0
  %1333 = vmatprep.mubr.f32.mxu0 0.0
  %1334 = vmatmul.mubr.f32.gmra.mrb[0].mxu0 %v488
  %v1335 = vpop.f32.mrb[0].mxu0
  %v1336 = vadd.f32 0.0, %v1335
  %v1337 = vpop.f32.mrb[0].mxu0
  %1338 = vmatprep.mubr.f32.mxu0 0.0
  %1339 = vmatmul.mubr.f32.gmra.mrb[0].mxu0 %v491
  %v1340 = vpop.f32.mrb[0].mxu0
  %v1341 = vadd.f32 0.0, %v1340
  %v1342 = vpop.f32.mrb[0].mxu0
  %1343 = vmatprep.mubr.f32.mxu0 0.0
  %1344 = vmatmul.mubr.f32.gmra.mrb[0].mxu0 %v494
  %v1345 = vpop.f32.mrb[0].mxu0
  %v1346 = vadd.f32 0.0, %v1345
  %v1347 = vpop.f32.mrb[0].mxu0
  %1348 = vmatprep.mubr.f32.mxu0 0.0
  %1349 = vmatmul.mubr.f32.gmra.mrb[0].mxu0 %v497
  %v1350 = vpop.f32.mrb[0].mxu0
  %v1351 = vadd.f32 0.0, %v1350
  %v1352 = vpop.f32.mrb[0].mxu0
  %1353 = vmatprep.mubr.f32.mxu0 0.0
  %1354 = vmatmul.mubr.f32.gmra.mrb[0].mxu0 %v500
  %v1355 = vpop.f32.mrb[0].mxu0
  %v1356 = vadd.f32 0.0, %v1355
  %v1357 = vpop.f32.mrb[0].mxu0
  %1358 = vmatprep.mubr.f32.mxu0 0.0
  %1359 = vmatmul.mubr.f32.gmra.mrb[0].mxu0 %v503
  %v1360 = vpop.f32.mrb[0].mxu0
  %v1361 = vadd.f32 0.0, %v1360
  %v1362 = vpop.f32.mrb[0].mxu0
  %1363 = vmatprep.mubr.f32.mxu0 0.0
  %1364 = vmatmul.mubr.f32.gmra.mrb[0].mxu0 %v506
  %v1365 = vpop.f32.mrb[0].mxu0
  %v1366 = vadd.f32 0.0, %v1365
  %v1367 = vpop.f32.mrb[0].mxu0
  %1368 = vmatprep.mubr.f32.mxu0 0.0
  %1369 = vmatmul.mubr.f32.gmra.mrb[0].mxu0 %v509
  %v1370 = vpop.f32.mrb[0].mxu0
  %v1371 = vadd.f32 0.0, %v1370
  %v1372 = vpop.f32.mrb[0].mxu0
  %1373 = vmatprep.mubr.f32.mxu0 0.0
  %1374 = vmatmul.mubr.f32.gmra.mrb[0].mxu0 %v512
  %v1375 = vpop.f32.mrb[0].mxu0
  %v1376 = vadd.f32 0.0, %v1375
  %v1377 = vpop.f32.mrb[0].mxu0
  %1378 = vmatprep.mubr.f32.mxu0 0.0
  %1379 = vmatmul.mubr.f32.gmra.mrb[0].mxu0 %v515
  %v1380 = vpop.f32.mrb[0].mxu0
  %v1381 = vadd.f32 0.0, %v1380
  %v1382 = vpop.f32.mrb[0].mxu0
  %1383 = vmatprep.mubr.f32.mxu0 0.0
  %1384 = vmatmul.mubr.f32.gmra.mrb[0].mxu0 %v518
  %v1385 = vpop.f32.mrb[0].mxu0
  %v1386 = vadd.f32 0.0, %v1385
  %v1387 = vpop.f32.mrb[0].mxu0
  %1388 = vmatprep.mubr.f32.mxu0 0.0
  %1389 = vmatmul.mubr.f32.gmra.mrb[0].mxu0 %v521
  %v1390 = vpop.f32.mrb[0].mxu0
  %v1391 = vadd.f32 0.0, %v1390
  %v1392 = vpop.f32.mrb[0].mxu0
  %1393 = vmatprep.mubr.f32.mxu0 0.0
  %1394 = vmatmul.mubr.f32.gmra.mrb[0].mxu0 %v524
  %v1395 = vpop.f32.mrb[0].mxu0
  %v1396 = vadd.f32 0.0, %v1395
  %v1397 = vpop.f32.mrb[0].mxu0
  %1398 = vmatprep.mubr.f32.mxu0 0.0
  %1399 = vmatmul.mubr.f32.gmra.mrb[0].mxu0 %v527
  %v1400 = vpop.f32.mrb[0].mxu0
  %v1401 = vadd.f32 0.0, %v1400
  %v1402 = vpop.f32.mrb[0].mxu0
  %1403 = vmatprep.mubr.f32.mxu0 0.0
  %1404 = vmatmul.mubr.f32.gmra.mrb[0].mxu0 %v530
  %v1405 = vpop.f32.mrb[0].mxu0
  %v1406 = vadd.f32 0.0, %v1405
  %v1407 = vpop.f32.mrb[0].mxu0
  %1408 = vmatprep.mubr.f32.mxu0 0.0
  %1409 = vmatmul.mubr.f32.gmra.mrb[0].mxu0 %v533
  %v1410 = vpop.f32.mrb[0].mxu0
  %v1411 = vadd.f32 0.0, %v1410
  %v1412 = vpop.f32.mrb[0].mxu0
  %1413 = vmatprep.mubr.f32.mxu0 0.0
  %1414 = vmatmul.mubr.f32.gmra.mrb[0].mxu0 %v536
  %v1415 = vpop.f32.mrb[0].mxu0
  %v1416 = vadd.f32 0.0, %v1415
  %v1417 = vpop.f32.mrb[0].mxu0
  %1418 = vmatprep.mubr.f32.mxu0 0.0
  %1419 = vmatmul.mubr.f32.gmra.mrb[0].mxu0 %v539
  %v1420 = vpop.f32.mrb[0].mxu0
  %v1421 = vadd.f32 0.0, %v1420
  %v1422 = vpop.f32.mrb[0].mxu0
  %1423 = vmatprep.mubr.f32.mxu0 0.0
  %1424 = vmatmul.mubr.f32.gmra.mrb[0].mxu0 %v542
  %v1425 = vpop.f32.mrb[0].mxu0
  %v1426 = vadd.f32 0.0, %v1425
  %v1427 = vpop.f32.mrb[0].mxu0
  %1428 = vmatprep.mubr.f32.mxu0 0.0
  %1429 = vmatmul.mubr.f32.gmra.mrb[0].mxu0 %v545
  %v1430 = vpop.f32.mrb[0].mxu0
  %v1431 = vadd.f32 0.0, %v1430
  %v1432 = vpop.f32.mrb[0].mxu0
  %1433 = vmatprep.mubr.f32.mxu0 0.0
  %1434 = vmatmul.mubr.f32.gmra.mrb[0].mxu0 %v548
  %v1435 = vpop.f32.mrb[0].mxu0
  %v1436 = vadd.f32 0.0, %v1435
  %v1437 = vpop.f32.mrb[0].mxu0
  %1438 = vmatprep.mubr.f32.mxu0 0.0
  %1439 = vmatmul.mubr.f32.gmra.mrb[0].mxu0 %v551
  %v1440 = vpop.f32.mrb[0].mxu0
  %v1441 = vadd.f32 0.0, %v1440
  %v1442 = vpop.f32.mrb[0].mxu0
  %1443 = vmatprep.mubr.f32.mxu0 0.0
  %1444 = vmatmul.mubr.f32.gmra.mrb[0].mxu0 %v554
  %v1445 = vpop.f32.mrb[0].mxu0
  %v1446 = vadd.f32 0.0, %v1445
  %v1447 = vpop.f32.mrb[0].mxu0
  %1448 = vmatprep.mubr.f32.mxu0 0.0
  %1449 = vmatmul.mubr.f32.gmra.mrb[0].mxu0 %v557
  %v1450 = vpop.f32.mrb[0].mxu0
  %v1451 = vadd.f32 0.0, %v1450
  %v1452 = vpop.f32.mrb[0].mxu0
  %1453 = vmatprep.mubr.f32.mxu0 0.0
  %1454 = vmatmul.mubr.f32.gmra.mrb[0].mxu0 %v560
  %v1455 = vpop.f32.mrb[0].mxu0
  %v1456 = vadd.f32 0.0, %v1455
  %v1457 = vpop.f32.mrb[0].mxu0
  %1458 = vmatprep.mubr.f32.mxu0 0.0
  %1459 = vmatmul.mubr.f32.gmra.mrb[0].mxu0 %v563
  %v1460 = vpop.f32.mrb[0].mxu0
  %v1461 = vadd.f32 0.0, %v1460
  %v1462 = vpop.f32.mrb[0].mxu0
  %1463 = vmatprep.mubr.f32.mxu0 0.0
  %1464 = vmatmul.mubr.f32.gmra.mrb[0].mxu0 %v566
  %v1465 = vpop.f32.mrb[0].mxu0
  %v1466 = vadd.f32 0.0, %v1465
  %v1467 = vpop.f32.mrb[0].mxu0
  %1468 = vmatprep.mubr.f32.mxu0 0.0
  %1469 = vmatmul.mubr.f32.gmra.mrb[0].mxu0 %v569
  %v1470 = vpop.f32.mrb[0].mxu0
  %v1471 = vadd.f32 0.0, %v1470
  %v1472 = vpop.f32.mrb[0].mxu0
  %1473 = vmatprep.mubr.f32.mxu0 0.0
  %1474 = vmatmul.mubr.f32.gmra.mrb[0].mxu0 %v572
  %v1475 = vpop.f32.mrb[0].mxu0
  %v1476 = vadd.f32 0.0, %v1475
  %v1477 = vpop.f32.mrb[0].mxu0
  %1478 = vmatprep.mubr.f32.mxu0 0.0
  %1479 = vmatmul.mubr.f32.gmra.mrb[0].mxu0 %v575
  %v1480 = vpop.f32.mrb[0].mxu0
  %v1481 = vadd.f32 0.0, %v1480
  %v1482 = vpop.f32.mrb[0].mxu0
  %1483 = vmatprep.mubr.f32.mxu0 0.0
  %1484 = vmatmul.mubr.f32.gmra.mrb[0].mxu0 %v578
  %v1485 = vpop.f32.mrb[0].mxu0
  %v1486 = vadd.f32 0.0, %v1485
  %v1487 = vpop.f32.mrb[0].mxu0
  %1488 = vmatprep.mubr.f32.mxu0 0.0
  %1489 = vmatmul.mubr.f32.gmra.mrb[0].mxu0 %v581
  %v1490 = vpop.f32.mrb[0].mxu0
  %v1491 = vadd.f32 0.0, %v1490
  %v1492 = vpop.f32.mrb[0].mxu0
  %1493 = vmatprep.mubr.f32.mxu0 0.0
  %1494 = vmatmul.mubr.f32.gmra.mrb[0].mxu0 %v584
  %v1495 = vpop.f32.mrb[0].mxu0
  %v1496 = vadd.f32 0.0, %v1495
  %v1497 = vpop.f32.mrb[0].mxu0
  %1498 = vmatprep.mubr.f32.mxu0 0.0
  %1499 = vmatmul.mubr.f32.gmra.mrb[0].mxu0 %v587
  %v1500 = vpop.f32.mrb[0].mxu0
  %v1501 = vadd.f32 0.0, %v1500
  %v1502 = vpop.f32.mrb[0].mxu0
  %1503 = vmatprep.mubr.f32.mxu0 0.0
  %1504 = vmatmul.mubr.f32.gmra.mrb[0].mxu0 %v590
  %v1505 = vpop.f32.mrb[0].mxu0
  %v1506 = vadd.f32 0.0, %v1505
  %v1507 = vpop.f32.mrb[0].mxu0
  %1508 = vmatprep.mubr.f32.mxu0 0.0
  %1509 = vmatmul.mubr.f32.gmra.mrb[0].mxu0 %v593
  %v1510 = vpop.f32.mrb[0].mxu0
  %v1511 = vadd.f32 0.0, %v1510
  %v1512 = vpop.f32.mrb[0].mxu0
  %1513 = vmatprep.mubr.f32.mxu0 0.0
  %1514 = vmatmul.mubr.f32.gmra.mrb[0].mxu0 %v596
  %v1515 = vpop.f32.mrb[0].mxu0
  %v1516 = vadd.f32 0.0, %v1515
  %v1517 = vpop.f32.mrb[0].mxu0
  %1518 = vmatprep.mubr.f32.mxu0 0.0
  %1519 = vmatmul.mubr.f32.gmra.mrb[0].mxu0 %v599
  %v1520 = vpop.f32.mrb[0].mxu0
  %v1521 = vadd.f32 0.0, %v1520
  %v1522 = vpop.f32.mrb[0].mxu0
  %1523 = vmatprep.mubr.f32.mxu0 0.0
  %1524 = vmatmul.mubr.f32.gmra.mrb[0].mxu0 %v602
  %v1525 = vpop.f32.mrb[0].mxu0
  %v1526 = vadd.f32 0.0, %v1525
  %v1527 = vpop.f32.mrb[0].mxu0
  %1528 = vmatprep.mubr.f32.mxu0 0.0
  %1529 = vmatmul.mubr.f32.gmra.mrb[0].mxu0 %v605
  %v1530 = vpop.f32.mrb[0].mxu0
  %v1531 = vadd.f32 0.0, %v1530
  %v1532 = vpop.f32.mrb[0].mxu0
  %1533 = vmatprep.mubr.f32.mxu0 0.0
  %1534 = vmatmul.mubr.f32.gmra.mrb[0].mxu0 %v608
  %v1535 = vpop.f32.mrb[0].mxu0
  %v1536 = vadd.f32 0.0, %v1535
  %v1537 = vpop.f32.mrb[0].mxu0
  %1538 = vmatprep.mubr.f32.mxu0 0.0
  %1539 = vmatmul.mubr.f32.gmra.mrb[0].mxu0 %v611
  %v1540 = vpop.f32.mrb[0].mxu0
  %v1541 = vadd.f32 0.0, %v1540
  %v1542 = vpop.f32.mrb[0].mxu0
  %1543 = vmatprep.mubr.f32.mxu0 0.0
  %1544 = vmatmul.mubr.f32.gmra.mrb[0].mxu0 %v614
  %v1545 = vpop.f32.mrb[0].mxu0
  %v1546 = vadd.f32 0.0, %v1545
  %v1547 = vpop.f32.mrb[0].mxu0
  %1548 = vmatprep.mubr.f32.mxu0 0.0
  %1549 = vmatmul.mubr.f32.gmra.mrb[0].mxu0 %v617
  %v1550 = vpop.f32.mrb[0].mxu0
  %v1551 = vadd.f32 0.0, %v1550
  %v1552 = vpop.f32.mrb[0].mxu0
  %1553 = vmatprep.mubr.f32.mxu0 0.0
  %1554 = vmatmul.mubr.f32.gmra.mrb[0].mxu0 %v620
  %v1555 = vpop.f32.mrb[0].mxu0
  %v1556 = vadd.f32 0.0, %v1555
  %v1557 = vpop.f32.mrb[0].mxu0
  %1558 = vmatprep.mubr.f32.mxu0 0.0
  %1559 = vmatmul.mubr.f32.gmra.mrb[0].mxu0 %v623
  %v1560 = vpop.f32.mrb[0].mxu0
  %v1561 = vadd.f32 0.0, %v1560
  %v1562 = vpop.f32.mrb[0].mxu0
  %1563 = vmatprep.mubr.f32.mxu0 0.0
  %1564 = vmatmul.mubr.f32.gmra.mrb[0].mxu0 %v626
  %v1565 = vpop.f32.mrb[0].mxu0
  %v1566 = vadd.f32 0.0, %v1565
  %v1567 = vpop.f32.mrb[0].mxu0
  %1568 = vmatprep.mubr.f32.mxu0 0.0
  %1569 = vmatmul.mubr.f32.gmra.mrb[0].mxu0 %v629
  %v1570 = vpop.f32.mrb[0].mxu0
  %v1571 = vadd.f32 0.0, %v1570
  %v1572 = vpop.f32.mrb[0].mxu0
  %1573 = vmatprep.mubr.f32.mxu0 0.0
  %1574 = vmatmul.mubr.f32.gmra.mrb[0].mxu0 %v632
  %v1575 = vpop.f32.mrb[0].mxu0
  %v1576 = vadd.f32 0.0, %v1575
  %v1577 = vpop.f32.mrb[0].mxu0
  %1578 = vmatprep.mubr.f32.mxu0 0.0
  %1579 = vmatmul.mubr.f32.gmra.mrb[0].mxu0 %v635
  %v1580 = vpop.f32.mrb[0].mxu0
  %v1581 = vadd.f32 0.0, %v1580
  %v1582 = vpop.f32.mrb[0].mxu0
  %1583 = vmatprep.mubr.f32.mxu0 0.0
  %1584 = vmatmul.mubr.f32.gmra.mrb[0].mxu0 %v638
  %v1585 = vpop.f32.mrb[0].mxu0
  %v1586 = vadd.f32 0.0, %v1585
  %v1587 = vpop.f32.mrb[0].mxu0
  %1588 = vmatprep.mubr.f32.mxu0 0.0
  %1589 = vmatmul.mubr.f32.gmra.mrb[0].mxu0 %v641
  %v1590 = vpop.f32.mrb[0].mxu0
  %v1591 = vadd.f32 0.0, %v1590
  %v1592 = vpop.f32.mrb[0].mxu0
  %1593 = vmatprep.mubr.f32.mxu0 0.0
  %1594 = vmatmul.mubr.f32.gmra.mrb[0].mxu0 %v644
  %v1595 = vpop.f32.mrb[0].mxu0
  %v1596 = vadd.f32 0.0, %v1595
  %v1597 = vpop.f32.mrb[0].mxu0
  %1598 = vmatprep.mubr.f32.mxu0 0.0
  %1599 = vmatmul.mubr.f32.gmra.mrb[0].mxu0 %v647
  %v1600 = vpop.f32.mrb[0].mxu0
  %v1601 = vadd.f32 0.0, %v1600
  %v1602 = vpop.f32.mrb[0].mxu0
  %1603 = vmatprep.mubr.f32.mxu0 0.0
  %1604 = vmatmul.mubr.f32.gmra.mrb[0].mxu0 %v650
  %v1605 = vpop.f32.mrb[0].mxu0
  %v1606 = vadd.f32 0.0, %v1605
  %v1607 = vpop.f32.mrb[0].mxu0
  %1608 = vmatprep.mubr.f32.mxu0 0.0
  %1609 = vmatmul.mubr.f32.gmra.mrb[0].mxu0 %v653
  %v1610 = vpop.f32.mrb[0].mxu0
  %v1611 = vadd.f32 0.0, %v1610
  %v1612 = vpop.f32.mrb[0].mxu0
  %1613 = vmatprep.mubr.f32.mxu0 0.0
  %1614 = vmatmul.mubr.f32.gmra.mrb[0].mxu0 %v656
  %v1615 = vpop.f32.mrb[0].mxu0
  %v1616 = vadd.f32 0.0, %v1615
  %v1617 = vpop.f32.mrb[0].mxu0
  %1618 = vmatprep.mubr.f32.mxu0 0.0
  %1619 = vmatmul.mubr.f32.gmra.mrb[0].mxu0 %v659
  %v1620 = vpop.f32.mrb[0].mxu0
  %v1621 = vadd.f32 0.0, %v1620
  %v1622 = vpop.f32.mrb[0].mxu0
  %1623 = vmatprep.mubr.f32.mxu0 0.0
  %1624 = vmatmul.mubr.f32.gmra.mrb[0].mxu0 %v662
  %v1625 = vpop.f32.mrb[0].mxu0
  %v1626 = vadd.f32 0.0, %v1625
  %v1627 = vpop.f32.mrb[0].mxu0
  %1628 = vmatprep.mubr.f32.mxu0 0.0
  %1629 = vmatmul.mubr.f32.gmra.mrb[0].mxu0 %v665
  %v1630 = vpop.f32.mrb[0].mxu0
  %v1631 = vadd.f32 0.0, %v1630
  %v1632 = vpop.f32.mrb[0].mxu0
  %1633 = vmatprep.mubr.f32.mxu0 0.0
  %1634 = vmatmul.mubr.f32.gmra.mrb[0].mxu0 %v668
  %v1635 = vpop.f32.mrb[0].mxu0
  %v1636 = vadd.f32 0.0, %v1635
  %v1637 = vpop.f32.mrb[0].mxu0
  %1638 = vmatprep.mubr.f32.mxu0 0.0
  %1639 = vmatmul.mubr.f32.gmra.mrb[0].mxu0 %v671
  %v1640 = vpop.f32.mrb[0].mxu0
  %v1641 = vadd.f32 0.0, %v1640
  %v1642 = vpop.f32.mrb[0].mxu0
  %1643 = vmatprep.mubr.f32.mxu0 0.0
  %1644 = vmatmul.mubr.f32.gmra.mrb[0].mxu0 %v674
  %v1645 = vpop.f32.mrb[0].mxu0
  %v1646 = vadd.f32 0.0, %v1645
  %v1647 = vpop.f32.mrb[0].mxu0
  %1648 = vmatprep.mubr.f32.mxu0 0.0
  %1649 = vmatmul.mubr.f32.gmra.mrb[0].mxu0 %v677
  %v1650 = vpop.f32.mrb[0].mxu0
  %v1651 = vadd.f32 0.0, %v1650
  %v1652 = vpop.f32.mrb[0].mxu0
  %1653 = vmatprep.mubr.f32.mxu0 0.0
  %1654 = vmatmul.mubr.f32.gmra.mrb[0].mxu0 %v680
  %v1655 = vpop.f32.mrb[0].mxu0
  %v1656 = vadd.f32 0.0, %v1655
  %v1657 = vpop.f32.mrb[0].mxu0
  %1658 = vmatprep.mubr.f32.mxu0 0.0
  %1659 = vmatmul.mubr.f32.gmra.mrb[0].mxu0 %v683
  %v1660 = vpop.f32.mrb[0].mxu0
  %v1661 = vadd.f32 0.0, %v1660
  %v1662 = vpop.f32.mrb[0].mxu0
  %1663 = vmatprep.mubr.f32.mxu0 0.0
  %1664 = vmatmul.mubr.f32.gmra.mrb[0].mxu0 %v686
  %v1665 = vpop.f32.mrb[0].mxu0
  %v1666 = vadd.f32 0.0, %v1665
  %v1667 = vpop.f32.mrb[0].mxu0
  %1668 = vmatprep.mubr.f32.mxu0 0.0
  %1669 = vmatmul.mubr.f32.gmra.mrb[0].mxu0 %v689
  %v1670 = vpop.f32.mrb[0].mxu0
  %v1671 = vadd.f32 0.0, %v1670
  %v1672 = vpop.f32.mrb[0].mxu0
  %1673 = vmatprep.mubr.f32.mxu0 0.0
  %1674 = vmatmul.mubr.f32.gmra.mrb[0].mxu0 %v692
  %v1675 = vpop.f32.mrb[0].mxu0
  %v1676 = vadd.f32 0.0, %v1675
  %v1677 = vpop.f32.mrb[0].mxu0
  %1678 = vmatprep.mubr.f32.mxu0 0.0
  %1679 = vmatmul.mubr.f32.gmra.mrb[0].mxu0 %v695
  %v1680 = vpop.f32.mrb[0].mxu0
  %v1681 = vadd.f32 0.0, %v1680
  %v1682 = vpop.f32.mrb[0].mxu0
  %1683 = vmatprep.mubr.f32.mxu0 0.0
  %1684 = vmatmul.mubr.f32.gmra.mrb[0].mxu0 %v698
  %v1685 = vpop.f32.mrb[0].mxu0
  %v1686 = vadd.f32 0.0, %v1685
  %v1687 = vpop.f32.mrb[0].mxu0
  %1688 = vmatprep.mubr.f32.mxu0 0.0
  %1689 = vmatmul.mubr.f32.gmra.mrb[0].mxu0 %v701
  %v1690 = vpop.f32.mrb[0].mxu0
  %v1691 = vadd.f32 0.0, %v1690
  %v1692 = vpop.f32.mrb[0].mxu0
  %1693 = vmatprep.mubr.f32.mxu0 0.0
  %1694 = vmatmul.mubr.f32.gmra.mrb[0].mxu0 %v704
  %v1695 = vpop.f32.mrb[0].mxu0
  %v1696 = vadd.f32 0.0, %v1695
  %v1697 = vpop.f32.mrb[0].mxu0
  %1698 = vmatprep.mubr.f32.mxu0 0.0
  %1699 = vmatmul.mubr.f32.gmra.mrb[0].mxu0 %v707
  %v1700 = vpop.f32.mrb[0].mxu0
  %v1701 = vadd.f32 0.0, %v1700
  %v1702 = vpop.f32.mrb[0].mxu0
  %1703 = vmatprep.mubr.f32.mxu0 0.0
  %1704 = vmatmul.mubr.f32.gmra.mrb[0].mxu0 %v710
  %v1705 = vpop.f32.mrb[0].mxu0
  %v1706 = vadd.f32 0.0, %v1705
  %v1707 = vpop.f32.mrb[0].mxu0
  %1708 = vmatprep.mubr.f32.mxu0 0.0
  %1709 = vmatmul.mubr.f32.gmra.mrb[0].mxu0 %v713
  %v1710 = vpop.f32.mrb[0].mxu0
  %v1711 = vadd.f32 0.0, %v1710
  %v1712 = vpop.f32.mrb[0].mxu0
  %1713 = vmatprep.mubr.f32.mxu0 0.0
  %1714 = vmatmul.mubr.f32.gmra.mrb[0].mxu0 %v716
  %v1715 = vpop.f32.mrb[0].mxu0
  %v1716 = vadd.f32 0.0, %v1715
  %v1717 = vpop.f32.mrb[0].mxu0
  %1718 = vmatprep.mubr.f32.mxu0 0.0
  %1719 = vmatmul.mubr.f32.gmra.mrb[0].mxu0 %v719
  %v1720 = vpop.f32.mrb[0].mxu0
  %v1721 = vadd.f32 0.0, %v1720
  %v1722 = vpop.f32.mrb[0].mxu0
  %1723 = vmatprep.mubr.f32.mxu0 0.0
  %1724 = vmatmul.mubr.f32.gmra.mrb[0].mxu0 %v722
  %v1725 = vpop.f32.mrb[0].mxu0
  %v1726 = vadd.f32 0.0, %v1725
  %v1727 = vpop.f32.mrb[0].mxu0
  %1728 = vmatprep.mubr.f32.mxu0 0.0
  %1729 = vmatmul.mubr.f32.gmra.mrb[0].mxu0 %v725
  %v1730 = vpop.f32.mrb[0].mxu0
  %v1731 = vadd.f32 0.0, %v1730
  %v1732 = vpop.f32.mrb[0].mxu0
  %1733 = vmatprep.mubr.f32.mxu0 0.0
  %1734 = vmatmul.mubr.f32.gmra.mrb[0].mxu0 %v728
  %v1735 = vpop.f32.mrb[0].mxu0
  %v1736 = vadd.f32 0.0, %v1735
  %v1737 = vpop.f32.mrb[0].mxu0
  %1738 = vmatprep.mubr.f32.mxu0 0.0
  %1739 = vmatmul.mubr.f32.gmra.mrb[0].mxu0 %v731
  %v1740 = vpop.f32.mrb[0].mxu0
  %v1741 = vadd.f32 0.0, %v1740
  %v1742 = vpop.f32.mrb[0].mxu0
  %1743 = vmatprep.mubr.f32.mxu0 0.0
  %1744 = vmatmul.mubr.f32.gmra.mrb[0].mxu0 %v734
  %v1745 = vpop.f32.mrb[0].mxu0
  %v1746 = vadd.f32 0.0, %v1745
  %v1747 = vpop.f32.mrb[0].mxu0
  %1748 = vmatprep.mubr.f32.mxu0 0.0
  %1749 = vmatmul.mubr.f32.gmra.mrb[0].mxu0 %v737
  %v1750 = vpop.f32.mrb[0].mxu0
  %v1751 = vadd.f32 0.0, %v1750
  %v1752 = vpop.f32.mrb[0].mxu0
  %1753 = vmatprep.mubr.f32.mxu0 0.0
  %1754 = vmatmul.mubr.f32.gmra.mrb[0].mxu0 %v740
  %v1755 = vpop.f32.mrb[0].mxu0
  %v1756 = vadd.f32 0.0, %v1755
  %v1757 = vpop.f32.mrb[0].mxu0
  %1758 = vmatprep.mubr.f32.mxu0 0.0
  %1759 = vmatmul.mubr.f32.gmra.mrb[0].mxu0 %v743
  %v1760 = vpop.f32.mrb[0].mxu0
  %v1761 = vadd.f32 0.0, %v1760
  %v1762 = vpop.f32.mrb[0].mxu0
  %1763 = vmatprep.mubr.f32.mxu0 0.0
  %1764 = vmatmul.mubr.f32.gmra.mrb[0].mxu0 %v746
  %v1765 = vpop.f32.mrb[0].mxu0
  %v1766 = vadd.f32 0.0, %v1765
  %v1767 = vpop.f32.mrb[0].mxu0
  %1768 = vmatprep.mubr.f32.mxu0 0.0
  %1769 = vmatmul.mubr.f32.gmra.mrb[0].mxu0 %v749
  %v1770 = vpop.f32.mrb[0].mxu0
  %v1771 = vadd.f32 0.0, %v1770
  %v1772 = vpop.f32.mrb[0].mxu0
  %1773 = vmatprep.mubr.f32.mxu0 0.0
  %1774 = vmatmul.mubr.f32.gmra.mrb[0].mxu0 %v752
  %v1775 = vpop.f32.mrb[0].mxu0
  %v1776 = vadd.f32 0.0, %v1775
  %v1777 = vpop.f32.mrb[0].mxu0
  %1778 = vmatprep.mubr.f32.mxu0 0.0
  %1779 = vmatmul.mubr.f32.gmra.mrb[0].mxu0 %v755
  %v1780 = vpop.f32.mrb[0].mxu0
  %v1781 = vadd.f32 0.0, %v1780
  %v1782 = vpop.f32.mrb[0].mxu0
  %1783 = vmatprep.mubr.f32.mxu0 0.0
  %1784 = vmatmul.mubr.f32.gmra.mrb[0].mxu0 %v758
  %v1785 = vpop.f32.mrb[0].mxu0
  %v1786 = vadd.f32 0.0, %v1785
  %v1787 = vpop.f32.mrb[0].mxu0
  %1788 = vmatprep.mubr.f32.mxu0 0.0
  %1789 = vmatmul.mubr.f32.gmra.mrb[0].mxu0 %v761
  %v1790 = vpop.f32.mrb[0].mxu0
  %v1791 = vadd.f32 0.0, %v1790
  %v1792 = vpop.f32.mrb[0].mxu0
  %1793 = vmatprep.mubr.f32.mxu0 0.0
  %1794 = vmatmul.mubr.f32.gmra.mrb[0].mxu0 %v764
  %v1795 = vpop.f32.mrb[0].mxu0
  %v1796 = vadd.f32 0.0, %v1795
  %v1797 = vpop.f32.mrb[0].mxu0
  %1798 = vmatprep.mubr.f32.mxu0 0.0
  %1799 = vmatmul.mubr.f32.gmra.mrb[0].mxu0 %v767
  %v1800 = vpop.f32.mrb[0].mxu0
  %v1801 = vadd.f32 0.0, %v1800
  %v1802 = vpop.f32.mrb[0].mxu0
  %1803 = vmatprep.mubr.f32.mxu0 0.0
  %1804 = vmatmul.mubr.f32.gmra.mrb[0].mxu0 %v770
  %v1805 = vpop.f32.mrb[0].mxu0
  %v1806 = vadd.f32 0.0, %v1805
  %v1807 = vpop.f32.mrb[0].mxu0
  %1808 = vmatprep.mubr.f32.mxu0 0.0
  %1809 = vmatmul.mubr.f32.gmra.mrb[0].mxu0 %v773
  %v1810 = vpop.f32.mrb[0].mxu0
  %v1811 = vadd.f32 0.0, %v1810
  %v1812 = vpop.f32.mrb[0].mxu0
  %1813 = vmatprep.mubr.f32.mxu0 0.0
  %1814 = vmatmul.mubr.f32.gmra.mrb[0].mxu0 %v776
  %v1815 = vpop.f32.mrb[0].mxu0
  %v1816 = vadd.f32 0.0, %v1815
  %v1817 = vpop.f32.mrb[0].mxu0
  %1818 = vmatprep.mubr.f32.mxu0 0.0
  %1819 = vmatmul.mubr.f32.gmra.mrb[0].mxu0 %v779
  %v1820 = vpop.f32.mrb[0].mxu0
  %v1821 = vadd.f32 0.0, %v1820
  %v1822 = vpop.f32.mrb[0].mxu0
  %1823 = vmatprep.mubr.f32.mxu0 0.0
  %1824 = vmatmul.mubr.f32.gmra.mrb[0].mxu0 %v782
  %v1825 = vpop.f32.mrb[0].mxu0
  %v1826 = vadd.f32 0.0, %v1825
  %v1827 = vpop.f32.mrb[0].mxu0
  %1828 = vmatprep.mubr.f32.mxu0 0.0
  %1829 = vmatmul.mubr.f32.gmra.mrb[0].mxu0 %v785
  %v1830 = vpop.f32.mrb[0].mxu0
  %v1831 = vadd.f32 0.0, %v1830
  %v1832 = vpop.f32.mrb[0].mxu0
  %1833 = vmatprep.mubr.f32.mxu0 0.0
  %1834 = vmatmul.mubr.f32.gmra.mrb[0].mxu0 %v788
  %v1835 = vpop.f32.mrb[0].mxu0
  %v1836 = vadd.f32 0.0, %v1835
  %v1837 = vpop.f32.mrb[0].mxu0
  %1838 = vmatprep.mubr.f32.mxu0 0.0
  %1839 = vmatmul.mubr.f32.gmra.mrb[0].mxu0 %v791
  %v1840 = vpop.f32.mrb[0].mxu0
  %v1841 = vadd.f32 0.0, %v1840
  %v1842 = vpop.f32.mrb[0].mxu0
  %1843 = vmatprep.mubr.f32.mxu0 0.0
  %1844 = vmatmul.mubr.f32.gmra.mrb[0].mxu0 %v794
  %v1845 = vpop.f32.mrb[0].mxu0
  %v1846 = vadd.f32 0.0, %v1845
  %v1847 = vpop.f32.mrb[0].mxu0
  %1848 = vmatprep.mubr.f32.mxu0 0.0
  %1849 = vmatmul.mubr.f32.gmra.mrb[0].mxu0 %v797
  %v1850 = vpop.f32.mrb[0].mxu0
  %v1851 = vadd.f32 0.0, %v1850
  %v1852 = vpop.f32.mrb[0].mxu0
  %1853 = vmatprep.mubr.f32.mxu0 0.0
  %1854 = vmatmul.mubr.f32.gmra.mrb[0].mxu0 %v800
  %v1855 = vpop.f32.mrb[0].mxu0
  %v1856 = vadd.f32 0.0, %v1855
  %v1857 = vpop.f32.mrb[0].mxu0
  %1858 = vmatprep.mubr.f32.mxu0 0.0
  %1859 = vmatmul.mubr.f32.gmra.mrb[0].mxu0 %v803
  %v1860 = vpop.f32.mrb[0].mxu0
  %v1861 = vadd.f32 0.0, %v1860
  %v1862 = vpop.f32.mrb[0].mxu0
  %1863 = vmatprep.mubr.f32.mxu0 0.0
  %1864 = vmatmul.mubr.f32.gmra.mrb[0].mxu0 %v806
  %v1865 = vpop.f32.mrb[0].mxu0
  %v1866 = vadd.f32 0.0, %v1865
  %v1867 = vpop.f32.mrb[0].mxu0
  %1868 = vmatprep.mubr.f32.mxu0 0.0
  %1869 = vmatmul.mubr.f32.gmra.mrb[0].mxu0 %v809
  %v1870 = vpop.f32.mrb[0].mxu0
  %v1871 = vadd.f32 0.0, %v1870
  %v1872 = vpop.f32.mrb[0].mxu0
  %1873 = vmatprep.mubr.f32.mxu0 0.0
  %1874 = vmatmul.mubr.f32.gmra.mrb[0].mxu0 %v812
  %v1875 = vpop.f32.mrb[0].mxu0
  %v1876 = vadd.f32 0.0, %v1875
  %v1877 = vpop.f32.mrb[0].mxu0
  %1878 = vmatprep.mubr.f32.mxu0 0.0
  %1879 = vmatmul.mubr.f32.gmra.mrb[0].mxu0 %v815
  %v1880 = vpop.f32.mrb[0].mxu0
  %v1881 = vadd.f32 0.0, %v1880
  %v1882 = vpop.f32.mrb[0].mxu0
  %1883 = vmatprep.mubr.f32.mxu0 0.0
  %1884 = vmatmul.mubr.f32.gmra.mrb[0].mxu0 %v818
  %v1885 = vpop.f32.mrb[0].mxu0
  %v1886 = vadd.f32 0.0, %v1885
  %v1887 = vpop.f32.mrb[0].mxu0
  %1888 = vdwg.mxu0
  %v1889 = vld [vmem:[%s2] sm:$0x1]
  %v1891 = vlaneseq
  %v1892 = vshrl.u32 %v1891, 7
  %v1893 = vsub.s32 0, %v1892
  %v1894 = vrot.slane %v1889, %v1893
  %v1896 = vmul.f32 %v891, %v1894
  %v1897 = vmul.f32 %v896, %v1894
  %v1898 = vmul.f32 %v901, %v1894
  %v1899 = vmul.f32 %v906, %v1894
  %v1900 = vmul.f32 %v911, %v1894
  %v1901 = vmul.f32 %v916, %v1894
  %v1902 = vmul.f32 %v921, %v1894
  %v1903 = vmul.f32 %v926, %v1894
  %v1904 = vmul.f32 %v931, %v1894
  %v1905 = vmul.f32 %v936, %v1894
  %v1906 = vmul.f32 %v941, %v1894
  %v1907 = vmul.f32 %v946, %v1894
  %v1908 = vmul.f32 %v951, %v1894
  %v1909 = vmul.f32 %v956, %v1894
  %v1910 = vmul.f32 %v961, %v1894
  %v1911 = vmul.f32 %v966, %v1894
  %v1912 = vmul.f32 %v971, %v1894
  %v1913 = vmul.f32 %v976, %v1894
  %v1914 = vmul.f32 %v981, %v1894
  %v1915 = vmul.f32 %v986, %v1894
  %v1916 = vmul.f32 %v991, %v1894
  %v1917 = vmul.f32 %v996, %v1894
  %v1918 = vmul.f32 %v1001, %v1894
  %v1919 = vmul.f32 %v1006, %v1894
  %v1920 = vmul.f32 %v1011, %v1894
  %v1921 = vmul.f32 %v1016, %v1894
  %v1922 = vmul.f32 %v1021, %v1894
  %v1923 = vmul.f32 %v1026, %v1894
  %v1924 = vmul.f32 %v1031, %v1894
  %v1925 = vmul.f32 %v1036, %v1894
  %v1926 = vmul.f32 %v1041, %v1894
  %v1927 = vmul.f32 %v1046, %v1894
  %v1928 = vmul.f32 %v1051, %v1894
  %v1929 = vmul.f32 %v1056, %v1894
  %v1930 = vmul.f32 %v1061, %v1894
  %v1931 = vmul.f32 %v1066, %v1894
  %v1932 = vmul.f32 %v1071, %v1894
  %v1933 = vmul.f32 %v1076, %v1894
  %v1934 = vmul.f32 %v1081, %v1894
  %v1935 = vmul.f32 %v1086, %v1894
  %v1936 = vmul.f32 %v1091, %v1894
  %v1937 = vmul.f32 %v1096, %v1894
  %v1938 = vmul.f32 %v1101, %v1894
  %v1939 = vmul.f32 %v1106, %v1894
  %v1940 = vmul.f32 %v1111, %v1894
  %v1941 = vmul.f32 %v1116, %v1894
  %v1942 = vmul.f32 %v1121, %v1894
  %v1943 = vmul.f32 %v1126, %v1894
  %v1944 = vmul.f32 %v1131, %v1894
  %v1945 = vmul.f32 %v1136, %v1894
  %v1946 = vmul.f32 %v1141, %v1894
  %v1947 = vmul.f32 %v1146, %v1894
  %v1948 = vmul.f32 %v1151, %v1894
  %v1949 = vmul.f32 %v1156, %v1894
  %v1950 = vmul.f32 %v1161, %v1894
  %v1951 = vmul.f32 %v1166, %v1894
  %v1952 = vmul.f32 %v1171, %v1894
  %v1953 = vmul.f32 %v1176, %v1894
  %v1954 = vmul.f32 %v1181, %v1894
  %v1955 = vmul.f32 %v1186, %v1894
  %v1956 = vmul.f32 %v1191, %v1894
  %v1957 = vmul.f32 %v1196, %v1894
  %v1958 = vmul.f32 %v1201, %v1894
  %v1959 = vmul.f32 %v1206, %v1894
  %v1960 = vmul.f32 %v1211, %v1894
  %v1961 = vmul.f32 %v1216, %v1894
  %v1962 = vmul.f32 %v1221, %v1894
  %v1963 = vmul.f32 %v1226, %v1894
  %v1964 = vmul.f32 %v1231, %v1894
  %v1965 = vmul.f32 %v1236, %v1894
  %v1966 = vmul.f32 %v1241, %v1894
  %v1967 = vmul.f32 %v1246, %v1894
  %v1968 = vmul.f32 %v1251, %v1894
  %v1969 = vmul.f32 %v1256, %v1894
  %v1970 = vmul.f32 %v1261, %v1894
  %v1971 = vmul.f32 %v1266, %v1894
  %v1972 = vmul.f32 %v1271, %v1894
  %v1973 = vmul.f32 %v1276, %v1894
  %v1974 = vmul.f32 %v1281, %v1894
  %v1975 = vmul.f32 %v1286, %v1894
  %v1976 = vmul.f32 %v1291, %v1894
  %v1977 = vmul.f32 %v1296, %v1894
  %v1978 = vmul.f32 %v1301, %v1894
  %v1979 = vmul.f32 %v1306, %v1894
  %v1980 = vmul.f32 %v1311, %v1894
  %v1981 = vmul.f32 %v1316, %v1894
  %v1982 = vmul.f32 %v1321, %v1894
  %v1983 = vmul.f32 %v1326, %v1894
  %v1984 = vmul.f32 %v1331, %v1894
  %v1985 = vmul.f32 %v1336, %v1894
  %v1986 = vmul.f32 %v1341, %v1894
  %v1987 = vmul.f32 %v1346, %v1894
  %v1988 = vmul.f32 %v1351, %v1894
  %v1989 = vmul.f32 %v1356, %v1894
  %v1990 = vmul.f32 %v1361, %v1894
  %v1991 = vmul.f32 %v1366, %v1894
  %v1992 = vmul.f32 %v1371, %v1894
  %v1993 = vmul.f32 %v1376, %v1894
  %v1994 = vmul.f32 %v1381, %v1894
  %v1995 = vmul.f32 %v1386, %v1894
  %v1996 = vmul.f32 %v1391, %v1894
  %v1997 = vmul.f32 %v1396, %v1894
  %v1998 = vmul.f32 %v1401, %v1894
  %v1999 = vmul.f32 %v1406, %v1894
  %v2000 = vmul.f32 %v1411, %v1894
  %v2001 = vmul.f32 %v1416, %v1894
  %v2002 = vmul.f32 %v1421, %v1894
  %v2003 = vmul.f32 %v1426, %v1894
  %v2004 = vmul.f32 %v1431, %v1894
  %v2005 = vmul.f32 %v1436, %v1894
  %v2006 = vmul.f32 %v1441, %v1894
  %v2007 = vmul.f32 %v1446, %v1894
  %v2008 = vmul.f32 %v1451, %v1894
  %v2009 = vmul.f32 %v1456, %v1894
  %v2010 = vmul.f32 %v1461, %v1894
  %v2011 = vmul.f32 %v1466, %v1894
  %v2012 = vmul.f32 %v1471, %v1894
  %v2013 = vmul.f32 %v1476, %v1894
  %v2014 = vmul.f32 %v1481, %v1894
  %v2015 = vmul.f32 %v1486, %v1894
  %v2016 = vmul.f32 %v1491, %v1894
  %v2017 = vmul.f32 %v1496, %v1894
  %v2018 = vmul.f32 %v1501, %v1894
  %v2019 = vmul.f32 %v1506, %v1894
  %v2020 = vmul.f32 %v1511, %v1894
  %v2021 = vmul.f32 %v1516, %v1894
  %v2022 = vmul.f32 %v1521, %v1894
  %v2023 = vmul.f32 %v1526, %v1894
  %v2024 = vmul.f32 %v1531, %v1894
  %v2025 = vmul.f32 %v1536, %v1894
  %v2026 = vmul.f32 %v1541, %v1894
  %v2027 = vmul.f32 %v1546, %v1894
  %v2028 = vmul.f32 %v1551, %v1894
  %v2029 = vmul.f32 %v1556, %v1894
  %v2030 = vmul.f32 %v1561, %v1894
  %v2031 = vmul.f32 %v1566, %v1894
  %v2032 = vmul.f32 %v1571, %v1894
  %v2033 = vmul.f32 %v1576, %v1894
  %v2034 = vmul.f32 %v1581, %v1894
  %v2035 = vmul.f32 %v1586, %v1894
  %v2036 = vmul.f32 %v1591, %v1894
  %v2037 = vmul.f32 %v1596, %v1894
  %v2038 = vmul.f32 %v1601, %v1894
  %v2039 = vmul.f32 %v1606, %v1894
  %v2040 = vmul.f32 %v1611, %v1894
  %v2041 = vmul.f32 %v1616, %v1894
  %v2042 = vmul.f32 %v1621, %v1894
  %v2043 = vmul.f32 %v1626, %v1894
  %v2044 = vmul.f32 %v1631, %v1894
  %v2045 = vmul.f32 %v1636, %v1894
  %v2046 = vmul.f32 %v1641, %v1894
  %v2047 = vmul.f32 %v1646, %v1894
  %v2048 = vmul.f32 %v1651, %v1894
  %v2049 = vmul.f32 %v1656, %v1894
  %v2050 = vmul.f32 %v1661, %v1894
  %v2051 = vmul.f32 %v1666, %v1894
  %v2052 = vmul.f32 %v1671, %v1894
  %v2053 = vmul.f32 %v1676, %v1894
  %v2054 = vmul.f32 %v1681, %v1894
  %v2055 = vmul.f32 %v1686, %v1894
  %v2056 = vmul.f32 %v1691, %v1894
  %v2057 = vmul.f32 %v1696, %v1894
  %v2058 = vmul.f32 %v1701, %v1894
  %v2059 = vmul.f32 %v1706, %v1894
  %v2060 = vmul.f32 %v1711, %v1894
  %v2061 = vmul.f32 %v1716, %v1894
  %v2062 = vmul.f32 %v1721, %v1894
  %v2063 = vmul.f32 %v1726, %v1894
  %v2064 = vmul.f32 %v1731, %v1894
  %v2065 = vmul.f32 %v1736, %v1894
  %v2066 = vmul.f32 %v1741, %v1894
  %v2067 = vmul.f32 %v1746, %v1894
  %v2068 = vmul.f32 %v1751, %v1894
  %v2069 = vmul.f32 %v1756, %v1894
  %v2070 = vmul.f32 %v1761, %v1894
  %v2071 = vmul.f32 %v1766, %v1894
  %v2072 = vmul.f32 %v1771, %v1894
  %v2073 = vmul.f32 %v1776, %v1894
  %v2074 = vmul.f32 %v1781, %v1894
  %v2075 = vmul.f32 %v1786, %v1894
  %v2076 = vmul.f32 %v1791, %v1894
  %v2077 = vmul.f32 %v1796, %v1894
  %v2078 = vmul.f32 %v1801, %v1894
  %v2079 = vmul.f32 %v1806, %v1894
  %v2080 = vmul.f32 %v1811, %v1894
  %v2081 = vmul.f32 %v1816, %v1894
  %v2082 = vmul.f32 %v1821, %v1894
  %v2083 = vmul.f32 %v1826, %v1894
  %v2084 = vmul.f32 %v1831, %v1894
  %v2085 = vmul.f32 %v1836, %v1894
  %v2086 = vmul.f32 %v1841, %v1894
  %v2087 = vmul.f32 %v1846, %v1894
  %v2088 = vmul.f32 %v1851, %v1894
  %v2089 = vmul.f32 %v1856, %v1894
  %v2090 = vmul.f32 %v1861, %v1894
  %v2091 = vmul.f32 %v1866, %v1894
  %v2092 = vmul.f32 %v1871, %v1894
  %v2093 = vmul.f32 %v1876, %v1894
  %v2094 = vmul.f32 %v1881, %v1894
  %v2095 = vmul.f32 %v1886, %v1894
  %v2096 = vld [vmem:[%s3] sm:$0x1]
  %v2098 = vlaneseq
  %v2099 = vshrl.u32 %v2098, 7
  %v2100 = vsub.s32 0, %v2099
  %v2101 = vrot.slane %v2096, %v2100
  %v2103 = vadd.f32 %v1896, %v2101
  %v2104 = vadd.f32 %v1897, %v2101
  %v2105 = vadd.f32 %v1898, %v2101
  %v2106 = vadd.f32 %v1899, %v2101
  %v2107 = vadd.f32 %v1900, %v2101
  %v2108 = vadd.f32 %v1901, %v2101
  %v2109 = vadd.f32 %v1902, %v2101
  %v2110 = vadd.f32 %v1903, %v2101
  %v2111 = vadd.f32 %v1904, %v2101
  %v2112 = vadd.f32 %v1905, %v2101
  %v2113 = vadd.f32 %v1906, %v2101
  %v2114 = vadd.f32 %v1907, %v2101
  %v2115 = vadd.f32 %v1908, %v2101
  %v2116 = vadd.f32 %v1909, %v2101
  %v2117 = vadd.f32 %v1910, %v2101
  %v2118 = vadd.f32 %v1911, %v2101
  %v2119 = vadd.f32 %v1912, %v2101
  %v2120 = vadd.f32 %v1913, %v2101
  %v2121 = vadd.f32 %v1914, %v2101
  %v2122 = vadd.f32 %v1915, %v2101
  %v2123 = vadd.f32 %v1916, %v2101
  %v2124 = vadd.f32 %v1917, %v2101
  %v2125 = vadd.f32 %v1918, %v2101
  %v2126 = vadd.f32 %v1919, %v2101
  %v2127 = vadd.f32 %v1920, %v2101
  %v2128 = vadd.f32 %v1921, %v2101
  %v2129 = vadd.f32 %v1922, %v2101
  %v2130 = vadd.f32 %v1923, %v2101
  %v2131 = vadd.f32 %v1924, %v2101
  %v2132 = vadd.f32 %v1925, %v2101
  %v2133 = vadd.f32 %v1926, %v2101
  %v2134 = vadd.f32 %v1927, %v2101
  %v2135 = vadd.f32 %v1928, %v2101
  %v2136 = vadd.f32 %v1929, %v2101
  %v2137 = vadd.f32 %v1930, %v2101
  %v2138 = vadd.f32 %v1931, %v2101
  %v2139 = vadd.f32 %v1932, %v2101
  %v2140 = vadd.f32 %v1933, %v2101
  %v2141 = vadd.f32 %v1934, %v2101
  %v2142 = vadd.f32 %v1935, %v2101
  %v2143 = vadd.f32 %v1936, %v2101
  %v2144 = vadd.f32 %v1937, %v2101
  %v2145 = vadd.f32 %v1938, %v2101
  %v2146 = vadd.f32 %v1939, %v2101
  %v2147 = vadd.f32 %v1940, %v2101
  %v2148 = vadd.f32 %v1941, %v2101
  %v2149 = vadd.f32 %v1942, %v2101
  %v2150 = vadd.f32 %v1943, %v2101
  %v2151 = vadd.f32 %v1944, %v2101
  %v2152 = vadd.f32 %v1945, %v2101
  %v2153 = vadd.f32 %v1946, %v2101
  %v2154 = vadd.f32 %v1947, %v2101
  %v2155 = vadd.f32 %v1948, %v2101
  %v2156 = vadd.f32 %v1949, %v2101
  %v2157 = vadd.f32 %v1950, %v2101
  %v2158 = vadd.f32 %v1951, %v2101
  %v2159 = vadd.f32 %v1952, %v2101
  %v2160 = vadd.f32 %v1953, %v2101
  %v2161 = vadd.f32 %v1954, %v2101
  %v2162 = vadd.f32 %v1955, %v2101
  %v2163 = vadd.f32 %v1956, %v2101
  %v2164 = vadd.f32 %v1957, %v2101
  %v2165 = vadd.f32 %v1958, %v2101
  %v2166 = vadd.f32 %v1959, %v2101
  %v2167 = vadd.f32 %v1960, %v2101
  %v2168 = vadd.f32 %v1961, %v2101
  %v2169 = vadd.f32 %v1962, %v2101
  %v2170 = vadd.f32 %v1963, %v2101
  %v2171 = vadd.f32 %v1964, %v2101
  %v2172 = vadd.f32 %v1965, %v2101
  %v2173 = vadd.f32 %v1966, %v2101
  %v2174 = vadd.f32 %v1967, %v2101
  %v2175 = vadd.f32 %v1968, %v2101
  %v2176 = vadd.f32 %v1969, %v2101
  %v2177 = vadd.f32 %v1970, %v2101
  %v2178 = vadd.f32 %v1971, %v2101
  %v2179 = vadd.f32 %v1972, %v2101
  %v2180 = vadd.f32 %v1973, %v2101
  %v2181 = vadd.f32 %v1974, %v2101
  %v2182 = vadd.f32 %v1975, %v2101
  %v2183 = vadd.f32 %v1976, %v2101
  %v2184 = vadd.f32 %v1977, %v2101
  %v2185 = vadd.f32 %v1978, %v2101
  %v2186 = vadd.f32 %v1979, %v2101
  %v2187 = vadd.f32 %v1980, %v2101
  %v2188 = vadd.f32 %v1981, %v2101
  %v2189 = vadd.f32 %v1982, %v2101
  %v2190 = vadd.f32 %v1983, %v2101
  %v2191 = vadd.f32 %v1984, %v2101
  %v2192 = vadd.f32 %v1985, %v2101
  %v2193 = vadd.f32 %v1986, %v2101
  %v2194 = vadd.f32 %v1987, %v2101
  %v2195 = vadd.f32 %v1988, %v2101
  %v2196 = vadd.f32 %v1989, %v2101
  %v2197 = vadd.f32 %v1990, %v2101
  %v2198 = vadd.f32 %v1991, %v2101
  %v2199 = vadd.f32 %v1992, %v2101
  %v2200 = vadd.f32 %v1993, %v2101
  %v2201 = vadd.f32 %v1994, %v2101
  %v2202 = vadd.f32 %v1995, %v2101
  %v2203 = vadd.f32 %v1996, %v2101
  %v2204 = vadd.f32 %v1997, %v2101
  %v2205 = vadd.f32 %v1998, %v2101
  %v2206 = vadd.f32 %v1999, %v2101
  %v2207 = vadd.f32 %v2000, %v2101
  %v2208 = vadd.f32 %v2001, %v2101
  %v2209 = vadd.f32 %v2002, %v2101
  %v2210 = vadd.f32 %v2003, %v2101
  %v2211 = vadd.f32 %v2004, %v2101
  %v2212 = vadd.f32 %v2005, %v2101
  %v2213 = vadd.f32 %v2006, %v2101
  %v2214 = vadd.f32 %v2007, %v2101
  %v2215 = vadd.f32 %v2008, %v2101
  %v2216 = vadd.f32 %v2009, %v2101
  %v2217 = vadd.f32 %v2010, %v2101
  %v2218 = vadd.f32 %v2011, %v2101
  %v2219 = vadd.f32 %v2012, %v2101
  %v2220 = vadd.f32 %v2013, %v2101
  %v2221 = vadd.f32 %v2014, %v2101
  %v2222 = vadd.f32 %v2015, %v2101
  %v2223 = vadd.f32 %v2016, %v2101
  %v2224 = vadd.f32 %v2017, %v2101
  %v2225 = vadd.f32 %v2018, %v2101
  %v2226 = vadd.f32 %v2019, %v2101
  %v2227 = vadd.f32 %v2020, %v2101
  %v2228 = vadd.f32 %v2021, %v2101
  %v2229 = vadd.f32 %v2022, %v2101
  %v2230 = vadd.f32 %v2023, %v2101
  %v2231 = vadd.f32 %v2024, %v2101
  %v2232 = vadd.f32 %v2025, %v2101
  %v2233 = vadd.f32 %v2026, %v2101
  %v2234 = vadd.f32 %v2027, %v2101
  %v2235 = vadd.f32 %v2028, %v2101
  %v2236 = vadd.f32 %v2029, %v2101
  %v2237 = vadd.f32 %v2030, %v2101
  %v2238 = vadd.f32 %v2031, %v2101
  %v2239 = vadd.f32 %v2032, %v2101
  %v2240 = vadd.f32 %v2033, %v2101
  %v2241 = vadd.f32 %v2034, %v2101
  %v2242 = vadd.f32 %v2035, %v2101
  %v2243 = vadd.f32 %v2036, %v2101
  %v2244 = vadd.f32 %v2037, %v2101
  %v2245 = vadd.f32 %v2038, %v2101
  %v2246 = vadd.f32 %v2039, %v2101
  %v2247 = vadd.f32 %v2040, %v2101
  %v2248 = vadd.f32 %v2041, %v2101
  %v2249 = vadd.f32 %v2042, %v2101
  %v2250 = vadd.f32 %v2043, %v2101
  %v2251 = vadd.f32 %v2044, %v2101
  %v2252 = vadd.f32 %v2045, %v2101
  %v2253 = vadd.f32 %v2046, %v2101
  %v2254 = vadd.f32 %v2047, %v2101
  %v2255 = vadd.f32 %v2048, %v2101
  %v2256 = vadd.f32 %v2049, %v2101
  %v2257 = vadd.f32 %v2050, %v2101
  %v2258 = vadd.f32 %v2051, %v2101
  %v2259 = vadd.f32 %v2052, %v2101
  %v2260 = vadd.f32 %v2053, %v2101
  %v2261 = vadd.f32 %v2054, %v2101
  %v2262 = vadd.f32 %v2055, %v2101
  %v2263 = vadd.f32 %v2056, %v2101
  %v2264 = vadd.f32 %v2057, %v2101
  %v2265 = vadd.f32 %v2058, %v2101
  %v2266 = vadd.f32 %v2059, %v2101
  %v2267 = vadd.f32 %v2060, %v2101
  %v2268 = vadd.f32 %v2061, %v2101
  %v2269 = vadd.f32 %v2062, %v2101
  %v2270 = vadd.f32 %v2063, %v2101
  %v2271 = vadd.f32 %v2064, %v2101
  %v2272 = vadd.f32 %v2065, %v2101
  %v2273 = vadd.f32 %v2066, %v2101
  %v2274 = vadd.f32 %v2067, %v2101
  %v2275 = vadd.f32 %v2068, %v2101
  %v2276 = vadd.f32 %v2069, %v2101
  %v2277 = vadd.f32 %v2070, %v2101
  %v2278 = vadd.f32 %v2071, %v2101
  %v2279 = vadd.f32 %v2072, %v2101
  %v2280 = vadd.f32 %v2073, %v2101
  %v2281 = vadd.f32 %v2074, %v2101
  %v2282 = vadd.f32 %v2075, %v2101
  %v2283 = vadd.f32 %v2076, %v2101
  %v2284 = vadd.f32 %v2077, %v2101
  %v2285 = vadd.f32 %v2078, %v2101
  %v2286 = vadd.f32 %v2079, %v2101
  %v2287 = vadd.f32 %v2080, %v2101
  %v2288 = vadd.f32 %v2081, %v2101
  %v2289 = vadd.f32 %v2082, %v2101
  %v2290 = vadd.f32 %v2083, %v2101
  %v2291 = vadd.f32 %v2084, %v2101
  %v2292 = vadd.f32 %v2085, %v2101
  %v2293 = vadd.f32 %v2086, %v2101
  %v2294 = vadd.f32 %v2087, %v2101
  %v2295 = vadd.f32 %v2088, %v2101
  %v2296 = vadd.f32 %v2089, %v2101
  %v2297 = vadd.f32 %v2090, %v2101
  %v2298 = vadd.f32 %v2091, %v2101
  %v2299 = vadd.f32 %v2092, %v2101
  %v2300 = vadd.f32 %v2093, %v2101
  %v2301 = vadd.f32 %v2094, %v2101
  %v2302 = vadd.f32 %v2095, %v2101
  %vm2303 = vcmp.gt.f32.partialorder %v2103, 0.0
  %vm2304 = vcmp.gt.f32.partialorder %v2104, 0.0
  %vm2305 = vcmp.gt.f32.partialorder %v2105, 0.0
  %vm2306 = vcmp.gt.f32.partialorder %v2106, 0.0
  %vm2307 = vcmp.gt.f32.partialorder %v2107, 0.0
  %vm2308 = vcmp.gt.f32.partialorder %v2108, 0.0
  %vm2309 = vcmp.gt.f32.partialorder %v2109, 0.0
  %vm2310 = vcmp.gt.f32.partialorder %v2110, 0.0
  %vm2311 = vcmp.gt.f32.partialorder %v2111, 0.0
  %vm2312 = vcmp.gt.f32.partialorder %v2112, 0.0
  %vm2313 = vcmp.gt.f32.partialorder %v2113, 0.0
  %vm2314 = vcmp.gt.f32.partialorder %v2114, 0.0
  %vm2315 = vcmp.gt.f32.partialorder %v2115, 0.0
  %vm2316 = vcmp.gt.f32.partialorder %v2116, 0.0
  %vm2317 = vcmp.gt.f32.partialorder %v2117, 0.0
  %vm2318 = vcmp.gt.f32.partialorder %v2118, 0.0
  %vm2319 = vcmp.gt.f32.partialorder %v2119, 0.0
  %vm2320 = vcmp.gt.f32.partialorder %v2120, 0.0
  %vm2321 = vcmp.gt.f32.partialorder %v2121, 0.0
  %vm2322 = vcmp.gt.f32.partialorder %v2122, 0.0
  %vm2323 = vcmp.gt.f32.partialorder %v2123, 0.0
  %vm2324 = vcmp.gt.f32.partialorder %v2124, 0.0
  %vm2325 = vcmp.gt.f32.partialorder %v2125, 0.0
  %vm2326 = vcmp.gt.f32.partialorder %v2126, 0.0
  %vm2327 = vcmp.gt.f32.partialorder %v2127, 0.0
  %vm2328 = vcmp.gt.f32.partialorder %v2128, 0.0
  %vm2329 = vcmp.gt.f32.partialorder %v2129, 0.0
  %vm2330 = vcmp.gt.f32.partialorder %v2130, 0.0
  %vm2331 = vcmp.gt.f32.partialorder %v2131, 0.0
  %vm2332 = vcmp.gt.f32.partialorder %v2132, 0.0
  %vm2333 = vcmp.gt.f32.partialorder %v2133, 0.0
  %vm2334 = vcmp.gt.f32.partialorder %v2134, 0.0
  %vm2335 = vcmp.gt.f32.partialorder %v2135, 0.0
  %vm2336 = vcmp.gt.f32.partialorder %v2136, 0.0
  %vm2337 = vcmp.gt.f32.partialorder %v2137, 0.0
  %vm2338 = vcmp.gt.f32.partialorder %v2138, 0.0
  %vm2339 = vcmp.gt.f32.partialorder %v2139, 0.0
  %vm2340 = vcmp.gt.f32.partialorder %v2140, 0.0
  %vm2341 = vcmp.gt.f32.partialorder %v2141, 0.0
  %vm2342 = vcmp.gt.f32.partialorder %v2142, 0.0
  %vm2343 = vcmp.gt.f32.partialorder %v2143, 0.0
  %vm2344 = vcmp.gt.f32.partialorder %v2144, 0.0
  %vm2345 = vcmp.gt.f32.partialorder %v2145, 0.0
  %vm2346 = vcmp.gt.f32.partialorder %v2146, 0.0
  %vm2347 = vcmp.gt.f32.partialorder %v2147, 0.0
  %vm2348 = vcmp.gt.f32.partialorder %v2148, 0.0
  %vm2349 = vcmp.gt.f32.partialorder %v2149, 0.0
  %vm2350 = vcmp.gt.f32.partialorder %v2150, 0.0
  %vm2351 = vcmp.gt.f32.partialorder %v2151, 0.0
  %vm2352 = vcmp.gt.f32.partialorder %v2152, 0.0
  %vm2353 = vcmp.gt.f32.partialorder %v2153, 0.0
  %vm2354 = vcmp.gt.f32.partialorder %v2154, 0.0
  %vm2355 = vcmp.gt.f32.partialorder %v2155, 0.0
  %vm2356 = vcmp.gt.f32.partialorder %v2156, 0.0
  %vm2357 = vcmp.gt.f32.partialorder %v2157, 0.0
  %vm2358 = vcmp.gt.f32.partialorder %v2158, 0.0
  %vm2359 = vcmp.gt.f32.partialorder %v2159, 0.0
  %vm2360 = vcmp.gt.f32.partialorder %v2160, 0.0
  %vm2361 = vcmp.gt.f32.partialorder %v2161, 0.0
  %vm2362 = vcmp.gt.f32.partialorder %v2162, 0.0
  %vm2363 = vcmp.gt.f32.partialorder %v2163, 0.0
  %vm2364 = vcmp.gt.f32.partialorder %v2164, 0.0
  %vm2365 = vcmp.gt.f32.partialorder %v2165, 0.0
  %vm2366 = vcmp.gt.f32.partialorder %v2166, 0.0
  %vm2367 = vcmp.gt.f32.partialorder %v2167, 0.0
  %vm2368 = vcmp.gt.f32.partialorder %v2168, 0.0
  %vm2369 = vcmp.gt.f32.partialorder %v2169, 0.0
  %vm2370 = vcmp.gt.f32.partialorder %v2170, 0.0
  %vm2371 = vcmp.gt.f32.partialorder %v2171, 0.0
  %vm2372 = vcmp.gt.f32.partialorder %v2172, 0.0
  %vm2373 = vcmp.gt.f32.partialorder %v2173, 0.0
  %vm2374 = vcmp.gt.f32.partialorder %v2174, 0.0
  %vm2375 = vcmp.gt.f32.partialorder %v2175, 0.0
  %vm2376 = vcmp.gt.f32.partialorder %v2176, 0.0
  %vm2377 = vcmp.gt.f32.partialorder %v2177, 0.0
  %vm2378 = vcmp.gt.f32.partialorder %v2178, 0.0
  %vm2379 = vcmp.gt.f32.partialorder %v2179, 0.0
  %vm2380 = vcmp.gt.f32.partialorder %v2180, 0.0
  %vm2381 = vcmp.gt.f32.partialorder %v2181, 0.0
  %vm2382 = vcmp.gt.f32.partialorder %v2182, 0.0
  %vm2383 = vcmp.gt.f32.partialorder %v2183, 0.0
  %vm2384 = vcmp.gt.f32.partialorder %v2184, 0.0
  %vm2385 = vcmp.gt.f32.partialorder %v2185, 0.0
  %vm2386 = vcmp.gt.f32.partialorder %v2186, 0.0
  %vm2387 = vcmp.gt.f32.partialorder %v2187, 0.0
  %vm2388 = vcmp.gt.f32.partialorder %v2188, 0.0
  %vm2389 = vcmp.gt.f32.partialorder %v2189, 0.0
  %vm2390 = vcmp.gt.f32.partialorder %v2190, 0.0
  %vm2391 = vcmp.gt.f32.partialorder %v2191, 0.0
  %vm2392 = vcmp.gt.f32.partialorder %v2192, 0.0
  %vm2393 = vcmp.gt.f32.partialorder %v2193, 0.0
  %vm2394 = vcmp.gt.f32.partialorder %v2194, 0.0
  %vm2395 = vcmp.gt.f32.partialorder %v2195, 0.0
  %vm2396 = vcmp.gt.f32.partialorder %v2196, 0.0
  %vm2397 = vcmp.gt.f32.partialorder %v2197, 0.0
  %vm2398 = vcmp.gt.f32.partialorder %v2198, 0.0
  %vm2399 = vcmp.gt.f32.partialorder %v2199, 0.0
  %vm2400 = vcmp.gt.f32.partialorder %v2200, 0.0
  %vm2401 = vcmp.gt.f32.partialorder %v2201, 0.0
  %vm2402 = vcmp.gt.f32.partialorder %v2202, 0.0
  %vm2403 = vcmp.gt.f32.partialorder %v2203, 0.0
  %vm2404 = vcmp.gt.f32.partialorder %v2204, 0.0
  %vm2405 = vcmp.gt.f32.partialorder %v2205, 0.0
  %vm2406 = vcmp.gt.f32.partialorder %v2206, 0.0
  %vm2407 = vcmp.gt.f32.partialorder %v2207, 0.0
  %vm2408 = vcmp.gt.f32.partialorder %v2208, 0.0
  %vm2409 = vcmp.gt.f32.partialorder %v2209, 0.0
  %vm2410 = vcmp.gt.f32.partialorder %v2210, 0.0
  %vm2411 = vcmp.gt.f32.partialorder %v2211, 0.0
  %vm2412 = vcmp.gt.f32.partialorder %v2212, 0.0
  %vm2413 = vcmp.gt.f32.partialorder %v2213, 0.0
  %vm2414 = vcmp.gt.f32.partialorder %v2214, 0.0
  %vm2415 = vcmp.gt.f32.partialorder %v2215, 0.0
  %vm2416 = vcmp.gt.f32.partialorder %v2216, 0.0
  %vm2417 = vcmp.gt.f32.partialorder %v2217, 0.0
  %vm2418 = vcmp.gt.f32.partialorder %v2218, 0.0
  %vm2419 = vcmp.gt.f32.partialorder %v2219, 0.0
  %vm2420 = vcmp.gt.f32.partialorder %v2220, 0.0
  %vm2421 = vcmp.gt.f32.partialorder %v2221, 0.0
  %vm2422 = vcmp.gt.f32.partialorder %v2222, 0.0
  %vm2423 = vcmp.gt.f32.partialorder %v2223, 0.0
  %vm2424 = vcmp.gt.f32.partialorder %v2224, 0.0
  %vm2425 = vcmp.gt.f32.partialorder %v2225, 0.0
  %vm2426 = vcmp.gt.f32.partialorder %v2226, 0.0
  %vm2427 = vcmp.gt.f32.partialorder %v2227, 0.0
  %vm2428 = vcmp.gt.f32.partialorder %v2228, 0.0
  %vm2429 = vcmp.gt.f32.partialorder %v2229, 0.0
  %vm2430 = vcmp.gt.f32.partialorder %v2230, 0.0
  %vm2431 = vcmp.gt.f32.partialorder %v2231, 0.0
  %vm2432 = vcmp.gt.f32.partialorder %v2232, 0.0
  %vm2433 = vcmp.gt.f32.partialorder %v2233, 0.0
  %vm2434 = vcmp.gt.f32.partialorder %v2234, 0.0
  %vm2435 = vcmp.gt.f32.partialorder %v2235, 0.0
  %vm2436 = vcmp.gt.f32.partialorder %v2236, 0.0
  %vm2437 = vcmp.gt.f32.partialorder %v2237, 0.0
  %vm2438 = vcmp.gt.f32.partialorder %v2238, 0.0
  %vm2439 = vcmp.gt.f32.partialorder %v2239, 0.0
  %vm2440 = vcmp.gt.f32.partialorder %v2240, 0.0
  %vm2441 = vcmp.gt.f32.partialorder %v2241, 0.0
  %vm2442 = vcmp.gt.f32.partialorder %v2242, 0.0
  %vm2443 = vcmp.gt.f32.partialorder %v2243, 0.0
  %vm2444 = vcmp.gt.f32.partialorder %v2244, 0.0
  %vm2445 = vcmp.gt.f32.partialorder %v2245, 0.0
  %vm2446 = vcmp.gt.f32.partialorder %v2246, 0.0
  %vm2447 = vcmp.gt.f32.partialorder %v2247, 0.0
  %vm2448 = vcmp.gt.f32.partialorder %v2248, 0.0
  %vm2449 = vcmp.gt.f32.partialorder %v2249, 0.0
  %vm2450 = vcmp.gt.f32.partialorder %v2250, 0.0
  %vm2451 = vcmp.gt.f32.partialorder %v2251, 0.0
  %vm2452 = vcmp.gt.f32.partialorder %v2252, 0.0
  %vm2453 = vcmp.gt.f32.partialorder %v2253, 0.0
  %vm2454 = vcmp.gt.f32.partialorder %v2254, 0.0
  %vm2455 = vcmp.gt.f32.partialorder %v2255, 0.0
  %vm2456 = vcmp.gt.f32.partialorder %v2256, 0.0
  %vm2457 = vcmp.gt.f32.partialorder %v2257, 0.0
  %vm2458 = vcmp.gt.f32.partialorder %v2258, 0.0
  %vm2459 = vcmp.gt.f32.partialorder %v2259, 0.0
  %vm2460 = vcmp.gt.f32.partialorder %v2260, 0.0
  %vm2461 = vcmp.gt.f32.partialorder %v2261, 0.0
  %vm2462 = vcmp.gt.f32.partialorder %v2262, 0.0
  %vm2463 = vcmp.gt.f32.partialorder %v2263, 0.0
  %vm2464 = vcmp.gt.f32.partialorder %v2264, 0.0
  %vm2465 = vcmp.gt.f32.partialorder %v2265, 0.0
  %vm2466 = vcmp.gt.f32.partialorder %v2266, 0.0
  %vm2467 = vcmp.gt.f32.partialorder %v2267, 0.0
  %vm2468 = vcmp.gt.f32.partialorder %v2268, 0.0
  %vm2469 = vcmp.gt.f32.partialorder %v2269, 0.0
  %vm2470 = vcmp.gt.f32.partialorder %v2270, 0.0
  %vm2471 = vcmp.gt.f32.partialorder %v2271, 0.0
  %vm2472 = vcmp.gt.f32.partialorder %v2272, 0.0
  %vm2473 = vcmp.gt.f32.partialorder %v2273, 0.0
  %vm2474 = vcmp.gt.f32.partialorder %v2274, 0.0
  %vm2475 = vcmp.gt.f32.partialorder %v2275, 0.0
  %vm2476 = vcmp.gt.f32.partialorder %v2276, 0.0
  %vm2477 = vcmp.gt.f32.partialorder %v2277, 0.0
  %vm2478 = vcmp.gt.f32.partialorder %v2278, 0.0
  %vm2479 = vcmp.gt.f32.partialorder %v2279, 0.0
  %vm2480 = vcmp.gt.f32.partialorder %v2280, 0.0
  %vm2481 = vcmp.gt.f32.partialorder %v2281, 0.0
  %vm2482 = vcmp.gt.f32.partialorder %v2282, 0.0
  %vm2483 = vcmp.gt.f32.partialorder %v2283, 0.0
  %vm2484 = vcmp.gt.f32.partialorder %v2284, 0.0
  %vm2485 = vcmp.gt.f32.partialorder %v2285, 0.0
  %vm2486 = vcmp.gt.f32.partialorder %v2286, 0.0
  %vm2487 = vcmp.gt.f32.partialorder %v2287, 0.0
  %vm2488 = vcmp.gt.f32.partialorder %v2288, 0.0
  %vm2489 = vcmp.gt.f32.partialorder %v2289, 0.0
  %vm2490 = vcmp.gt.f32.partialorder %v2290, 0.0
  %vm2491 = vcmp.gt.f32.partialorder %v2291, 0.0
  %vm2492 = vcmp.gt.f32.partialorder %v2292, 0.0
  %vm2493 = vcmp.gt.f32.partialorder %v2293, 0.0
  %vm2494 = vcmp.gt.f32.partialorder %v2294, 0.0
  %vm2495 = vcmp.gt.f32.partialorder %v2295, 0.0
  %vm2496 = vcmp.gt.f32.partialorder %v2296, 0.0
  %vm2497 = vcmp.gt.f32.partialorder %v2297, 0.0
  %vm2498 = vcmp.gt.f32.partialorder %v2298, 0.0
  %vm2499 = vcmp.gt.f32.partialorder %v2299, 0.0
  %vm2500 = vcmp.gt.f32.partialorder %v2300, 0.0
  %vm2501 = vcmp.gt.f32.partialorder %v2301, 0.0
  %vm2502 = vcmp.gt.f32.partialorder %v2302, 0.0
  %v2503 = vmin.f32 %v2103, 0.0
  %v2504 = vmin.f32 %v2104, 0.0
  %v2505 = vmin.f32 %v2105, 0.0
  %v2506 = vmin.f32 %v2106, 0.0
  %v2507 = vmin.f32 %v2107, 0.0
  %v2508 = vmin.f32 %v2108, 0.0
  %v2509 = vmin.f32 %v2109, 0.0
  %v2510 = vmin.f32 %v2110, 0.0
  %v2511 = vmin.f32 %v2111, 0.0
  %v2512 = vmin.f32 %v2112, 0.0
  %v2513 = vmin.f32 %v2113, 0.0
  %v2514 = vmin.f32 %v2114, 0.0
  %v2515 = vmin.f32 %v2115, 0.0
  %v2516 = vmin.f32 %v2116, 0.0
  %v2517 = vmin.f32 %v2117, 0.0
  %v2518 = vmin.f32 %v2118, 0.0
  %v2519 = vmin.f32 %v2119, 0.0
  %v2520 = vmin.f32 %v2120, 0.0
  %v2521 = vmin.f32 %v2121, 0.0
  %v2522 = vmin.f32 %v2122, 0.0
  %v2523 = vmin.f32 %v2123, 0.0
  %v2524 = vmin.f32 %v2124, 0.0
  %v2525 = vmin.f32 %v2125, 0.0
  %v2526 = vmin.f32 %v2126, 0.0
  %v2527 = vmin.f32 %v2127, 0.0
  %v2528 = vmin.f32 %v2128, 0.0
  %v2529 = vmin.f32 %v2129, 0.0
  %v2530 = vmin.f32 %v2130, 0.0
  %v2531 = vmin.f32 %v2131, 0.0
  %v2532 = vmin.f32 %v2132, 0.0
  %v2533 = vmin.f32 %v2133, 0.0
  %v2534 = vmin.f32 %v2134, 0.0
  %v2535 = vmin.f32 %v2135, 0.0
  %v2536 = vmin.f32 %v2136, 0.0
  %v2537 = vmin.f32 %v2137, 0.0
  %v2538 = vmin.f32 %v2138, 0.0
  %v2539 = vmin.f32 %v2139, 0.0
  %v2540 = vmin.f32 %v2140, 0.0
  %v2541 = vmin.f32 %v2141, 0.0
  %v2542 = vmin.f32 %v2142, 0.0
  %v2543 = vmin.f32 %v2143, 0.0
  %v2544 = vmin.f32 %v2144, 0.0
  %v2545 = vmin.f32 %v2145, 0.0
  %v2546 = vmin.f32 %v2146, 0.0
  %v2547 = vmin.f32 %v2147, 0.0
  %v2548 = vmin.f32 %v2148, 0.0
  %v2549 = vmin.f32 %v2149, 0.0
  %v2550 = vmin.f32 %v2150, 0.0
  %v2551 = vmin.f32 %v2151, 0.0
  %v2552 = vmin.f32 %v2152, 0.0
  %v2553 = vmin.f32 %v2153, 0.0
  %v2554 = vmin.f32 %v2154, 0.0
  %v2555 = vmin.f32 %v2155, 0.0
  %v2556 = vmin.f32 %v2156, 0.0
  %v2557 = vmin.f32 %v2157, 0.0
  %v2558 = vmin.f32 %v2158, 0.0
  %v2559 = vmin.f32 %v2159, 0.0
  %v2560 = vmin.f32 %v2160, 0.0
  %v2561 = vmin.f32 %v2161, 0.0
  %v2562 = vmin.f32 %v2162, 0.0
  %v2563 = vmin.f32 %v2163, 0.0
  %v2564 = vmin.f32 %v2164, 0.0
  %v2565 = vmin.f32 %v2165, 0.0
  %v2566 = vmin.f32 %v2166, 0.0
  %v2567 = vmin.f32 %v2167, 0.0
  %v2568 = vmin.f32 %v2168, 0.0
  %v2569 = vmin.f32 %v2169, 0.0
  %v2570 = vmin.f32 %v2170, 0.0
  %v2571 = vmin.f32 %v2171, 0.0
  %v2572 = vmin.f32 %v2172, 0.0
  %v2573 = vmin.f32 %v2173, 0.0
  %v2574 = vmin.f32 %v2174, 0.0
  %v2575 = vmin.f32 %v2175, 0.0
  %v2576 = vmin.f32 %v2176, 0.0
  %v2577 = vmin.f32 %v2177, 0.0
  %v2578 = vmin.f32 %v2178, 0.0
  %v2579 = vmin.f32 %v2179, 0.0
  %v2580 = vmin.f32 %v2180, 0.0
  %v2581 = vmin.f32 %v2181, 0.0
  %v2582 = vmin.f32 %v2182, 0.0
  %v2583 = vmin.f32 %v2183, 0.0
  %v2584 = vmin.f32 %v2184, 0.0
  %v2585 = vmin.f32 %v2185, 0.0
  %v2586 = vmin.f32 %v2186, 0.0
  %v2587 = vmin.f32 %v2187, 0.0
  %v2588 = vmin.f32 %v2188, 0.0
  %v2589 = vmin.f32 %v2189, 0.0
  %v2590 = vmin.f32 %v2190, 0.0
  %v2591 = vmin.f32 %v2191, 0.0
  %v2592 = vmin.f32 %v2192, 0.0
  %v2593 = vmin.f32 %v2193, 0.0
  %v2594 = vmin.f32 %v2194, 0.0
  %v2595 = vmin.f32 %v2195, 0.0
  %v2596 = vmin.f32 %v2196, 0.0
  %v2597 = vmin.f32 %v2197, 0.0
  %v2598 = vmin.f32 %v2198, 0.0
  %v2599 = vmin.f32 %v2199, 0.0
  %v2600 = vmin.f32 %v2200, 0.0
  %v2601 = vmin.f32 %v2201, 0.0
  %v2602 = vmin.f32 %v2202, 0.0
  %v2603 = vmin.f32 %v2203, 0.0
  %v2604 = vmin.f32 %v2204, 0.0
  %v2605 = vmin.f32 %v2205, 0.0
  %v2606 = vmin.f32 %v2206, 0.0
  %v2607 = vmin.f32 %v2207, 0.0
  %v2608 = vmin.f32 %v2208, 0.0
  %v2609 = vmin.f32 %v2209, 0.0
  %v2610 = vmin.f32 %v2210, 0.0
  %v2611 = vmin.f32 %v2211, 0.0
  %v2612 = vmin.f32 %v2212, 0.0
  %v2613 = vmin.f32 %v2213, 0.0
  %v2614 = vmin.f32 %v2214, 0.0
  %v2615 = vmin.f32 %v2215, 0.0
  %v2616 = vmin.f32 %v2216, 0.0
  %v2617 = vmin.f32 %v2217, 0.0
  %v2618 = vmin.f32 %v2218, 0.0
  %v2619 = vmin.f32 %v2219, 0.0
  %v2620 = vmin.f32 %v2220, 0.0
  %v2621 = vmin.f32 %v2221, 0.0
  %v2622 = vmin.f32 %v2222, 0.0
  %v2623 = vmin.f32 %v2223, 0.0
  %v2624 = vmin.f32 %v2224, 0.0
  %v2625 = vmin.f32 %v2225, 0.0
  %v2626 = vmin.f32 %v2226, 0.0
  %v2627 = vmin.f32 %v2227, 0.0
  %v2628 = vmin.f32 %v2228, 0.0
  %v2629 = vmin.f32 %v2229, 0.0
  %v2630 = vmin.f32 %v2230, 0.0
  %v2631 = vmin.f32 %v2231, 0.0
  %v2632 = vmin.f32 %v2232, 0.0
  %v2633 = vmin.f32 %v2233, 0.0
  %v2634 = vmin.f32 %v2234, 0.0
  %v2635 = vmin.f32 %v2235, 0.0
  %v2636 = vmin.f32 %v2236, 0.0
  %v2637 = vmin.f32 %v2237, 0.0
  %v2638 = vmin.f32 %v2238, 0.0
  %v2639 = vmin.f32 %v2239, 0.0
  %v2640 = vmin.f32 %v2240, 0.0
  %v2641 = vmin.f32 %v2241, 0.0
  %v2642 = vmin.f32 %v2242, 0.0
  %v2643 = vmin.f32 %v2243, 0.0
  %v2644 = vmin.f32 %v2244, 0.0
  %v2645 = vmin.f32 %v2245, 0.0
  %v2646 = vmin.f32 %v2246, 0.0
  %v2647 = vmin.f32 %v2247, 0.0
  %v2648 = vmin.f32 %v2248, 0.0
  %v2649 = vmin.f32 %v2249, 0.0
  %v2650 = vmin.f32 %v2250, 0.0
  %v2651 = vmin.f32 %v2251, 0.0
  %v2652 = vmin.f32 %v2252, 0.0
  %v2653 = vmin.f32 %v2253, 0.0
  %v2654 = vmin.f32 %v2254, 0.0
  %v2655 = vmin.f32 %v2255, 0.0
  %v2656 = vmin.f32 %v2256, 0.0
  %v2657 = vmin.f32 %v2257, 0.0
  %v2658 = vmin.f32 %v2258, 0.0
  %v2659 = vmin.f32 %v2259, 0.0
  %v2660 = vmin.f32 %v2260, 0.0
  %v2661 = vmin.f32 %v2261, 0.0
  %v2662 = vmin.f32 %v2262, 0.0
  %v2663 = vmin.f32 %v2263, 0.0
  %v2664 = vmin.f32 %v2264, 0.0
  %v2665 = vmin.f32 %v2265, 0.0
  %v2666 = vmin.f32 %v2266, 0.0
  %v2667 = vmin.f32 %v2267, 0.0
  %v2668 = vmin.f32 %v2268, 0.0
  %v2669 = vmin.f32 %v2269, 0.0
  %v2670 = vmin.f32 %v2270, 0.0
  %v2671 = vmin.f32 %v2271, 0.0
  %v2672 = vmin.f32 %v2272, 0.0
  %v2673 = vmin.f32 %v2273, 0.0
  %v2674 = vmin.f32 %v2274, 0.0
  %v2675 = vmin.f32 %v2275, 0.0
  %v2676 = vmin.f32 %v2276, 0.0
  %v2677 = vmin.f32 %v2277, 0.0
  %v2678 = vmin.f32 %v2278, 0.0
  %v2679 = vmin.f32 %v2279, 0.0
  %v2680 = vmin.f32 %v2280, 0.0
  %v2681 = vmin.f32 %v2281, 0.0
  %v2682 = vmin.f32 %v2282, 0.0
  %v2683 = vmin.f32 %v2283, 0.0
  %v2684 = vmin.f32 %v2284, 0.0
  %v2685 = vmin.f32 %v2285, 0.0
  %v2686 = vmin.f32 %v2286, 0.0
  %v2687 = vmin.f32 %v2287, 0.0
  %v2688 = vmin.f32 %v2288, 0.0
  %v2689 = vmin.f32 %v2289, 0.0
  %v2690 = vmin.f32 %v2290, 0.0
  %v2691 = vmin.f32 %v2291, 0.0
  %v2692 = vmin.f32 %v2292, 0.0
  %v2693 = vmin.f32 %v2293, 0.0
  %v2694 = vmin.f32 %v2294, 0.0
  %v2695 = vmin.f32 %v2295, 0.0
  %v2696 = vmin.f32 %v2296, 0.0
  %v2697 = vmin.f32 %v2297, 0.0
  %v2698 = vmin.f32 %v2298, 0.0
  %v2699 = vmin.f32 %v2299, 0.0
  %v2700 = vmin.f32 %v2300, 0.0
  %v2701 = vmin.f32 %v2301, 0.0
  %v2702 = vmin.f32 %v2302, 0.0
  %v2703 = vmul.f32 %v2503, 1.442695
  %v2704 = vpow.pop %v2703
  %v2705 = vmul.f32 %v2504, 1.442695
  %v2706 = vpow.pop %v2705
  %v2707 = vmul.f32 %v2505, 1.442695
  %v2708 = vpow.pop %v2707
  %v2709 = vmul.f32 %v2506, 1.442695
  %v2710 = vpow.pop %v2709
  %v2711 = vmul.f32 %v2507, 1.442695
  %v2712 = vpow.pop %v2711
  %v2713 = vmul.f32 %v2508, 1.442695
  %v2714 = vpow.pop %v2713
  %v2715 = vmul.f32 %v2509, 1.442695
  %v2716 = vpow.pop %v2715
  %v2717 = vmul.f32 %v2510, 1.442695
  %v2718 = vpow.pop %v2717
  %v2719 = vmul.f32 %v2511, 1.442695
  %v2720 = vpow.pop %v2719
  %v2721 = vmul.f32 %v2512, 1.442695
  %v2722 = vpow.pop %v2721
  %v2723 = vmul.f32 %v2513, 1.442695
  %v2724 = vpow.pop %v2723
  %v2725 = vmul.f32 %v2514, 1.442695
  %v2726 = vpow.pop %v2725
  %v2727 = vmul.f32 %v2515, 1.442695
  %v2728 = vpow.pop %v2727
  %v2729 = vmul.f32 %v2516, 1.442695
  %v2730 = vpow.pop %v2729
  %v2731 = vmul.f32 %v2517, 1.442695
  %v2732 = vpow.pop %v2731
  %v2733 = vmul.f32 %v2518, 1.442695
  %v2734 = vpow.pop %v2733
  %v2735 = vmul.f32 %v2519, 1.442695
  %v2736 = vpow.pop %v2735
  %v2737 = vmul.f32 %v2520, 1.442695
  %v2738 = vpow.pop %v2737
  %v2739 = vmul.f32 %v2521, 1.442695
  %v2740 = vpow.pop %v2739
  %v2741 = vmul.f32 %v2522, 1.442695
  %v2742 = vpow.pop %v2741
  %v2743 = vmul.f32 %v2523, 1.442695
  %v2744 = vpow.pop %v2743
  %v2745 = vmul.f32 %v2524, 1.442695
  %v2746 = vpow.pop %v2745
  %v2747 = vmul.f32 %v2525, 1.442695
  %v2748 = vpow.pop %v2747
  %v2749 = vmul.f32 %v2526, 1.442695
  %v2750 = vpow.pop %v2749
  %v2751 = vmul.f32 %v2527, 1.442695
  %v2752 = vpow.pop %v2751
  %v2753 = vmul.f32 %v2528, 1.442695
  %v2754 = vpow.pop %v2753
  %v2755 = vmul.f32 %v2529, 1.442695
  %v2756 = vpow.pop %v2755
  %v2757 = vmul.f32 %v2530, 1.442695
  %v2758 = vpow.pop %v2757
  %v2759 = vmul.f32 %v2531, 1.442695
  %v2760 = vpow.pop %v2759
  %v2761 = vmul.f32 %v2532, 1.442695
  %v2762 = vpow.pop %v2761
  %v2763 = vmul.f32 %v2533, 1.442695
  %v2764 = vpow.pop %v2763
  %v2765 = vmul.f32 %v2534, 1.442695
  %v2766 = vpow.pop %v2765
  %v2767 = vmul.f32 %v2535, 1.442695
  %v2768 = vpow.pop %v2767
  %v2769 = vmul.f32 %v2536, 1.442695
  %v2770 = vpow.pop %v2769
  %v2771 = vmul.f32 %v2537, 1.442695
  %v2772 = vpow.pop %v2771
  %v2773 = vmul.f32 %v2538, 1.442695
  %v2774 = vpow.pop %v2773
  %v2775 = vmul.f32 %v2539, 1.442695
  %v2776 = vpow.pop %v2775
  %v2777 = vmul.f32 %v2540, 1.442695
  %v2778 = vpow.pop %v2777
  %v2779 = vmul.f32 %v2541, 1.442695
  %v2780 = vpow.pop %v2779
  %v2781 = vmul.f32 %v2542, 1.442695
  %v2782 = vpow.pop %v2781
  %v2783 = vmul.f32 %v2543, 1.442695
  %v2784 = vpow.pop %v2783
  %v2785 = vmul.f32 %v2544, 1.442695
  %v2786 = vpow.pop %v2785
  %v2787 = vmul.f32 %v2545, 1.442695
  %v2788 = vpow.pop %v2787
  %v2789 = vmul.f32 %v2546, 1.442695
  %v2790 = vpow.pop %v2789
  %v2791 = vmul.f32 %v2547, 1.442695
  %v2792 = vpow.pop %v2791
  %v2793 = vmul.f32 %v2548, 1.442695
  %v2794 = vpow.pop %v2793
  %v2795 = vmul.f32 %v2549, 1.442695
  %v2796 = vpow.pop %v2795
  %v2797 = vmul.f32 %v2550, 1.442695
  %v2798 = vpow.pop %v2797
  %v2799 = vmul.f32 %v2551, 1.442695
  %v2800 = vpow.pop %v2799
  %v2801 = vmul.f32 %v2552, 1.442695
  %v2802 = vpow.pop %v2801
  %v2803 = vmul.f32 %v2553, 1.442695
  %v2804 = vpow.pop %v2803
  %v2805 = vmul.f32 %v2554, 1.442695
  %v2806 = vpow.pop %v2805
  %v2807 = vmul.f32 %v2555, 1.442695
  %v2808 = vpow.pop %v2807
  %v2809 = vmul.f32 %v2556, 1.442695
  %v2810 = vpow.pop %v2809
  %v2811 = vmul.f32 %v2557, 1.442695
  %v2812 = vpow.pop %v2811
  %v2813 = vmul.f32 %v2558, 1.442695
  %v2814 = vpow.pop %v2813
  %v2815 = vmul.f32 %v2559, 1.442695
  %v2816 = vpow.pop %v2815
  %v2817 = vmul.f32 %v2560, 1.442695
  %v2818 = vpow.pop %v2817
  %v2819 = vmul.f32 %v2561, 1.442695
  %v2820 = vpow.pop %v2819
  %v2821 = vmul.f32 %v2562, 1.442695
  %v2822 = vpow.pop %v2821
  %v2823 = vmul.f32 %v2563, 1.442695
  %v2824 = vpow.pop %v2823
  %v2825 = vmul.f32 %v2564, 1.442695
  %v2826 = vpow.pop %v2825
  %v2827 = vmul.f32 %v2565, 1.442695
  %v2828 = vpow.pop %v2827
  %v2829 = vmul.f32 %v2566, 1.442695
  %v2830 = vpow.pop %v2829
  %v2831 = vmul.f32 %v2567, 1.442695
  %v2832 = vpow.pop %v2831
  %v2833 = vmul.f32 %v2568, 1.442695
  %v2834 = vpow.pop %v2833
  %v2835 = vmul.f32 %v2569, 1.442695
  %v2836 = vpow.pop %v2835
  %v2837 = vmul.f32 %v2570, 1.442695
  %v2838 = vpow.pop %v2837
  %v2839 = vmul.f32 %v2571, 1.442695
  %v2840 = vpow.pop %v2839
  %v2841 = vmul.f32 %v2572, 1.442695
  %v2842 = vpow.pop %v2841
  %v2843 = vmul.f32 %v2573, 1.442695
  %v2844 = vpow.pop %v2843
  %v2845 = vmul.f32 %v2574, 1.442695
  %v2846 = vpow.pop %v2845
  %v2847 = vmul.f32 %v2575, 1.442695
  %v2848 = vpow.pop %v2847
  %v2849 = vmul.f32 %v2576, 1.442695
  %v2850 = vpow.pop %v2849
  %v2851 = vmul.f32 %v2577, 1.442695
  %v2852 = vpow.pop %v2851
  %v2853 = vmul.f32 %v2578, 1.442695
  %v2854 = vpow.pop %v2853
  %v2855 = vmul.f32 %v2579, 1.442695
  %v2856 = vpow.pop %v2855
  %v2857 = vmul.f32 %v2580, 1.442695
  %v2858 = vpow.pop %v2857
  %v2859 = vmul.f32 %v2581, 1.442695
  %v2860 = vpow.pop %v2859
  %v2861 = vmul.f32 %v2582, 1.442695
  %v2862 = vpow.pop %v2861
  %v2863 = vmul.f32 %v2583, 1.442695
  %v2864 = vpow.pop %v2863
  %v2865 = vmul.f32 %v2584, 1.442695
  %v2866 = vpow.pop %v2865
  %v2867 = vmul.f32 %v2585, 1.442695
  %v2868 = vpow.pop %v2867
  %v2869 = vmul.f32 %v2586, 1.442695
  %v2870 = vpow.pop %v2869
  %v2871 = vmul.f32 %v2587, 1.442695
  %v2872 = vpow.pop %v2871
  %v2873 = vmul.f32 %v2588, 1.442695
  %v2874 = vpow.pop %v2873
  %v2875 = vmul.f32 %v2589, 1.442695
  %v2876 = vpow.pop %v2875
  %v2877 = vmul.f32 %v2590, 1.442695
  %v2878 = vpow.pop %v2877
  %v2879 = vmul.f32 %v2591, 1.442695
  %v2880 = vpow.pop %v2879
  %v2881 = vmul.f32 %v2592, 1.442695
  %v2882 = vpow.pop %v2881
  %v2883 = vmul.f32 %v2593, 1.442695
  %v2884 = vpow.pop %v2883
  %v2885 = vmul.f32 %v2594, 1.442695
  %v2886 = vpow.pop %v2885
  %v2887 = vmul.f32 %v2595, 1.442695
  %v2888 = vpow.pop %v2887
  %v2889 = vmul.f32 %v2596, 1.442695
  %v2890 = vpow.pop %v2889
  %v2891 = vmul.f32 %v2597, 1.442695
  %v2892 = vpow.pop %v2891
  %v2893 = vmul.f32 %v2598, 1.442695
  %v2894 = vpow.pop %v2893
  %v2895 = vmul.f32 %v2599, 1.442695
  %v2896 = vpow.pop %v2895
  %v2897 = vmul.f32 %v2600, 1.442695
  %v2898 = vpow.pop %v2897
  %v2899 = vmul.f32 %v2601, 1.442695
  %v2900 = vpow.pop %v2899
  %v2901 = vmul.f32 %v2602, 1.442695
  %v2902 = vpow.pop %v2901
  %v2903 = vmul.f32 %v2603, 1.442695
  %v2904 = vpow.pop %v2903
  %v2905 = vmul.f32 %v2604, 1.442695
  %v2906 = vpow.pop %v2905
  %v2907 = vmul.f32 %v2605, 1.442695
  %v2908 = vpow.pop %v2907
  %v2909 = vmul.f32 %v2606, 1.442695
  %v2910 = vpow.pop %v2909
  %v2911 = vmul.f32 %v2607, 1.442695
  %v2912 = vpow.pop %v2911
  %v2913 = vmul.f32 %v2608, 1.442695
  %v2914 = vpow.pop %v2913
  %v2915 = vmul.f32 %v2609, 1.442695
  %v2916 = vpow.pop %v2915
  %v2917 = vmul.f32 %v2610, 1.442695
  %v2918 = vpow.pop %v2917
  %v2919 = vmul.f32 %v2611, 1.442695
  %v2920 = vpow.pop %v2919
  %v2921 = vmul.f32 %v2612, 1.442695
  %v2922 = vpow.pop %v2921
  %v2923 = vmul.f32 %v2613, 1.442695
  %v2924 = vpow.pop %v2923
  %v2925 = vmul.f32 %v2614, 1.442695
  %v2926 = vpow.pop %v2925
  %v2927 = vmul.f32 %v2615, 1.442695
  %v2928 = vpow.pop %v2927
  %v2929 = vmul.f32 %v2616, 1.442695
  %v2930 = vpow.pop %v2929
  %v2931 = vmul.f32 %v2617, 1.442695
  %v2932 = vpow.pop %v2931
  %v2933 = vmul.f32 %v2618, 1.442695
  %v2934 = vpow.pop %v2933
  %v2935 = vmul.f32 %v2619, 1.442695
  %v2936 = vpow.pop %v2935
  %v2937 = vmul.f32 %v2620, 1.442695
  %v2938 = vpow.pop %v2937
  %v2939 = vmul.f32 %v2621, 1.442695
  %v2940 = vpow.pop %v2939
  %v2941 = vmul.f32 %v2622, 1.442695
  %v2942 = vpow.pop %v2941
  %v2943 = vmul.f32 %v2623, 1.442695
  %v2944 = vpow.pop %v2943
  %v2945 = vmul.f32 %v2624, 1.442695
  %v2946 = vpow.pop %v2945
  %v2947 = vmul.f32 %v2625, 1.442695
  %v2948 = vpow.pop %v2947
  %v2949 = vmul.f32 %v2626, 1.442695
  %v2950 = vpow.pop %v2949
  %v2951 = vmul.f32 %v2627, 1.442695
  %v2952 = vpow.pop %v2951
  %v2953 = vmul.f32 %v2628, 1.442695
  %v2954 = vpow.pop %v2953
  %v2955 = vmul.f32 %v2629, 1.442695
  %v2956 = vpow.pop %v2955
  %v2957 = vmul.f32 %v2630, 1.442695
  %v2958 = vpow.pop %v2957
  %v2959 = vmul.f32 %v2631, 1.442695
  %v2960 = vpow.pop %v2959
  %v2961 = vmul.f32 %v2632, 1.442695
  %v2962 = vpow.pop %v2961
  %v2963 = vmul.f32 %v2633, 1.442695
  %v2964 = vpow.pop %v2963
  %v2965 = vmul.f32 %v2634, 1.442695
  %v2966 = vpow.pop %v2965
  %v2967 = vmul.f32 %v2635, 1.442695
  %v2968 = vpow.pop %v2967
  %v2969 = vmul.f32 %v2636, 1.442695
  %v2970 = vpow.pop %v2969
  %v2971 = vmul.f32 %v2637, 1.442695
  %v2972 = vpow.pop %v2971
  %v2973 = vmul.f32 %v2638, 1.442695
  %v2974 = vpow.pop %v2973
  %v2975 = vmul.f32 %v2639, 1.442695
  %v2976 = vpow.pop %v2975
  %v2977 = vmul.f32 %v2640, 1.442695
  %v2978 = vpow.pop %v2977
  %v2979 = vmul.f32 %v2641, 1.442695
  %v2980 = vpow.pop %v2979
  %v2981 = vmul.f32 %v2642, 1.442695
  %v2982 = vpow.pop %v2981
  %v2983 = vmul.f32 %v2643, 1.442695
  %v2984 = vpow.pop %v2983
  %v2985 = vmul.f32 %v2644, 1.442695
  %v2986 = vpow.pop %v2985
  %v2987 = vmul.f32 %v2645, 1.442695
  %v2988 = vpow.pop %v2987
  %v2989 = vmul.f32 %v2646, 1.442695
  %v2990 = vpow.pop %v2989
  %v2991 = vmul.f32 %v2647, 1.442695
  %v2992 = vpow.pop %v2991
  %v2993 = vmul.f32 %v2648, 1.442695
  %v2994 = vpow.pop %v2993
  %v2995 = vmul.f32 %v2649, 1.442695
  %v2996 = vpow.pop %v2995
  %v2997 = vmul.f32 %v2650, 1.442695
  %v2998 = vpow.pop %v2997
  %v2999 = vmul.f32 %v2651, 1.442695
  %v3000 = vpow.pop %v2999
  %v3001 = vmul.f32 %v2652, 1.442695
  %v3002 = vpow.pop %v3001
  %v3003 = vmul.f32 %v2653, 1.442695
  %v3004 = vpow.pop %v3003
  %v3005 = vmul.f32 %v2654, 1.442695
  %v3006 = vpow.pop %v3005
  %v3007 = vmul.f32 %v2655, 1.442695
  %v3008 = vpow.pop %v3007
  %v3009 = vmul.f32 %v2656, 1.442695
  %v3010 = vpow.pop %v3009
  %v3011 = vmul.f32 %v2657, 1.442695
  %v3012 = vpow.pop %v3011
  %v3013 = vmul.f32 %v2658, 1.442695
  %v3014 = vpow.pop %v3013
  %v3015 = vmul.f32 %v2659, 1.442695
  %v3016 = vpow.pop %v3015
  %v3017 = vmul.f32 %v2660, 1.442695
  %v3018 = vpow.pop %v3017
  %v3019 = vmul.f32 %v2661, 1.442695
  %v3020 = vpow.pop %v3019
  %v3021 = vmul.f32 %v2662, 1.442695
  %v3022 = vpow.pop %v3021
  %v3023 = vmul.f32 %v2663, 1.442695
  %v3024 = vpow.pop %v3023
  %v3025 = vmul.f32 %v2664, 1.442695
  %v3026 = vpow.pop %v3025
  %v3027 = vmul.f32 %v2665, 1.442695
  %v3028 = vpow.pop %v3027
  %v3029 = vmul.f32 %v2666, 1.442695
  %v3030 = vpow.pop %v3029
  %v3031 = vmul.f32 %v2667, 1.442695
  %v3032 = vpow.pop %v3031
  %v3033 = vmul.f32 %v2668, 1.442695
  %v3034 = vpow.pop %v3033
  %v3035 = vmul.f32 %v2669, 1.442695
  %v3036 = vpow.pop %v3035
  %v3037 = vmul.f32 %v2670, 1.442695
  %v3038 = vpow.pop %v3037
  %v3039 = vmul.f32 %v2671, 1.442695
  %v3040 = vpow.pop %v3039
  %v3041 = vmul.f32 %v2672, 1.442695
  %v3042 = vpow.pop %v3041
  %v3043 = vmul.f32 %v2673, 1.442695
  %v3044 = vpow.pop %v3043
  %v3045 = vmul.f32 %v2674, 1.442695
  %v3046 = vpow.pop %v3045
  %v3047 = vmul.f32 %v2675, 1.442695
  %v3048 = vpow.pop %v3047
  %v3049 = vmul.f32 %v2676, 1.442695
  %v3050 = vpow.pop %v3049
  %v3051 = vmul.f32 %v2677, 1.442695
  %v3052 = vpow.pop %v3051
  %v3053 = vmul.f32 %v2678, 1.442695
  %v3054 = vpow.pop %v3053
  %v3055 = vmul.f32 %v2679, 1.442695
  %v3056 = vpow.pop %v3055
  %v3057 = vmul.f32 %v2680, 1.442695
  %v3058 = vpow.pop %v3057
  %v3059 = vmul.f32 %v2681, 1.442695
  %v3060 = vpow.pop %v3059
  %v3061 = vmul.f32 %v2682, 1.442695
  %v3062 = vpow.pop %v3061
  %v3063 = vmul.f32 %v2683, 1.442695
  %v3064 = vpow.pop %v3063
  %v3065 = vmul.f32 %v2684, 1.442695
  %v3066 = vpow.pop %v3065
  %v3067 = vmul.f32 %v2685, 1.442695
  %v3068 = vpow.pop %v3067
  %v3069 = vmul.f32 %v2686, 1.442695
  %v3070 = vpow.pop %v3069
  %v3071 = vmul.f32 %v2687, 1.442695
  %v3072 = vpow.pop %v3071
  %v3073 = vmul.f32 %v2688, 1.442695
  %v3074 = vpow.pop %v3073
  %v3075 = vmul.f32 %v2689, 1.442695
  %v3076 = vpow.pop %v3075
  %v3077 = vmul.f32 %v2690, 1.442695
  %v3078 = vpow.pop %v3077
  %v3079 = vmul.f32 %v2691, 1.442695
  %v3080 = vpow.pop %v3079
  %v3081 = vmul.f32 %v2692, 1.442695
  %v3082 = vpow.pop %v3081
  %v3083 = vmul.f32 %v2693, 1.442695
  %v3084 = vpow.pop %v3083
  %v3085 = vmul.f32 %v2694, 1.442695
  %v3086 = vpow.pop %v3085
  %v3087 = vmul.f32 %v2695, 1.442695
  %v3088 = vpow.pop %v3087
  %v3089 = vmul.f32 %v2696, 1.442695
  %v3090 = vpow.pop %v3089
  %v3091 = vmul.f32 %v2697, 1.442695
  %v3092 = vpow.pop %v3091
  %v3093 = vmul.f32 %v2698, 1.442695
  %v3094 = vpow.pop %v3093
  %v3095 = vmul.f32 %v2699, 1.442695
  %v3096 = vpow.pop %v3095
  %v3097 = vmul.f32 %v2700, 1.442695
  %v3098 = vpow.pop %v3097
  %v3099 = vmul.f32 %v2701, 1.442695
  %v3100 = vpow.pop %v3099
  %v3101 = vmul.f32 %v2702, 1.442695
  %v3102 = vpow.pop %v3101
  %v3103 = vsub.f32 %v2704, 1.0
  %v3104 = vsub.f32 %v2706, 1.0
  %v3105 = vsub.f32 %v2708, 1.0
  %v3106 = vsub.f32 %v2710, 1.0
  %v3107 = vsub.f32 %v2712, 1.0
  %v3108 = vsub.f32 %v2714, 1.0
  %v3109 = vsub.f32 %v2716, 1.0
  %v3110 = vsub.f32 %v2718, 1.0
  %v3111 = vsub.f32 %v2720, 1.0
  %v3112 = vsub.f32 %v2722, 1.0
  %v3113 = vsub.f32 %v2724, 1.0
  %v3114 = vsub.f32 %v2726, 1.0
  %v3115 = vsub.f32 %v2728, 1.0
  %v3116 = vsub.f32 %v2730, 1.0
  %v3117 = vsub.f32 %v2732, 1.0
  %v3118 = vsub.f32 %v2734, 1.0
  %v3119 = vsub.f32 %v2736, 1.0
  %v3120 = vsub.f32 %v2738, 1.0
  %v3121 = vsub.f32 %v2740, 1.0
  %v3122 = vsub.f32 %v2742, 1.0
  %v3123 = vsub.f32 %v2744, 1.0
  %v3124 = vsub.f32 %v2746, 1.0
  %v3125 = vsub.f32 %v2748, 1.0
  %v3126 = vsub.f32 %v2750, 1.0
  %v3127 = vsub.f32 %v2752, 1.0
  %v3128 = vsub.f32 %v2754, 1.0
  %v3129 = vsub.f32 %v2756, 1.0
  %v3130 = vsub.f32 %v2758, 1.0
  %v3131 = vsub.f32 %v2760, 1.0
  %v3132 = vsub.f32 %v2762, 1.0
  %v3133 = vsub.f32 %v2764, 1.0
  %v3134 = vsub.f32 %v2766, 1.0
  %v3135 = vsub.f32 %v2768, 1.0
  %v3136 = vsub.f32 %v2770, 1.0
  %v3137 = vsub.f32 %v2772, 1.0
  %v3138 = vsub.f32 %v2774, 1.0
  %v3139 = vsub.f32 %v2776, 1.0
  %v3140 = vsub.f32 %v2778, 1.0
  %v3141 = vsub.f32 %v2780, 1.0
  %v3142 = vsub.f32 %v2782, 1.0
  %v3143 = vsub.f32 %v2784, 1.0
  %v3144 = vsub.f32 %v2786, 1.0
  %v3145 = vsub.f32 %v2788, 1.0
  %v3146 = vsub.f32 %v2790, 1.0
  %v3147 = vsub.f32 %v2792, 1.0
  %v3148 = vsub.f32 %v2794, 1.0
  %v3149 = vsub.f32 %v2796, 1.0
  %v3150 = vsub.f32 %v2798, 1.0
  %v3151 = vsub.f32 %v2800, 1.0
  %v3152 = vsub.f32 %v2802, 1.0
  %v3153 = vsub.f32 %v2804, 1.0
  %v3154 = vsub.f32 %v2806, 1.0
  %v3155 = vsub.f32 %v2808, 1.0
  %v3156 = vsub.f32 %v2810, 1.0
  %v3157 = vsub.f32 %v2812, 1.0
  %v3158 = vsub.f32 %v2814, 1.0
  %v3159 = vsub.f32 %v2816, 1.0
  %v3160 = vsub.f32 %v2818, 1.0
  %v3161 = vsub.f32 %v2820, 1.0
  %v3162 = vsub.f32 %v2822, 1.0
  %v3163 = vsub.f32 %v2824, 1.0
  %v3164 = vsub.f32 %v2826, 1.0
  %v3165 = vsub.f32 %v2828, 1.0
  %v3166 = vsub.f32 %v2830, 1.0
  %v3167 = vsub.f32 %v2832, 1.0
  %v3168 = vsub.f32 %v2834, 1.0
  %v3169 = vsub.f32 %v2836, 1.0
  %v3170 = vsub.f32 %v2838, 1.0
  %v3171 = vsub.f32 %v2840, 1.0
  %v3172 = vsub.f32 %v2842, 1.0
  %v3173 = vsub.f32 %v2844, 1.0
  %v3174 = vsub.f32 %v2846, 1.0
  %v3175 = vsub.f32 %v2848, 1.0
  %v3176 = vsub.f32 %v2850, 1.0
  %v3177 = vsub.f32 %v2852, 1.0
  %v3178 = vsub.f32 %v2854, 1.0
  %v3179 = vsub.f32 %v2856, 1.0
  %v3180 = vsub.f32 %v2858, 1.0
  %v3181 = vsub.f32 %v2860, 1.0
  %v3182 = vsub.f32 %v2862, 1.0
  %v3183 = vsub.f32 %v2864, 1.0
  %v3184 = vsub.f32 %v2866, 1.0
  %v3185 = vsub.f32 %v2868, 1.0
  %v3186 = vsub.f32 %v2870, 1.0
  %v3187 = vsub.f32 %v2872, 1.0
  %v3188 = vsub.f32 %v2874, 1.0
  %v3189 = vsub.f32 %v2876, 1.0
  %v3190 = vsub.f32 %v2878, 1.0
  %v3191 = vsub.f32 %v2880, 1.0
  %v3192 = vsub.f32 %v2882, 1.0
  %v3193 = vsub.f32 %v2884, 1.0
  %v3194 = vsub.f32 %v2886, 1.0
  %v3195 = vsub.f32 %v2888, 1.0
  %v3196 = vsub.f32 %v2890, 1.0
  %v3197 = vsub.f32 %v2892, 1.0
  %v3198 = vsub.f32 %v2894, 1.0
  %v3199 = vsub.f32 %v2896, 1.0
  %v3200 = vsub.f32 %v2898, 1.0
  %v3201 = vsub.f32 %v2900, 1.0
  %v3202 = vsub.f32 %v2902, 1.0
  %v3203 = vsub.f32 %v2904, 1.0
  %v3204 = vsub.f32 %v2906, 1.0
  %v3205 = vsub.f32 %v2908, 1.0
  %v3206 = vsub.f32 %v2910, 1.0
  %v3207 = vsub.f32 %v2912, 1.0
  %v3208 = vsub.f32 %v2914, 1.0
  %v3209 = vsub.f32 %v2916, 1.0
  %v3210 = vsub.f32 %v2918, 1.0
  %v3211 = vsub.f32 %v2920, 1.0
  %v3212 = vsub.f32 %v2922, 1.0
  %v3213 = vsub.f32 %v2924, 1.0
  %v3214 = vsub.f32 %v2926, 1.0
  %v3215 = vsub.f32 %v2928, 1.0
  %v3216 = vsub.f32 %v2930, 1.0
  %v3217 = vsub.f32 %v2932, 1.0
  %v3218 = vsub.f32 %v2934, 1.0
  %v3219 = vsub.f32 %v2936, 1.0
  %v3220 = vsub.f32 %v2938, 1.0
  %v3221 = vsub.f32 %v2940, 1.0
  %v3222 = vsub.f32 %v2942, 1.0
  %v3223 = vsub.f32 %v2944, 1.0
  %v3224 = vsub.f32 %v2946, 1.0
  %v3225 = vsub.f32 %v2948, 1.0
  %v3226 = vsub.f32 %v2950, 1.0
  %v3227 = vsub.f32 %v2952, 1.0
  %v3228 = vsub.f32 %v2954, 1.0
  %v3229 = vsub.f32 %v2956, 1.0
  %v3230 = vsub.f32 %v2958, 1.0
  %v3231 = vsub.f32 %v2960, 1.0
  %v3232 = vsub.f32 %v2962, 1.0
  %v3233 = vsub.f32 %v2964, 1.0
  %v3234 = vsub.f32 %v2966, 1.0
  %v3235 = vsub.f32 %v2968, 1.0
  %v3236 = vsub.f32 %v2970, 1.0
  %v3237 = vsub.f32 %v2972, 1.0
  %v3238 = vsub.f32 %v2974, 1.0
  %v3239 = vsub.f32 %v2976, 1.0
  %v3240 = vsub.f32 %v2978, 1.0
  %v3241 = vsub.f32 %v2980, 1.0
  %v3242 = vsub.f32 %v2982, 1.0
  %v3243 = vsub.f32 %v2984, 1.0
  %v3244 = vsub.f32 %v2986, 1.0
  %v3245 = vsub.f32 %v2988, 1.0
  %v3246 = vsub.f32 %v2990, 1.0
  %v3247 = vsub.f32 %v2992, 1.0
  %v3248 = vsub.f32 %v2994, 1.0
  %v3249 = vsub.f32 %v2996, 1.0
  %v3250 = vsub.f32 %v2998, 1.0
  %v3251 = vsub.f32 %v3000, 1.0
  %v3252 = vsub.f32 %v3002, 1.0
  %v3253 = vsub.f32 %v3004, 1.0
  %v3254 = vsub.f32 %v3006, 1.0
  %v3255 = vsub.f32 %v3008, 1.0
  %v3256 = vsub.f32 %v3010, 1.0
  %v3257 = vsub.f32 %v3012, 1.0
  %v3258 = vsub.f32 %v3014, 1.0
  %v3259 = vsub.f32 %v3016, 1.0
  %v3260 = vsub.f32 %v3018, 1.0
  %v3261 = vsub.f32 %v3020, 1.0
  %v3262 = vsub.f32 %v3022, 1.0
  %v3263 = vsub.f32 %v3024, 1.0
  %v3264 = vsub.f32 %v3026, 1.0
  %v3265 = vsub.f32 %v3028, 1.0
  %v3266 = vsub.f32 %v3030, 1.0
  %v3267 = vsub.f32 %v3032, 1.0
  %v3268 = vsub.f32 %v3034, 1.0
  %v3269 = vsub.f32 %v3036, 1.0
  %v3270 = vsub.f32 %v3038, 1.0
  %v3271 = vsub.f32 %v3040, 1.0
  %v3272 = vsub.f32 %v3042, 1.0
  %v3273 = vsub.f32 %v3044, 1.0
  %v3274 = vsub.f32 %v3046, 1.0
  %v3275 = vsub.f32 %v3048, 1.0
  %v3276 = vsub.f32 %v3050, 1.0
  %v3277 = vsub.f32 %v3052, 1.0
  %v3278 = vsub.f32 %v3054, 1.0
  %v3279 = vsub.f32 %v3056, 1.0
  %v3280 = vsub.f32 %v3058, 1.0
  %v3281 = vsub.f32 %v3060, 1.0
  %v3282 = vsub.f32 %v3062, 1.0
  %v3283 = vsub.f32 %v3064, 1.0
  %v3284 = vsub.f32 %v3066, 1.0
  %v3285 = vsub.f32 %v3068, 1.0
  %v3286 = vsub.f32 %v3070, 1.0
  %v3287 = vsub.f32 %v3072, 1.0
  %v3288 = vsub.f32 %v3074, 1.0
  %v3289 = vsub.f32 %v3076, 1.0
  %v3290 = vsub.f32 %v3078, 1.0
  %v3291 = vsub.f32 %v3080, 1.0
  %v3292 = vsub.f32 %v3082, 1.0
  %v3293 = vsub.f32 %v3084, 1.0
  %v3294 = vsub.f32 %v3086, 1.0
  %v3295 = vsub.f32 %v3088, 1.0
  %v3296 = vsub.f32 %v3090, 1.0
  %v3297 = vsub.f32 %v3092, 1.0
  %v3298 = vsub.f32 %v3094, 1.0
  %v3299 = vsub.f32 %v3096, 1.0
  %v3300 = vsub.f32 %v3098, 1.0
  %v3301 = vsub.f32 %v3100, 1.0
  %v3302 = vsub.f32 %v3102, 1.0
  %v3303 = vsel %vm2303, %v2103, %v3103
  %v3304 = vsel %vm2304, %v2104, %v3104
  %v3305 = vsel %vm2305, %v2105, %v3105
  %v3306 = vsel %vm2306, %v2106, %v3106
  %v3307 = vsel %vm2307, %v2107, %v3107
  %v3308 = vsel %vm2308, %v2108, %v3108
  %v3309 = vsel %vm2309, %v2109, %v3109
  %v3310 = vsel %vm2310, %v2110, %v3110
  %v3311 = vsel %vm2311, %v2111, %v3111
  %v3312 = vsel %vm2312, %v2112, %v3112
  %v3313 = vsel %vm2313, %v2113, %v3113
  %v3314 = vsel %vm2314, %v2114, %v3114
  %v3315 = vsel %vm2315, %v2115, %v3115
  %v3316 = vsel %vm2316, %v2116, %v3116
  %v3317 = vsel %vm2317, %v2117, %v3117
  %v3318 = vsel %vm2318, %v2118, %v3118
  %v3319 = vsel %vm2319, %v2119, %v3119
  %v3320 = vsel %vm2320, %v2120, %v3120
  %v3321 = vsel %vm2321, %v2121, %v3121
  %v3322 = vsel %vm2322, %v2122, %v3122
  %v3323 = vsel %vm2323, %v2123, %v3123
  %v3324 = vsel %vm2324, %v2124, %v3124
  %v3325 = vsel %vm2325, %v2125, %v3125
  %v3326 = vsel %vm2326, %v2126, %v3126
  %v3327 = vsel %vm2327, %v2127, %v3127
  %v3328 = vsel %vm2328, %v2128, %v3128
  %v3329 = vsel %vm2329, %v2129, %v3129
  %v3330 = vsel %vm2330, %v2130, %v3130
  %v3331 = vsel %vm2331, %v2131, %v3131
  %v3332 = vsel %vm2332, %v2132, %v3132
  %v3333 = vsel %vm2333, %v2133, %v3133
  %v3334 = vsel %vm2334, %v2134, %v3134
  %v3335 = vsel %vm2335, %v2135, %v3135
  %v3336 = vsel %vm2336, %v2136, %v3136
  %v3337 = vsel %vm2337, %v2137, %v3137
  %v3338 = vsel %vm2338, %v2138, %v3138
  %v3339 = vsel %vm2339, %v2139, %v3139
  %v3340 = vsel %vm2340, %v2140, %v3140
  %v3341 = vsel %vm2341, %v2141, %v3141
  %v3342 = vsel %vm2342, %v2142, %v3142
  %v3343 = vsel %vm2343, %v2143, %v3143
  %v3344 = vsel %vm2344, %v2144, %v3144
  %v3345 = vsel %vm2345, %v2145, %v3145
  %v3346 = vsel %vm2346, %v2146, %v3146
  %v3347 = vsel %vm2347, %v2147, %v3147
  %v3348 = vsel %vm2348, %v2148, %v3148
  %v3349 = vsel %vm2349, %v2149, %v3149
  %v3350 = vsel %vm2350, %v2150, %v3150
  %v3351 = vsel %vm2351, %v2151, %v3151
  %v3352 = vsel %vm2352, %v2152, %v3152
  %v3353 = vsel %vm2353, %v2153, %v3153
  %v3354 = vsel %vm2354, %v2154, %v3154
  %v3355 = vsel %vm2355, %v2155, %v3155
  %v3356 = vsel %vm2356, %v2156, %v3156
  %v3357 = vsel %vm2357, %v2157, %v3157
  %v3358 = vsel %vm2358, %v2158, %v3158
  %v3359 = vsel %vm2359, %v2159, %v3159
  %v3360 = vsel %vm2360, %v2160, %v3160
  %v3361 = vsel %vm2361, %v2161, %v3161
  %v3362 = vsel %vm2362, %v2162, %v3162
  %v3363 = vsel %vm2363, %v2163, %v3163
  %v3364 = vsel %vm2364, %v2164, %v3164
  %v3365 = vsel %vm2365, %v2165, %v3165
  %v3366 = vsel %vm2366, %v2166, %v3166
  %v3367 = vsel %vm2367, %v2167, %v3167
  %v3368 = vsel %vm2368, %v2168, %v3168
  %v3369 = vsel %vm2369, %v2169, %v3169
  %v3370 = vsel %vm2370, %v2170, %v3170
  %v3371 = vsel %vm2371, %v2171, %v3171
  %v3372 = vsel %vm2372, %v2172, %v3172
  %v3373 = vsel %vm2373, %v2173, %v3173
  %v3374 = vsel %vm2374, %v2174, %v3174
  %v3375 = vsel %vm2375, %v2175, %v3175
  %v3376 = vsel %vm2376, %v2176, %v3176
  %v3377 = vsel %vm2377, %v2177, %v3177
  %v3378 = vsel %vm2378, %v2178, %v3178
  %v3379 = vsel %vm2379, %v2179, %v3179
  %v3380 = vsel %vm2380, %v2180, %v3180
  %v3381 = vsel %vm2381, %v2181, %v3181
  %v3382 = vsel %vm2382, %v2182, %v3182
  %v3383 = vsel %vm2383, %v2183, %v3183
  %v3384 = vsel %vm2384, %v2184, %v3184
  %v3385 = vsel %vm2385, %v2185, %v3185
  %v3386 = vsel %vm2386, %v2186, %v3186
  %v3387 = vsel %vm2387, %v2187, %v3187
  %v3388 = vsel %vm2388, %v2188, %v3188
  %v3389 = vsel %vm2389, %v2189, %v3189
  %v3390 = vsel %vm2390, %v2190, %v3190
  %v3391 = vsel %vm2391, %v2191, %v3191
  %v3392 = vsel %vm2392, %v2192, %v3192
  %v3393 = vsel %vm2393, %v2193, %v3193
  %v3394 = vsel %vm2394, %v2194, %v3194
  %v3395 = vsel %vm2395, %v2195, %v3195
  %v3396 = vsel %vm2396, %v2196, %v3196
  %v3397 = vsel %vm2397, %v2197, %v3197
  %v3398 = vsel %vm2398, %v2198, %v3198
  %v3399 = vsel %vm2399, %v2199, %v3199
  %v3400 = vsel %vm2400, %v2200, %v3200
  %v3401 = vsel %vm2401, %v2201, %v3201
  %v3402 = vsel %vm2402, %v2202, %v3202
  %v3403 = vsel %vm2403, %v2203, %v3203
  %v3404 = vsel %vm2404, %v2204, %v3204
  %v3405 = vsel %vm2405, %v2205, %v3205
  %v3406 = vsel %vm2406, %v2206, %v3206
  %v3407 = vsel %vm2407, %v2207, %v3207
  %v3408 = vsel %vm2408, %v2208, %v3208
  %v3409 = vsel %vm2409, %v2209, %v3209
  %v3410 = vsel %vm2410, %v2210, %v3210
  %v3411 = vsel %vm2411, %v2211, %v3211
  %v3412 = vsel %vm2412, %v2212, %v3212
  %v3413 = vsel %vm2413, %v2213, %v3213
  %v3414 = vsel %vm2414, %v2214, %v3214
  %v3415 = vsel %vm2415, %v2215, %v3215
  %v3416 = vsel %vm2416, %v2216, %v3216
  %v3417 = vsel %vm2417, %v2217, %v3217
  %v3418 = vsel %vm2418, %v2218, %v3218
  %v3419 = vsel %vm2419, %v2219, %v3219
  %v3420 = vsel %vm2420, %v2220, %v3220
  %v3421 = vsel %vm2421, %v2221, %v3221
  %v3422 = vsel %vm2422, %v2222, %v3222
  %v3423 = vsel %vm2423, %v2223, %v3223
  %v3424 = vsel %vm2424, %v2224, %v3224
  %v3425 = vsel %vm2425, %v2225, %v3225
  %v3426 = vsel %vm2426, %v2226, %v3226
  %v3427 = vsel %vm2427, %v2227, %v3227
  %v3428 = vsel %vm2428, %v2228, %v3228
  %v3429 = vsel %vm2429, %v2229, %v3229
  %v3430 = vsel %vm2430, %v2230, %v3230
  %v3431 = vsel %vm2431, %v2231, %v3231
  %v3432 = vsel %vm2432, %v2232, %v3232
  %v3433 = vsel %vm2433, %v2233, %v3233
  %v3434 = vsel %vm2434, %v2234, %v3234
  %v3435 = vsel %vm2435, %v2235, %v3235
  %v3436 = vsel %vm2436, %v2236, %v3236
  %v3437 = vsel %vm2437, %v2237, %v3237
  %v3438 = vsel %vm2438, %v2238, %v3238
  %v3439 = vsel %vm2439, %v2239, %v3239
  %v3440 = vsel %vm2440, %v2240, %v3240
  %v3441 = vsel %vm2441, %v2241, %v3241
  %v3442 = vsel %vm2442, %v2242, %v3242
  %v3443 = vsel %vm2443, %v2243, %v3243
  %v3444 = vsel %vm2444, %v2244, %v3244
  %v3445 = vsel %vm2445, %v2245, %v3245
  %v3446 = vsel %vm2446, %v2246, %v3246
  %v3447 = vsel %vm2447, %v2247, %v3247
  %v3448 = vsel %vm2448, %v2248, %v3248
  %v3449 = vsel %vm2449, %v2249, %v3249
  %v3450 = vsel %vm2450, %v2250, %v3250
  %v3451 = vsel %vm2451, %v2251, %v3251
  %v3452 = vsel %vm2452, %v2252, %v3252
  %v3453 = vsel %vm2453, %v2253, %v3253
  %v3454 = vsel %vm2454, %v2254, %v3254
  %v3455 = vsel %vm2455, %v2255, %v3255
  %v3456 = vsel %vm2456, %v2256, %v3256
  %v3457 = vsel %vm2457, %v2257, %v3257
  %v3458 = vsel %vm2458, %v2258, %v3258
  %v3459 = vsel %vm2459, %v2259, %v3259
  %v3460 = vsel %vm2460, %v2260, %v3260
  %v3461 = vsel %vm2461, %v2261, %v3261
  %v3462 = vsel %vm2462, %v2262, %v3262
  %v3463 = vsel %vm2463, %v2263, %v3263
  %v3464 = vsel %vm2464, %v2264, %v3264
  %v3465 = vsel %vm2465, %v2265, %v3265
  %v3466 = vsel %vm2466, %v2266, %v3266
  %v3467 = vsel %vm2467, %v2267, %v3267
  %v3468 = vsel %vm2468, %v2268, %v3268
  %v3469 = vsel %vm2469, %v2269, %v3269
  %v3470 = vsel %vm2470, %v2270, %v3270
  %v3471 = vsel %vm2471, %v2271, %v3271
  %v3472 = vsel %vm2472, %v2272, %v3272
  %v3473 = vsel %vm2473, %v2273, %v3273
  %v3474 = vsel %vm2474, %v2274, %v3274
  %v3475 = vsel %vm2475, %v2275, %v3275
  %v3476 = vsel %vm2476, %v2276, %v3276
  %v3477 = vsel %vm2477, %v2277, %v3277
  %v3478 = vsel %vm2478, %v2278, %v3278
  %v3479 = vsel %vm2479, %v2279, %v3279
  %v3480 = vsel %vm2480, %v2280, %v3280
  %v3481 = vsel %vm2481, %v2281, %v3281
  %v3482 = vsel %vm2482, %v2282, %v3282
  %v3483 = vsel %vm2483, %v2283, %v3283
  %v3484 = vsel %vm2484, %v2284, %v3284
  %v3485 = vsel %vm2485, %v2285, %v3285
  %v3486 = vsel %vm2486, %v2286, %v3286
  %v3487 = vsel %vm2487, %v2287, %v3287
  %v3488 = vsel %vm2488, %v2288, %v3288
  %v3489 = vsel %vm2489, %v2289, %v3289
  %v3490 = vsel %vm2490, %v2290, %v3290
  %v3491 = vsel %vm2491, %v2291, %v3291
  %v3492 = vsel %vm2492, %v2292, %v3292
  %v3493 = vsel %vm2493, %v2293, %v3293
  %v3494 = vsel %vm2494, %v2294, %v3294
  %v3495 = vsel %vm2495, %v2295, %v3295
  %v3496 = vsel %vm2496, %v2296, %v3296
  %v3497 = vsel %vm2497, %v2297, %v3297
  %v3498 = vsel %vm2498, %v2298, %v3298
  %v3499 = vsel %vm2499, %v2299, %v3299
  %v3500 = vsel %vm2500, %v2300, %v3300
  %v3501 = vsel %vm2501, %v2301, %v3301
  %v3502 = vsel %vm2502, %v2302, %v3302
  %v3503 = vmax.f32 %v3303, %v3328
  %v3504 = vmax.f32 %v3304, %v3329
  %v3505 = vmax.f32 %v3305, %v3330
  %v3506 = vmax.f32 %v3306, %v3331
  %v3507 = vmax.f32 %v3307, %v3332
  %v3508 = vmax.f32 %v3308, %v3333
  %v3509 = vmax.f32 %v3309, %v3334
  %v3510 = vmax.f32 %v3310, %v3335
  %v3511 = vmax.f32 %v3311, %v3336
  %v3512 = vmax.f32 %v3312, %v3337
  %v3513 = vmax.f32 %v3313, %v3338
  %v3514 = vmax.f32 %v3314, %v3339
  %v3515 = vmax.f32 %v3315, %v3340
  %v3516 = vmax.f32 %v3316, %v3341
  %v3517 = vmax.f32 %v3317, %v3342
  %v3518 = vmax.f32 %v3318, %v3343
  %v3519 = vmax.f32 %v3319, %v3344
  %v3520 = vmax.f32 %v3320, %v3345
  %v3521 = vmax.f32 %v3321, %v3346
  %v3522 = vmax.f32 %v3322, %v3347
  %v3523 = vmax.f32 %v3323, %v3348
  %v3524 = vmax.f32 %v3324, %v3349
  %v3525 = vmax.f32 %v3325, %v3350
  %v3526 = vmax.f32 %v3326, %v3351
  %v3527 = vmax.f32 %v3327, %v3352
  %v3528 = vmax.f32 %v3353, %v3378
  %v3529 = vmax.f32 %v3354, %v3379
  %v3530 = vmax.f32 %v3355, %v3380
  %v3531 = vmax.f32 %v3356, %v3381
  %v3532 = vmax.f32 %v3357, %v3382
  %v3533 = vmax.f32 %v3358, %v3383
  %v3534 = vmax.f32 %v3359, %v3384
  %v3535 = vmax.f32 %v3360, %v3385
  %v3536 = vmax.f32 %v3361, %v3386
  %v3537 = vmax.f32 %v3362, %v3387
  %v3538 = vmax.f32 %v3363, %v3388
  %v3539 = vmax.f32 %v3364, %v3389
  %v3540 = vmax.f32 %v3365, %v3390
  %v3541 = vmax.f32 %v3366, %v3391
  %v3542 = vmax.f32 %v3367, %v3392
  %v3543 = vmax.f32 %v3368, %v3393
  %v3544 = vmax.f32 %v3369, %v3394
  %v3545 = vmax.f32 %v3370, %v3395
  %v3546 = vmax.f32 %v3371, %v3396
  %v3547 = vmax.f32 %v3372, %v3397
  %v3548 = vmax.f32 %v3373, %v3398
  %v3549 = vmax.f32 %v3374, %v3399
  %v3550 = vmax.f32 %v3375, %v3400
  %v3551 = vmax.f32 %v3376, %v3401
  %v3552 = vmax.f32 %v3377, %v3402
  %v3553 = vmax.f32 %v3503, %v3528
  %v3554 = vmax.f32 %v3504, %v3529
  %v3555 = vmax.f32 %v3505, %v3530
  %v3556 = vmax.f32 %v3506, %v3531
  %v3557 = vmax.f32 %v3507, %v3532
  %v3558 = vmax.f32 %v3508, %v3533
  %v3559 = vmax.f32 %v3509, %v3534
  %v3560 = vmax.f32 %v3510, %v3535
  %v3561 = vmax.f32 %v3511, %v3536
  %v3562 = vmax.f32 %v3512, %v3537
  %v3563 = vmax.f32 %v3513, %v3538
  %v3564 = vmax.f32 %v3514, %v3539
  %v3565 = vmax.f32 %v3515, %v3540
  %v3566 = vmax.f32 %v3516, %v3541
  %v3567 = vmax.f32 %v3517, %v3542
  %v3568 = vmax.f32 %v3518, %v3543
  %v3569 = vmax.f32 %v3519, %v3544
  %v3570 = vmax.f32 %v3520, %v3545
  %v3571 = vmax.f32 %v3521, %v3546
  %v3572 = vmax.f32 %v3522, %v3547
  %v3573 = vmax.f32 %v3523, %v3548
  %v3574 = vmax.f32 %v3524, %v3549
  %v3575 = vmax.f32 %v3525, %v3550
  %v3576 = vmax.f32 %v3526, %v3551
  %v3577 = vmax.f32 %v3527, %v3552
  %vm3578 = vcmask 64512
  %3579 = vst.msk [vmem:[%s4] sm:$0xff] %vm3578, %v3553
  %3580 = vst.msk [vmem:[%s4 + $0x8] sm:$0xff] %vm3578, %v3554
  %3581 = vst.msk [vmem:[%s4 + $0x10] sm:$0xff] %vm3578, %v3555
  %3582 = vst.msk [vmem:[%s4 + $0x18] sm:$0xff] %vm3578, %v3556
  %3583 = vst.msk [vmem:[%s4 + $0x20] sm:$0xff] %vm3578, %v3557
  %3584 = vst.msk [vmem:[%s4 + $0x28] sm:$0xff] %vm3578, %v3558
  %3585 = vst.msk [vmem:[%s4 + $0x30] sm:$0xff] %vm3578, %v3559
  %3586 = vst.msk [vmem:[%s4 + $0x38] sm:$0xff] %vm3578, %v3560
  %3587 = vst.msk [vmem:[%s4 + $0x40] sm:$0xff] %vm3578, %v3561
  %3588 = vst.msk [vmem:[%s4 + $0x48] sm:$0xff] %vm3578, %v3562
  %3589 = vst.msk [vmem:[%s4 + $0x50] sm:$0xff] %vm3578, %v3563
  %3590 = vst.msk [vmem:[%s4 + $0x58] sm:$0xff] %vm3578, %v3564
  %3591 = vst.msk [vmem:[%s4 + $0x60] sm:$0xff] %vm3578, %v3565
  %3592 = vst.msk [vmem:[%s4 + $0x68] sm:$0xff] %vm3578, %v3566
  %3593 = vst.msk [vmem:[%s4 + $0x70] sm:$0xff] %vm3578, %v3567
  %3594 = vst.msk [vmem:[%s4 + $0x78] sm:$0xff] %vm3578, %v3568
  %3595 = vst.msk [vmem:[%s4 + $0x80] sm:$0xff] %vm3578, %v3569
  %3596 = vst.msk [vmem:[%s4 + $0x88] sm:$0xff] %vm3578, %v3570
  %3597 = vst.msk [vmem:[%s4 + $0x90] sm:$0xff] %vm3578, %v3571
  %3598 = vst.msk [vmem:[%s4 + $0x98] sm:$0xff] %vm3578, %v3572
  %3599 = vst.msk [vmem:[%s4 + $0xa0] sm:$0xff] %vm3578, %v3573
  %3600 = vst.msk [vmem:[%s4 + $0xa8] sm:$0xff] %vm3578, %v3574
  %3601 = vst.msk [vmem:[%s4 + $0xb0] sm:$0xff] %vm3578, %v3575
  %3602 = vst.msk [vmem:[%s4 + $0xb8] sm:$0xff] %vm3578, %v3576
  %3603 = vst.msk [vmem:[%s4 + $0xc0] sm:$0xff] %vm3578, %v3577
  %v3604 = vmax.f32 %v3403, %v3428
  %v3605 = vmax.f32 %v3404, %v3429
  %v3606 = vmax.f32 %v3405, %v3430
  %v3607 = vmax.f32 %v3406, %v3431
  %v3608 = vmax.f32 %v3407, %v3432
  %v3609 = vmax.f32 %v3408, %v3433
  %v3610 = vmax.f32 %v3409, %v3434
  %v3611 = vmax.f32 %v3410, %v3435
  %v3612 = vmax.f32 %v3411, %v3436
  %v3613 = vmax.f32 %v3412, %v3437
  %v3614 = vmax.f32 %v3413, %v3438
  %v3615 = vmax.f32 %v3414, %v3439
  %v3616 = vmax.f32 %v3415, %v3440
  %v3617 = vmax.f32 %v3416, %v3441
  %v3618 = vmax.f32 %v3417, %v3442
  %v3619 = vmax.f32 %v3418, %v3443
  %v3620 = vmax.f32 %v3419, %v3444
  %v3621 = vmax.f32 %v3420, %v3445
  %v3622 = vmax.f32 %v3421, %v3446
  %v3623 = vmax.f32 %v3422, %v3447
  %v3624 = vmax.f32 %v3423, %v3448
  %v3625 = vmax.f32 %v3424, %v3449
  %v3626 = vmax.f32 %v3425, %v3450
  %v3627 = vmax.f32 %v3426, %v3451
  %v3628 = vmax.f32 %v3427, %v3452
  %v3629 = vmax.f32 %v3453, %v3478
  %v3630 = vmax.f32 %v3454, %v3479
  %v3631 = vmax.f32 %v3455, %v3480
  %v3632 = vmax.f32 %v3456, %v3481
  %v3633 = vmax.f32 %v3457, %v3482
  %v3634 = vmax.f32 %v3458, %v3483
  %v3635 = vmax.f32 %v3459, %v3484
  %v3636 = vmax.f32 %v3460, %v3485
  %v3637 = vmax.f32 %v3461, %v3486
  %v3638 = vmax.f32 %v3462, %v3487
  %v3639 = vmax.f32 %v3463, %v3488
  %v3640 = vmax.f32 %v3464, %v3489
  %v3641 = vmax.f32 %v3465, %v3490
  %v3642 = vmax.f32 %v3466, %v3491
  %v3643 = vmax.f32 %v3467, %v3492
  %v3644 = vmax.f32 %v3468, %v3493
  %v3645 = vmax.f32 %v3469, %v3494
  %v3646 = vmax.f32 %v3470, %v3495
  %v3647 = vmax.f32 %v3471, %v3496
  %v3648 = vmax.f32 %v3472, %v3497
  %v3649 = vmax.f32 %v3473, %v3498
  %v3650 = vmax.f32 %v3474, %v3499
  %v3651 = vmax.f32 %v3475, %v3500
  %v3652 = vmax.f32 %v3476, %v3501
  %v3653 = vmax.f32 %v3477, %v3502
  %v3654 = vmax.f32 %v3604, %v3629
  %v3655 = vmax.f32 %v3605, %v3630
  %v3656 = vmax.f32 %v3606, %v3631
  %v3657 = vmax.f32 %v3607, %v3632
  %v3658 = vmax.f32 %v3608, %v3633
  %v3659 = vmax.f32 %v3609, %v3634
  %v3660 = vmax.f32 %v3610, %v3635
  %v3661 = vmax.f32 %v3611, %v3636
  %v3662 = vmax.f32 %v3612, %v3637
  %v3663 = vmax.f32 %v3613, %v3638
  %v3664 = vmax.f32 %v3614, %v3639
  %v3665 = vmax.f32 %v3615, %v3640
  %v3666 = vmax.f32 %v3616, %v3641
  %v3667 = vmax.f32 %v3617, %v3642
  %v3668 = vmax.f32 %v3618, %v3643
  %v3669 = vmax.f32 %v3619, %v3644
  %v3670 = vmax.f32 %v3620, %v3645
  %v3671 = vmax.f32 %v3621, %v3646
  %v3672 = vmax.f32 %v3622, %v3647
  %v3673 = vmax.f32 %v3623, %v3648
  %v3674 = vmax.f32 %v3624, %v3649
  %v3675 = vmax.f32 %v3625, %v3650
  %v3676 = vmax.f32 %v3626, %v3651
  %v3677 = vmax.f32 %v3627, %v3652
  %v3678 = vmax.f32 %v3628, %v3653
  %3679 = vst.msk [vmem:[%s4 + $0xc8] sm:$0xff] %vm3578, %v3654
  %3680 = vst.msk [vmem:[%s4 + $0xd0] sm:$0xff] %vm3578, %v3655
  %3681 = vst.msk [vmem:[%s4 + $0xd8] sm:$0xff] %vm3578, %v3656
  %3682 = vst.msk [vmem:[%s4 + $0xe0] sm:$0xff] %vm3578, %v3657
  %3683 = vst.msk [vmem:[%s4 + $0xe8] sm:$0xff] %vm3578, %v3658
  %3684 = vst.msk [vmem:[%s4 + $0xf0] sm:$0xff] %vm3578, %v3659
  %3685 = vst.msk [vmem:[%s4 + $0xf8] sm:$0xff] %vm3578, %v3660
  %3686 = vst.msk [vmem:[%s4 + $0x100] sm:$0xff] %vm3578, %v3661
  %3687 = vst.msk [vmem:[%s4 + $0x108] sm:$0xff] %vm3578, %v3662
  %3688 = vst.msk [vmem:[%s4 + $0x110] sm:$0xff] %vm3578, %v3663
  %3689 = vst.msk [vmem:[%s4 + $0x118] sm:$0xff] %vm3578, %v3664
  %3690 = vst.msk [vmem:[%s4 + $0x120] sm:$0xff] %vm3578, %v3665
  %3691 = vst.msk [vmem:[%s4 + $0x128] sm:$0xff] %vm3578, %v3666
  %3692 = vst.msk [vmem:[%s4 + $0x130] sm:$0xff] %vm3578, %v3667
  %3693 = vst.msk [vmem:[%s4 + $0x138] sm:$0xff] %vm3578, %v3668
  %3694 = vst.msk [vmem:[%s4 + $0x140] sm:$0xff] %vm3578, %v3669
  %3695 = vst.msk [vmem:[%s4 + $0x148] sm:$0xff] %vm3578, %v3670
  %3696 = vst.msk [vmem:[%s4 + $0x150] sm:$0xff] %vm3578, %v3671
  %3697 = vst.msk [vmem:[%s4 + $0x158] sm:$0xff] %vm3578, %v3672
  %3698 = vst.msk [vmem:[%s4 + $0x160] sm:$0xff] %vm3578, %v3673
  %3699 = vst.msk [vmem:[%s4 + $0x168] sm:$0xff] %vm3578, %v3674
  %3700 = vst.msk [vmem:[%s4 + $0x170] sm:$0xff] %vm3578, %v3675
  %3701 = vst.msk [vmem:[%s4 + $0x178] sm:$0xff] %vm3578, %v3676
  %3702 = vst.msk [vmem:[%s4 + $0x180] sm:$0xff] %vm3578, %v3677
  %3703 = vst.msk [vmem:[%s4 + $0x188] sm:$0xff] %vm3578, %v3678
  // Predicated region
  $region18: #{forward.4} parent=0 // pred_check
    _
  $region19: #{forward.4} parent=0 // pred_check_branch
    %3705 = sbr.rel (0) target = $region21
  $region20: #{forward.4} parent=0 // pred_region
    _
  $region21: #{forward.4} parent=0 // pred_fallthru
    _
  // Predicated region
  $region22: #{forward.4} parent=0 // pred_check
    _
  $region23: #{forward.4} parent=0 // pred_check_branch
    %3707 = sbr.rel (0) target = $region25
  $region24: #{forward.4} parent=0 // pred_region
    _
  $region25: #{forward.4} parent=0 // pred_fallthru
    _

// kernel: forward.5
$region0: #{forward.5}
  #allocation0 [shape = 'u32[]', space=smem, size = 0x4, offset = 0x4, fixed_abs, tag = 'smem constant byte address 0x4 - core index']
  #allocation1 [shape = 'u32[144,128]{1,0:T(1,128)}', space=vmem, size = 0x12000, scoped, tag = 'internal scratch']
  %s0 = inlined_call_operand.vmem [shape: f32[448,72], index: 0, kind: input, shape index: {}]
  %s1 = inlined_call_operand.vmem [shape: f32[72,16], index: 1, kind: input, shape index: {}]
  %s2 = inlined_call_operand.vmem [shape: f32[1,16], index: 2, kind: input, shape index: {}]
  %s3 = inlined_call_operand.vmem [shape: f32[1,16], index: 3, kind: input, shape index: {}]
  %s4 = inlined_call_operand.vmem [shape: f32[112,16], index: 4, kind: output, shape index: {}]
  %s5 = sld [smem:[#allocation0]]
  $region26: #{forward.5} parent=0
    _
  %s7 = ssub.s32 1, %s5
  %s8 = scalar_select 0, %s7, %s5
  // Predicated region
  $region2: #{forward.5} parent=0 // pred_check
    _
  $region3: #{forward.5} parent=0 // pred_check_branch
    %10 = sbr.rel (0) target = $region5
  $region4: #{forward.5} parent=0 // pred_region
    _
  $region5: #{forward.5} parent=0 // pred_fallthru
    _
  // Predicated region
  $region6: #{forward.5} parent=0 // pred_check
    _
  $region7: #{forward.5} parent=0 // pred_check_branch
    %12 = sbr.rel (0) target = $region9
  $region8: #{forward.5} parent=0 // pred_region
    _
  $region9: #{forward.5} parent=0 // pred_fallthru
    _
  // Predicated region
  $region10: #{forward.5} parent=0 // pred_check
    _
  $region11: #{forward.5} parent=0 // pred_check_branch
    %14 = sbr.rel (0) target = $region13
  $region12: #{forward.5} parent=0 // pred_region
    _
  $region13: #{forward.5} parent=0 // pred_fallthru
    _
  // Predicated region
  $region14: #{forward.5} parent=0 // pred_check
    _
  $region15: #{forward.5} parent=0 // pred_check_branch
    %16 = sbr.rel (0) target = $region17
  $region16: #{forward.5} parent=0 // pred_region
    _
  $region17: #{forward.5} parent=0 // pred_fallthru
    _
  %v17 = vld [vmem:[%s0] sm:$0xff]
  %v18 = vld [vmem:[%s0 + $0x8] sm:$0xff]
  %v19 = vld [vmem:[%s0 + $0x10] sm:$0xff]
  %v20 = vld [vmem:[%s0 + $0x18] sm:$0xff]
  %v21 = vld [vmem:[%s0 + $0x20] sm:$0xff]
  %v22 = vld [vmem:[%s0 + $0x28] sm:$0xff]
  %v23 = vld [vmem:[%s0 + $0x30] sm:$0xff]
  %v24 = vld [vmem:[%s0 + $0x38] sm:$0xff]
  %v25 = vld [vmem:[%s0 + $0x40] sm:$0xff]
  %v26 = vld [vmem:[%s0 + $0x48] sm:$0xff]
  %v27 = vld [vmem:[%s0 + $0x50] sm:$0xff]
  %v28 = vld [vmem:[%s0 + $0x58] sm:$0xff]
  %v29 = vld [vmem:[%s0 + $0x60] sm:$0xff]
  %v30 = vld [vmem:[%s0 + $0x68] sm:$0xff]
  %v31 = vld [vmem:[%s0 + $0x70] sm:$0xff]
  %v32 = vld [vmem:[%s0 + $0x78] sm:$0xff]
  %v33 = vld [vmem:[%s0 + $0x80] sm:$0xff]
  %v34 = vld [vmem:[%s0 + $0x88] sm:$0xff]
  %v35 = vld [vmem:[%s0 + $0x90] sm:$0xff]
  %v36 = vld [vmem:[%s0 + $0x98] sm:$0xff]
  %v37 = vld [vmem:[%s0 + $0xa0] sm:$0xff]
  %v38 = vld [vmem:[%s0 + $0xa8] sm:$0xff]
  %v39 = vld [vmem:[%s0 + $0xb0] sm:$0xff]
  %v40 = vld [vmem:[%s0 + $0xb8] sm:$0xff]
  %v41 = vld [vmem:[%s0 + $0xc0] sm:$0xff]
  %v42 = vld [vmem:[%s0 + $0xc8] sm:$0xff]
  %v43 = vld [vmem:[%s0 + $0xd0] sm:$0xff]
  %v44 = vld [vmem:[%s0 + $0xd8] sm:$0xff]
  %v45 = vld [vmem:[%s0 + $0xe0] sm:$0xff]
  %v46 = vld [vmem:[%s0 + $0xe8] sm:$0xff]
  %v47 = vld [vmem:[%s0 + $0xf0] sm:$0xff]
  %v48 = vld [vmem:[%s0 + $0xf8] sm:$0xff]
  %v49 = vld [vmem:[%s0 + $0x100] sm:$0xff]
  %v50 = vld [vmem:[%s0 + $0x108] sm:$0xff]
  %v51 = vld [vmem:[%s0 + $0x110] sm:$0xff]
  %v52 = vld [vmem:[%s0 + $0x118] sm:$0xff]
  %v53 = vld [vmem:[%s0 + $0x120] sm:$0xff]
  %v54 = vld [vmem:[%s0 + $0x128] sm:$0xff]
  %v55 = vld [vmem:[%s0 + $0x130] sm:$0xff]
  %v56 = vld [vmem:[%s0 + $0x138] sm:$0xff]
  %v57 = vld [vmem:[%s0 + $0x140] sm:$0xff]
  %v58 = vld [vmem:[%s0 + $0x148] sm:$0xff]
  %v59 = vld [vmem:[%s0 + $0x150] sm:$0xff]
  %v60 = vld [vmem:[%s0 + $0x158] sm:$0xff]
  %v61 = vld [vmem:[%s0 + $0x160] sm:$0xff]
  %v62 = vld [vmem:[%s0 + $0x168] sm:$0xff]
  %v63 = vld [vmem:[%s0 + $0x170] sm:$0xff]
  %v64 = vld [vmem:[%s0 + $0x178] sm:$0xff]
  %v65 = vld [vmem:[%s0 + $0x180] sm:$0xff]
  %v66 = vld [vmem:[%s0 + $0x188] sm:$0xff]
  %v67 = vld [vmem:[%s0 + $0x190] sm:$0xff]
  %v68 = vld [vmem:[%s0 + $0x198] sm:$0xff]
  %v69 = vld [vmem:[%s0 + $0x1a0] sm:$0xff]
  %v70 = vld [vmem:[%s0 + $0x1a8] sm:$0xff]
  %v71 = vld [vmem:[%s0 + $0x1b0] sm:$0xff]
  %v72 = vld [vmem:[%s0 + $0x1b8] sm:$0xff]
  %v73 = vld [vmem:[%s1] sm:$0xff]
  %v74 = vld [vmem:[%s1 + $0x8] sm:$0xff]
  %v75 = vld [vmem:[%s1 + $0x10] sm:$0xff]
  %v76 = vld [vmem:[%s1 + $0x18] sm:$0xff]
  %v77 = vld [vmem:[%s1 + $0x20] sm:$0xff]
  %v78 = vld [vmem:[%s1 + $0x28] sm:$0xff]
  %v79 = vld [vmem:[%s1 + $0x30] sm:$0xff]
  %v80 = vld [vmem:[%s1 + $0x38] sm:$0xff]
  %v81 = vld [vmem:[%s1 + $0x40] sm:$0xff]
  %vm82 = vcmask 588800
  %v84 = vsel %vm82, %v17, 0
  %v87 = vsel %vm82, %v18, 0
  %v90 = vsel %vm82, %v19, 0
  %v93 = vsel %vm82, %v20, 0
  %v96 = vsel %vm82, %v21, 0
  %v99 = vsel %vm82, %v22, 0
  %v102 = vsel %vm82, %v23, 0
  %v105 = vsel %vm82, %v24, 0
  %v108 = vsel %vm82, %v25, 0
  %v111 = vsel %vm82, %v26, 0
  %v114 = vsel %vm82, %v27, 0
  %v117 = vsel %vm82, %v28, 0
  %v120 = vsel %vm82, %v29, 0
  %v123 = vsel %vm82, %v30, 0
  %v126 = vsel %vm82, %v31, 0
  %v129 = vsel %vm82, %v32, 0
  %v132 = vsel %vm82, %v33, 0
  %v135 = vsel %vm82, %v34, 0
  %v138 = vsel %vm82, %v35, 0
  %v141 = vsel %vm82, %v36, 0
  %v144 = vsel %vm82, %v37, 0
  %v147 = vsel %vm82, %v38, 0
  %v150 = vsel %vm82, %v39, 0
  %v153 = vsel %vm82, %v40, 0
  %v156 = vsel %vm82, %v41, 0
  %v159 = vsel %vm82, %v42, 0
  %v162 = vsel %vm82, %v43, 0
  %v165 = vsel %vm82, %v44, 0
  %v168 = vsel %vm82, %v45, 0
  %v171 = vsel %vm82, %v46, 0
  %v174 = vsel %vm82, %v47, 0
  %v177 = vsel %vm82, %v48, 0
  %v180 = vsel %vm82, %v49, 0
  %v183 = vsel %vm82, %v50, 0
  %v186 = vsel %vm82, %v51, 0
  %v189 = vsel %vm82, %v52, 0
  %v192 = vsel %vm82, %v53, 0
  %v195 = vsel %vm82, %v54, 0
  %v198 = vsel %vm82, %v55, 0
  %v201 = vsel %vm82, %v56, 0
  %v204 = vsel %vm82, %v57, 0
  %v207 = vsel %vm82, %v58, 0
  %v210 = vsel %vm82, %v59, 0
  %v213 = vsel %vm82, %v60, 0
  %v216 = vsel %vm82, %v61, 0
  %v219 = vsel %vm82, %v62, 0
  %v222 = vsel %vm82, %v63, 0
  %v225 = vsel %vm82, %v64, 0
  %v228 = vsel %vm82, %v65, 0
  %v231 = vsel %vm82, %v66, 0
  %v234 = vsel %vm82, %v67, 0
  %v237 = vsel %vm82, %v68, 0
  %v240 = vsel %vm82, %v69, 0
  %v243 = vsel %vm82, %v70, 0
  %v246 = vsel %vm82, %v71, 0
  %v249 = vsel %vm82, %v72, 0
  %251 = vmatprep.subr.mxu0 0.0
  %252 = vmatpush1.msra.mxu0 %v73
  %253 = vmatprep.subr.mxu0 0.0
  %254 = vmatpush1.msra.mxu0 %v74
  %255 = vmatprep.subr.mxu0 0.0
  %256 = vmatpush1.msra.mxu0 %v75
  %257 = vmatprep.subr.mxu0 0.0
  %258 = vmatpush1.msra.mxu0 %v76
  %259 = vmatprep.subr.mxu0 0.0
  %260 = vmatpush1.msra.mxu0 %v77
  %261 = vmatprep.subr.mxu0 0.0
  %262 = vmatpush1.msra.mxu0 %v78
  %263 = vmatprep.subr.mxu0 0.0
  %264 = vmatpush1.msra.mxu0 %v79
  %265 = vmatprep.subr.mxu0 0.0
  %266 = vmatpush1.msra.mxu0 %v80
  %267 = vmatprep.subr.mxu0 0.0
  %268 = vmatpush1.msra.mxu0 %v81
  %269 = vmatprep.subr.mxu0 0.0
  %270 = vmatpush1.msra.mxu0 0.0
  %271 = vmatprep.subr.mxu0 0.0
  %272 = vmatpush1.msra.mxu0 0.0
  %273 = vmatprep.subr.mxu0 0.0
  %274 = vmatpush1.msra.mxu0 0.0
  %275 = vmatprep.subr.mxu0 0.0
  %276 = vmatpush1.msra.mxu0 0.0
  %277 = vmatprep.subr.mxu0 0.0
  %278 = vmatpush1.msra.mxu0 0.0
  %279 = vmatprep.subr.mxu0 0.0
  %280 = vmatpush1.msra.mxu0 0.0
  %281 = vmatprep.subr.mxu0 0.0
  %282 = vmatpush1.msra.mxu0 0.0
  %283 = vmatprep.subr.mxu0 0.0
  %284 = vmatpush1.msra.mxu0 0.0
  %285 = vmatprep.subr.mxu0 0.0
  %286 = vmatpush1.msra.mxu0 0.0
  %287 = vmatprep.subr.mxu0 0.0
  %288 = vmatpush1.msra.mxu0 0.0
  %289 = vmatprep.subr.mxu0 0.0
  %290 = vmatpush1.msra.mxu0 0.0
  %291 = vmatprep.subr.mxu0 0.0
  %292 = vmatpush1.msra.mxu0 0.0
  %293 = vmatprep.subr.mxu0 0.0
  %294 = vmatpush1.msra.mxu0 0.0
  %295 = vmatprep.subr.mxu0 0.0
  %296 = vmatpush1.msra.mxu0 0.0
  %297 = vmatprep.subr.mxu0 0.0
  %298 = vmatpush1.msra.mxu0 0.0
  %299 = vmatprep.subr.mxu0 0.0
  %300 = vmatpush1.msra.mxu0 0.0
  %301 = vmatprep.subr.mxu0 0.0
  %302 = vmatpush1.msra.mxu0 0.0
  %303 = vmatprep.subr.mxu0 0.0
  %304 = vmatpush1.msra.mxu0 0.0
  %305 = vmatprep.subr.mxu0 0.0
  %306 = vmatpush1.msra.mxu0 0.0
  %307 = vmatprep.subr.mxu0 0.0
  %308 = vmatpush1.msra.mxu0 0.0
  %309 = vmatprep.subr.mxu0 0.0
  %310 = vmatpush1.msra.mxu0 0.0
  %311 = vmatprep.subr.mxu0 0.0
  %312 = vmatpush1.msra.mxu0 0.0
  %313 = vmatprep.subr.mxu0 0.0
  %314 = vmatpush1.msra.mxu0 0.0
  %315 = vmatprep.mubr.f32.mxu0 0.0
  %316 = vmatmul.mubr.f32.gmra.mrb[0].mxu0 %v84
  %v317 = vpop.f32.mrb[0].mxu0
  %v318 = vadd.f32 0.0, %v317
  %v319 = vpop.f32.mrb[0].mxu0
  %320 = vmatprep.mubr.f32.mxu0 0.0
  %321 = vmatmul.mubr.f32.gmra.mrb[0].mxu0 %v87
  %v322 = vpop.f32.mrb[0].mxu0
  %v323 = vadd.f32 0.0, %v322
  %v324 = vpop.f32.mrb[0].mxu0
  %325 = vmatprep.mubr.f32.mxu0 0.0
  %326 = vmatmul.mubr.f32.gmra.mrb[0].mxu0 %v90
  %v327 = vpop.f32.mrb[0].mxu0
  %v328 = vadd.f32 0.0, %v327
  %v329 = vpop.f32.mrb[0].mxu0
  %330 = vmatprep.mubr.f32.mxu0 0.0
  %331 = vmatmul.mubr.f32.gmra.mrb[0].mxu0 %v93
  %v332 = vpop.f32.mrb[0].mxu0
  %v333 = vadd.f32 0.0, %v332
  %v334 = vpop.f32.mrb[0].mxu0
  %335 = vmatprep.mubr.f32.mxu0 0.0
  %336 = vmatmul.mubr.f32.gmra.mrb[0].mxu0 %v96
  %v337 = vpop.f32.mrb[0].mxu0
  %v338 = vadd.f32 0.0, %v337
  %v339 = vpop.f32.mrb[0].mxu0
  %340 = vmatprep.mubr.f32.mxu0 0.0
  %341 = vmatmul.mubr.f32.gmra.mrb[0].mxu0 %v99
  %v342 = vpop.f32.mrb[0].mxu0
  %v343 = vadd.f32 0.0, %v342
  %v344 = vpop.f32.mrb[0].mxu0
  %345 = vmatprep.mubr.f32.mxu0 0.0
  %346 = vmatmul.mubr.f32.gmra.mrb[0].mxu0 %v102
  %v347 = vpop.f32.mrb[0].mxu0
  %v348 = vadd.f32 0.0, %v347
  %v349 = vpop.f32.mrb[0].mxu0
  %350 = vmatprep.mubr.f32.mxu0 0.0
  %351 = vmatmul.mubr.f32.gmra.mrb[0].mxu0 %v105
  %v352 = vpop.f32.mrb[0].mxu0
  %v353 = vadd.f32 0.0, %v352
  %v354 = vpop.f32.mrb[0].mxu0
  %355 = vmatprep.mubr.f32.mxu0 0.0
  %356 = vmatmul.mubr.f32.gmra.mrb[0].mxu0 %v108
  %v357 = vpop.f32.mrb[0].mxu0
  %v358 = vadd.f32 0.0, %v357
  %v359 = vpop.f32.mrb[0].mxu0
  %360 = vmatprep.mubr.f32.mxu0 0.0
  %361 = vmatmul.mubr.f32.gmra.mrb[0].mxu0 %v111
  %v362 = vpop.f32.mrb[0].mxu0
  %v363 = vadd.f32 0.0, %v362
  %v364 = vpop.f32.mrb[0].mxu0
  %365 = vmatprep.mubr.f32.mxu0 0.0
  %366 = vmatmul.mubr.f32.gmra.mrb[0].mxu0 %v114
  %v367 = vpop.f32.mrb[0].mxu0
  %v368 = vadd.f32 0.0, %v367
  %v369 = vpop.f32.mrb[0].mxu0
  %370 = vmatprep.mubr.f32.mxu0 0.0
  %371 = vmatmul.mubr.f32.gmra.mrb[0].mxu0 %v117
  %v372 = vpop.f32.mrb[0].mxu0
  %v373 = vadd.f32 0.0, %v372
  %v374 = vpop.f32.mrb[0].mxu0
  %375 = vmatprep.mubr.f32.mxu0 0.0
  %376 = vmatmul.mubr.f32.gmra.mrb[0].mxu0 %v120
  %v377 = vpop.f32.mrb[0].mxu0
  %v378 = vadd.f32 0.0, %v377
  %v379 = vpop.f32.mrb[0].mxu0
  %380 = vmatprep.mubr.f32.mxu0 0.0
  %381 = vmatmul.mubr.f32.gmra.mrb[0].mxu0 %v123
  %v382 = vpop.f32.mrb[0].mxu0
  %v383 = vadd.f32 0.0, %v382
  %v384 = vpop.f32.mrb[0].mxu0
  %385 = vmatprep.mubr.f32.mxu0 0.0
  %386 = vmatmul.mubr.f32.gmra.mrb[0].mxu0 %v126
  %v387 = vpop.f32.mrb[0].mxu0
  %v388 = vadd.f32 0.0, %v387
  %v389 = vpop.f32.mrb[0].mxu0
  %390 = vmatprep.mubr.f32.mxu0 0.0
  %391 = vmatmul.mubr.f32.gmra.mrb[0].mxu0 %v129
  %v392 = vpop.f32.mrb[0].mxu0
  %v393 = vadd.f32 0.0, %v392
  %v394 = vpop.f32.mrb[0].mxu0
  %395 = vmatprep.mubr.f32.mxu0 0.0
  %396 = vmatmul.mubr.f32.gmra.mrb[0].mxu0 %v132
  %v397 = vpop.f32.mrb[0].mxu0
  %v398 = vadd.f32 0.0, %v397
  %v399 = vpop.f32.mrb[0].mxu0
  %400 = vmatprep.mubr.f32.mxu0 0.0
  %401 = vmatmul.mubr.f32.gmra.mrb[0].mxu0 %v135
  %v402 = vpop.f32.mrb[0].mxu0
  %v403 = vadd.f32 0.0, %v402
  %v404 = vpop.f32.mrb[0].mxu0
  %405 = vmatprep.mubr.f32.mxu0 0.0
  %406 = vmatmul.mubr.f32.gmra.mrb[0].mxu0 %v138
  %v407 = vpop.f32.mrb[0].mxu0
  %v408 = vadd.f32 0.0, %v407
  %v409 = vpop.f32.mrb[0].mxu0
  %410 = vmatprep.mubr.f32.mxu0 0.0
  %411 = vmatmul.mubr.f32.gmra.mrb[0].mxu0 %v141
  %v412 = vpop.f32.mrb[0].mxu0
  %v413 = vadd.f32 0.0, %v412
  %v414 = vpop.f32.mrb[0].mxu0
  %415 = vmatprep.mubr.f32.mxu0 0.0
  %416 = vmatmul.mubr.f32.gmra.mrb[0].mxu0 %v144
  %v417 = vpop.f32.mrb[0].mxu0
  %v418 = vadd.f32 0.0, %v417
  %v419 = vpop.f32.mrb[0].mxu0
  %420 = vmatprep.mubr.f32.mxu0 0.0
  %421 = vmatmul.mubr.f32.gmra.mrb[0].mxu0 %v147
  %v422 = vpop.f32.mrb[0].mxu0
  %v423 = vadd.f32 0.0, %v422
  %v424 = vpop.f32.mrb[0].mxu0
  %425 = vmatprep.mubr.f32.mxu0 0.0
  %426 = vmatmul.mubr.f32.gmra.mrb[0].mxu0 %v150
  %v427 = vpop.f32.mrb[0].mxu0
  %v428 = vadd.f32 0.0, %v427
  %v429 = vpop.f32.mrb[0].mxu0
  %430 = vmatprep.mubr.f32.mxu0 0.0
  %431 = vmatmul.mubr.f32.gmra.mrb[0].mxu0 %v153
  %v432 = vpop.f32.mrb[0].mxu0
  %v433 = vadd.f32 0.0, %v432
  %v434 = vpop.f32.mrb[0].mxu0
  %435 = vmatprep.mubr.f32.mxu0 0.0
  %436 = vmatmul.mubr.f32.gmra.mrb[0].mxu0 %v156
  %v437 = vpop.f32.mrb[0].mxu0
  %v438 = vadd.f32 0.0, %v437
  %v439 = vpop.f32.mrb[0].mxu0
  %440 = vmatprep.mubr.f32.mxu0 0.0
  %441 = vmatmul.mubr.f32.gmra.mrb[0].mxu0 %v159
  %v442 = vpop.f32.mrb[0].mxu0
  %v443 = vadd.f32 0.0, %v442
  %v444 = vpop.f32.mrb[0].mxu0
  %445 = vmatprep.mubr.f32.mxu0 0.0
  %446 = vmatmul.mubr.f32.gmra.mrb[0].mxu0 %v162
  %v447 = vpop.f32.mrb[0].mxu0
  %v448 = vadd.f32 0.0, %v447
  %v449 = vpop.f32.mrb[0].mxu0
  %450 = vmatprep.mubr.f32.mxu0 0.0
  %451 = vmatmul.mubr.f32.gmra.mrb[0].mxu0 %v165
  %v452 = vpop.f32.mrb[0].mxu0
  %v453 = vadd.f32 0.0, %v452
  %v454 = vpop.f32.mrb[0].mxu0
  %455 = vmatprep.mubr.f32.mxu0 0.0
  %456 = vmatmul.mubr.f32.gmra.mrb[0].mxu0 %v168
  %v457 = vpop.f32.mrb[0].mxu0
  %v458 = vadd.f32 0.0, %v457
  %v459 = vpop.f32.mrb[0].mxu0
  %460 = vmatprep.mubr.f32.mxu0 0.0
  %461 = vmatmul.mubr.f32.gmra.mrb[0].mxu0 %v171
  %v462 = vpop.f32.mrb[0].mxu0
  %v463 = vadd.f32 0.0, %v462
  %v464 = vpop.f32.mrb[0].mxu0
  %465 = vmatprep.mubr.f32.mxu0 0.0
  %466 = vmatmul.mubr.f32.gmra.mrb[0].mxu0 %v174
  %v467 = vpop.f32.mrb[0].mxu0
  %v468 = vadd.f32 0.0, %v467
  %v469 = vpop.f32.mrb[0].mxu0
  %470 = vmatprep.mubr.f32.mxu0 0.0
  %471 = vmatmul.mubr.f32.gmra.mrb[0].mxu0 %v177
  %v472 = vpop.f32.mrb[0].mxu0
  %v473 = vadd.f32 0.0, %v472
  %v474 = vpop.f32.mrb[0].mxu0
  %475 = vmatprep.mubr.f32.mxu0 0.0
  %476 = vmatmul.mubr.f32.gmra.mrb[0].mxu0 %v180
  %v477 = vpop.f32.mrb[0].mxu0
  %v478 = vadd.f32 0.0, %v477
  %v479 = vpop.f32.mrb[0].mxu0
  %480 = vmatprep.mubr.f32.mxu0 0.0
  %481 = vmatmul.mubr.f32.gmra.mrb[0].mxu0 %v183
  %v482 = vpop.f32.mrb[0].mxu0
  %v483 = vadd.f32 0.0, %v482
  %v484 = vpop.f32.mrb[0].mxu0
  %485 = vmatprep.mubr.f32.mxu0 0.0
  %486 = vmatmul.mubr.f32.gmra.mrb[0].mxu0 %v186
  %v487 = vpop.f32.mrb[0].mxu0
  %v488 = vadd.f32 0.0, %v487
  %v489 = vpop.f32.mrb[0].mxu0
  %490 = vmatprep.mubr.f32.mxu0 0.0
  %491 = vmatmul.mubr.f32.gmra.mrb[0].mxu0 %v189
  %v492 = vpop.f32.mrb[0].mxu0
  %v493 = vadd.f32 0.0, %v492
  %v494 = vpop.f32.mrb[0].mxu0
  %495 = vmatprep.mubr.f32.mxu0 0.0
  %496 = vmatmul.mubr.f32.gmra.mrb[0].mxu0 %v192
  %v497 = vpop.f32.mrb[0].mxu0
  %v498 = vadd.f32 0.0, %v497
  %v499 = vpop.f32.mrb[0].mxu0
  %500 = vmatprep.mubr.f32.mxu0 0.0
  %501 = vmatmul.mubr.f32.gmra.mrb[0].mxu0 %v195
  %v502 = vpop.f32.mrb[0].mxu0
  %v503 = vadd.f32 0.0, %v502
  %v504 = vpop.f32.mrb[0].mxu0
  %505 = vmatprep.mubr.f32.mxu0 0.0
  %506 = vmatmul.mubr.f32.gmra.mrb[0].mxu0 %v198
  %v507 = vpop.f32.mrb[0].mxu0
  %v508 = vadd.f32 0.0, %v507
  %v509 = vpop.f32.mrb[0].mxu0
  %510 = vmatprep.mubr.f32.mxu0 0.0
  %511 = vmatmul.mubr.f32.gmra.mrb[0].mxu0 %v201
  %v512 = vpop.f32.mrb[0].mxu0
  %v513 = vadd.f32 0.0, %v512
  %v514 = vpop.f32.mrb[0].mxu0
  %515 = vmatprep.mubr.f32.mxu0 0.0
  %516 = vmatmul.mubr.f32.gmra.mrb[0].mxu0 %v204
  %v517 = vpop.f32.mrb[0].mxu0
  %v518 = vadd.f32 0.0, %v517
  %v519 = vpop.f32.mrb[0].mxu0
  %520 = vmatprep.mubr.f32.mxu0 0.0
  %521 = vmatmul.mubr.f32.gmra.mrb[0].mxu0 %v207
  %v522 = vpop.f32.mrb[0].mxu0
  %v523 = vadd.f32 0.0, %v522
  %v524 = vpop.f32.mrb[0].mxu0
  %525 = vmatprep.mubr.f32.mxu0 0.0
  %526 = vmatmul.mubr.f32.gmra.mrb[0].mxu0 %v210
  %v527 = vpop.f32.mrb[0].mxu0
  %v528 = vadd.f32 0.0, %v527
  %v529 = vpop.f32.mrb[0].mxu0
  %530 = vmatprep.mubr.f32.mxu0 0.0
  %531 = vmatmul.mubr.f32.gmra.mrb[0].mxu0 %v213
  %v532 = vpop.f32.mrb[0].mxu0
  %v533 = vadd.f32 0.0, %v532
  %v534 = vpop.f32.mrb[0].mxu0
  %535 = vmatprep.mubr.f32.mxu0 0.0
  %536 = vmatmul.mubr.f32.gmra.mrb[0].mxu0 %v216
  %v537 = vpop.f32.mrb[0].mxu0
  %v538 = vadd.f32 0.0, %v537
  %v539 = vpop.f32.mrb[0].mxu0
  %540 = vmatprep.mubr.f32.mxu0 0.0
  %541 = vmatmul.mubr.f32.gmra.mrb[0].mxu0 %v219
  %v542 = vpop.f32.mrb[0].mxu0
  %v543 = vadd.f32 0.0, %v542
  %v544 = vpop.f32.mrb[0].mxu0
  %545 = vmatprep.mubr.f32.mxu0 0.0
  %546 = vmatmul.mubr.f32.gmra.mrb[0].mxu0 %v222
  %v547 = vpop.f32.mrb[0].mxu0
  %v548 = vadd.f32 0.0, %v547
  %v549 = vpop.f32.mrb[0].mxu0
  %550 = vmatprep.mubr.f32.mxu0 0.0
  %551 = vmatmul.mubr.f32.gmra.mrb[0].mxu0 %v225
  %v552 = vpop.f32.mrb[0].mxu0
  %v553 = vadd.f32 0.0, %v552
  %v554 = vpop.f32.mrb[0].mxu0
  %555 = vmatprep.mubr.f32.mxu0 0.0
  %556 = vmatmul.mubr.f32.gmra.mrb[0].mxu0 %v228
  %v557 = vpop.f32.mrb[0].mxu0
  %v558 = vadd.f32 0.0, %v557
  %v559 = vpop.f32.mrb[0].mxu0
  %560 = vmatprep.mubr.f32.mxu0 0.0
  %561 = vmatmul.mubr.f32.gmra.mrb[0].mxu0 %v231
  %v562 = vpop.f32.mrb[0].mxu0
  %v563 = vadd.f32 0.0, %v562
  %v564 = vpop.f32.mrb[0].mxu0
  %565 = vmatprep.mubr.f32.mxu0 0.0
  %566 = vmatmul.mubr.f32.gmra.mrb[0].mxu0 %v234
  %v567 = vpop.f32.mrb[0].mxu0
  %v568 = vadd.f32 0.0, %v567
  %v569 = vpop.f32.mrb[0].mxu0
  %570 = vmatprep.mubr.f32.mxu0 0.0
  %571 = vmatmul.mubr.f32.gmra.mrb[0].mxu0 %v237
  %v572 = vpop.f32.mrb[0].mxu0
  %v573 = vadd.f32 0.0, %v572
  %v574 = vpop.f32.mrb[0].mxu0
  %575 = vmatprep.mubr.f32.mxu0 0.0
  %576 = vmatmul.mubr.f32.gmra.mrb[0].mxu0 %v240
  %v577 = vpop.f32.mrb[0].mxu0
  %v578 = vadd.f32 0.0, %v577
  %v579 = vpop.f32.mrb[0].mxu0
  %580 = vmatprep.mubr.f32.mxu0 0.0
  %581 = vmatmul.mubr.f32.gmra.mrb[0].mxu0 %v243
  %v582 = vpop.f32.mrb[0].mxu0
  %v583 = vadd.f32 0.0, %v582
  %v584 = vpop.f32.mrb[0].mxu0
  %585 = vmatprep.mubr.f32.mxu0 0.0
  %586 = vmatmul.mubr.f32.gmra.mrb[0].mxu0 %v246
  %v587 = vpop.f32.mrb[0].mxu0
  %v588 = vadd.f32 0.0, %v587
  %v589 = vpop.f32.mrb[0].mxu0
  %590 = vmatprep.mubr.f32.mxu0 0.0
  %591 = vmatmul.mubr.f32.gmra.mrb[0].mxu0 %v249
  %v592 = vpop.f32.mrb[0].mxu0
  %v593 = vadd.f32 0.0, %v592
  %v594 = vpop.f32.mrb[0].mxu0
  %595 = vdwg.mxu0
  %v596 = vld [vmem:[%s2] sm:$0x1]
  %v598 = vlaneseq
  %v599 = vshrl.u32 %v598, 7
  %v600 = vsub.s32 0, %v599
  %v601 = vrot.slane %v596, %v600
  %v603 = vmul.f32 %v318, %v601
  %v604 = vmul.f32 %v323, %v601
  %v605 = vmul.f32 %v328, %v601
  %v606 = vmul.f32 %v333, %v601
  %v607 = vmul.f32 %v338, %v601
  %v608 = vmul.f32 %v343, %v601
  %v609 = vmul.f32 %v348, %v601
  %v610 = vmul.f32 %v353, %v601
  %v611 = vmul.f32 %v358, %v601
  %v612 = vmul.f32 %v363, %v601
  %v613 = vmul.f32 %v368, %v601
  %v614 = vmul.f32 %v373, %v601
  %v615 = vmul.f32 %v378, %v601
  %v616 = vmul.f32 %v383, %v601
  %v617 = vmul.f32 %v388, %v601
  %v618 = vmul.f32 %v393, %v601
  %v619 = vmul.f32 %v398, %v601
  %v620 = vmul.f32 %v403, %v601
  %v621 = vmul.f32 %v408, %v601
  %v622 = vmul.f32 %v413, %v601
  %v623 = vmul.f32 %v418, %v601
  %v624 = vmul.f32 %v423, %v601
  %v625 = vmul.f32 %v428, %v601
  %v626 = vmul.f32 %v433, %v601
  %v627 = vmul.f32 %v438, %v601
  %v628 = vmul.f32 %v443, %v601
  %v629 = vmul.f32 %v448, %v601
  %v630 = vmul.f32 %v453, %v601
  %v631 = vmul.f32 %v458, %v601
  %v632 = vmul.f32 %v463, %v601
  %v633 = vmul.f32 %v468, %v601
  %v634 = vmul.f32 %v473, %v601
  %v635 = vmul.f32 %v478, %v601
  %v636 = vmul.f32 %v483, %v601
  %v637 = vmul.f32 %v488, %v601
  %v638 = vmul.f32 %v493, %v601
  %v639 = vmul.f32 %v498, %v601
  %v640 = vmul.f32 %v503, %v601
  %v641 = vmul.f32 %v508, %v601
  %v642 = vmul.f32 %v513, %v601
  %v643 = vmul.f32 %v518, %v601
  %v644 = vmul.f32 %v523, %v601
  %v645 = vmul.f32 %v528, %v601
  %v646 = vmul.f32 %v533, %v601
  %v647 = vmul.f32 %v538, %v601
  %v648 = vmul.f32 %v543, %v601
  %v649 = vmul.f32 %v548, %v601
  %v650 = vmul.f32 %v553, %v601
  %v651 = vmul.f32 %v558, %v601
  %v652 = vmul.f32 %v563, %v601
  %v653 = vmul.f32 %v568, %v601
  %v654 = vmul.f32 %v573, %v601
  %v655 = vmul.f32 %v578, %v601
  %v656 = vmul.f32 %v583, %v601
  %v657 = vmul.f32 %v588, %v601
  %v658 = vmul.f32 %v593, %v601
  %v659 = vld [vmem:[%s3] sm:$0x1]
  %v661 = vlaneseq
  %v662 = vshrl.u32 %v661, 7
  %v663 = vsub.s32 0, %v662
  %v664 = vrot.slane %v659, %v663
  %v666 = vadd.f32 %v603, %v664
  %v667 = vadd.f32 %v604, %v664
  %v668 = vadd.f32 %v605, %v664
  %v669 = vadd.f32 %v606, %v664
  %v670 = vadd.f32 %v607, %v664
  %v671 = vadd.f32 %v608, %v664
  %v672 = vadd.f32 %v609, %v664
  %v673 = vadd.f32 %v610, %v664
  %v674 = vadd.f32 %v611, %v664
  %v675 = vadd.f32 %v612, %v664
  %v676 = vadd.f32 %v613, %v664
  %v677 = vadd.f32 %v614, %v664
  %v678 = vadd.f32 %v615, %v664
  %v679 = vadd.f32 %v616, %v664
  %v680 = vadd.f32 %v617, %v664
  %v681 = vadd.f32 %v618, %v664
  %v682 = vadd.f32 %v619, %v664
  %v683 = vadd.f32 %v620, %v664
  %v684 = vadd.f32 %v621, %v664
  %v685 = vadd.f32 %v622, %v664
  %v686 = vadd.f32 %v623, %v664
  %v687 = vadd.f32 %v624, %v664
  %v688 = vadd.f32 %v625, %v664
  %v689 = vadd.f32 %v626, %v664
  %v690 = vadd.f32 %v627, %v664
  %v691 = vadd.f32 %v628, %v664
  %v692 = vadd.f32 %v629, %v664
  %v693 = vadd.f32 %v630, %v664
  %v694 = vadd.f32 %v631, %v664
  %v695 = vadd.f32 %v632, %v664
  %v696 = vadd.f32 %v633, %v664
  %v697 = vadd.f32 %v634, %v664
  %v698 = vadd.f32 %v635, %v664
  %v699 = vadd.f32 %v636, %v664
  %v700 = vadd.f32 %v637, %v664
  %v701 = vadd.f32 %v638, %v664
  %v702 = vadd.f32 %v639, %v664
  %v703 = vadd.f32 %v640, %v664
  %v704 = vadd.f32 %v641, %v664
  %v705 = vadd.f32 %v642, %v664
  %v706 = vadd.f32 %v643, %v664
  %v707 = vadd.f32 %v644, %v664
  %v708 = vadd.f32 %v645, %v664
  %v709 = vadd.f32 %v646, %v664
  %v710 = vadd.f32 %v647, %v664
  %v711 = vadd.f32 %v648, %v664
  %v712 = vadd.f32 %v649, %v664
  %v713 = vadd.f32 %v650, %v664
  %v714 = vadd.f32 %v651, %v664
  %v715 = vadd.f32 %v652, %v664
  %v716 = vadd.f32 %v653, %v664
  %v717 = vadd.f32 %v654, %v664
  %v718 = vadd.f32 %v655, %v664
  %v719 = vadd.f32 %v656, %v664
  %v720 = vadd.f32 %v657, %v664
  %v721 = vadd.f32 %v658, %v664
  %vm722 = vcmp.gt.f32.partialorder %v666, 0.0
  %vm723 = vcmp.gt.f32.partialorder %v667, 0.0
  %vm724 = vcmp.gt.f32.partialorder %v668, 0.0
  %vm725 = vcmp.gt.f32.partialorder %v669, 0.0
  %vm726 = vcmp.gt.f32.partialorder %v670, 0.0
  %vm727 = vcmp.gt.f32.partialorder %v671, 0.0
  %vm728 = vcmp.gt.f32.partialorder %v672, 0.0
  %vm729 = vcmp.gt.f32.partialorder %v673, 0.0
  %vm730 = vcmp.gt.f32.partialorder %v674, 0.0
  %vm731 = vcmp.gt.f32.partialorder %v675, 0.0
  %vm732 = vcmp.gt.f32.partialorder %v676, 0.0
  %vm733 = vcmp.gt.f32.partialorder %v677, 0.0
  %vm734 = vcmp.gt.f32.partialorder %v678, 0.0
  %vm735 = vcmp.gt.f32.partialorder %v679, 0.0
  %vm736 = vcmp.gt.f32.partialorder %v680, 0.0
  %vm737 = vcmp.gt.f32.partialorder %v681, 0.0
  %vm738 = vcmp.gt.f32.partialorder %v682, 0.0
  %vm739 = vcmp.gt.f32.partialorder %v683, 0.0
  %vm740 = vcmp.gt.f32.partialorder %v684, 0.0
  %vm741 = vcmp.gt.f32.partialorder %v685, 0.0
  %vm742 = vcmp.gt.f32.partialorder %v686, 0.0
  %vm743 = vcmp.gt.f32.partialorder %v687, 0.0
  %vm744 = vcmp.gt.f32.partialorder %v688, 0.0
  %vm745 = vcmp.gt.f32.partialorder %v689, 0.0
  %vm746 = vcmp.gt.f32.partialorder %v690, 0.0
  %vm747 = vcmp.gt.f32.partialorder %v691, 0.0
  %vm748 = vcmp.gt.f32.partialorder %v692, 0.0
  %vm749 = vcmp.gt.f32.partialorder %v693, 0.0
  %vm750 = vcmp.gt.f32.partialorder %v694, 0.0
  %vm751 = vcmp.gt.f32.partialorder %v695, 0.0
  %vm752 = vcmp.gt.f32.partialorder %v696, 0.0
  %vm753 = vcmp.gt.f32.partialorder %v697, 0.0
  %vm754 = vcmp.gt.f32.partialorder %v698, 0.0
  %vm755 = vcmp.gt.f32.partialorder %v699, 0.0
  %vm756 = vcmp.gt.f32.partialorder %v700, 0.0
  %vm757 = vcmp.gt.f32.partialorder %v701, 0.0
  %vm758 = vcmp.gt.f32.partialorder %v702, 0.0
  %vm759 = vcmp.gt.f32.partialorder %v703, 0.0
  %vm760 = vcmp.gt.f32.partialorder %v704, 0.0
  %vm761 = vcmp.gt.f32.partialorder %v705, 0.0
  %vm762 = vcmp.gt.f32.partialorder %v706, 0.0
  %vm763 = vcmp.gt.f32.partialorder %v707, 0.0
  %vm764 = vcmp.gt.f32.partialorder %v708, 0.0
  %vm765 = vcmp.gt.f32.partialorder %v709, 0.0
  %vm766 = vcmp.gt.f32.partialorder %v710, 0.0
  %vm767 = vcmp.gt.f32.partialorder %v711, 0.0
  %vm768 = vcmp.gt.f32.partialorder %v712, 0.0
  %vm769 = vcmp.gt.f32.partialorder %v713, 0.0
  %vm770 = vcmp.gt.f32.partialorder %v714, 0.0
  %vm771 = vcmp.gt.f32.partialorder %v715, 0.0
  %vm772 = vcmp.gt.f32.partialorder %v716, 0.0
  %vm773 = vcmp.gt.f32.partialorder %v717, 0.0
  %vm774 = vcmp.gt.f32.partialorder %v718, 0.0
  %vm775 = vcmp.gt.f32.partialorder %v719, 0.0
  %vm776 = vcmp.gt.f32.partialorder %v720, 0.0
  %vm777 = vcmp.gt.f32.partialorder %v721, 0.0
  %v778 = vmin.f32 %v666, 0.0
  %v779 = vmin.f32 %v667, 0.0
  %v780 = vmin.f32 %v668, 0.0
  %v781 = vmin.f32 %v669, 0.0
  %v782 = vmin.f32 %v670, 0.0
  %v783 = vmin.f32 %v671, 0.0
  %v784 = vmin.f32 %v672, 0.0
  %v785 = vmin.f32 %v673, 0.0
  %v786 = vmin.f32 %v674, 0.0
  %v787 = vmin.f32 %v675, 0.0
  %v788 = vmin.f32 %v676, 0.0
  %v789 = vmin.f32 %v677, 0.0
  %v790 = vmin.f32 %v678, 0.0
  %v791 = vmin.f32 %v679, 0.0
  %v792 = vmin.f32 %v680, 0.0
  %v793 = vmin.f32 %v681, 0.0
  %v794 = vmin.f32 %v682, 0.0
  %v795 = vmin.f32 %v683, 0.0
  %v796 = vmin.f32 %v684, 0.0
  %v797 = vmin.f32 %v685, 0.0
  %v798 = vmin.f32 %v686, 0.0
  %v799 = vmin.f32 %v687, 0.0
  %v800 = vmin.f32 %v688, 0.0
  %v801 = vmin.f32 %v689, 0.0
  %v802 = vmin.f32 %v690, 0.0
  %v803 = vmin.f32 %v691, 0.0
  %v804 = vmin.f32 %v692, 0.0
  %v805 = vmin.f32 %v693, 0.0
  %v806 = vmin.f32 %v694, 0.0
  %v807 = vmin.f32 %v695, 0.0
  %v808 = vmin.f32 %v696, 0.0
  %v809 = vmin.f32 %v697, 0.0
  %v810 = vmin.f32 %v698, 0.0
  %v811 = vmin.f32 %v699, 0.0
  %v812 = vmin.f32 %v700, 0.0
  %v813 = vmin.f32 %v701, 0.0
  %v814 = vmin.f32 %v702, 0.0
  %v815 = vmin.f32 %v703, 0.0
  %v816 = vmin.f32 %v704, 0.0
  %v817 = vmin.f32 %v705, 0.0
  %v818 = vmin.f32 %v706, 0.0
  %v819 = vmin.f32 %v707, 0.0
  %v820 = vmin.f32 %v708, 0.0
  %v821 = vmin.f32 %v709, 0.0
  %v822 = vmin.f32 %v710, 0.0
  %v823 = vmin.f32 %v711, 0.0
  %v824 = vmin.f32 %v712, 0.0
  %v825 = vmin.f32 %v713, 0.0
  %v826 = vmin.f32 %v714, 0.0
  %v827 = vmin.f32 %v715, 0.0
  %v828 = vmin.f32 %v716, 0.0
  %v829 = vmin.f32 %v717, 0.0
  %v830 = vmin.f32 %v718, 0.0
  %v831 = vmin.f32 %v719, 0.0
  %v832 = vmin.f32 %v720, 0.0
  %v833 = vmin.f32 %v721, 0.0
  %v834 = vmul.f32 %v778, 1.442695
  %v835 = vpow.pop %v834
  %v836 = vmul.f32 %v779, 1.442695
  %v837 = vpow.pop %v836
  %v838 = vmul.f32 %v780, 1.442695
  %v839 = vpow.pop %v838
  %v840 = vmul.f32 %v781, 1.442695
  %v841 = vpow.pop %v840
  %v842 = vmul.f32 %v782, 1.442695
  %v843 = vpow.pop %v842
  %v844 = vmul.f32 %v783, 1.442695
  %v845 = vpow.pop %v844
  %v846 = vmul.f32 %v784, 1.442695
  %v847 = vpow.pop %v846
  %v848 = vmul.f32 %v785, 1.442695
  %v849 = vpow.pop %v848
  %v850 = vmul.f32 %v786, 1.442695
  %v851 = vpow.pop %v850
  %v852 = vmul.f32 %v787, 1.442695
  %v853 = vpow.pop %v852
  %v854 = vmul.f32 %v788, 1.442695
  %v855 = vpow.pop %v854
  %v856 = vmul.f32 %v789, 1.442695
  %v857 = vpow.pop %v856
  %v858 = vmul.f32 %v790, 1.442695
  %v859 = vpow.pop %v858
  %v860 = vmul.f32 %v791, 1.442695
  %v861 = vpow.pop %v860
  %v862 = vmul.f32 %v792, 1.442695
  %v863 = vpow.pop %v862
  %v864 = vmul.f32 %v793, 1.442695
  %v865 = vpow.pop %v864
  %v866 = vmul.f32 %v794, 1.442695
  %v867 = vpow.pop %v866
  %v868 = vmul.f32 %v795, 1.442695
  %v869 = vpow.pop %v868
  %v870 = vmul.f32 %v796, 1.442695
  %v871 = vpow.pop %v870
  %v872 = vmul.f32 %v797, 1.442695
  %v873 = vpow.pop %v872
  %v874 = vmul.f32 %v798, 1.442695
  %v875 = vpow.pop %v874
  %v876 = vmul.f32 %v799, 1.442695
  %v877 = vpow.pop %v876
  %v878 = vmul.f32 %v800, 1.442695
  %v879 = vpow.pop %v878
  %v880 = vmul.f32 %v801, 1.442695
  %v881 = vpow.pop %v880
  %v882 = vmul.f32 %v802, 1.442695
  %v883 = vpow.pop %v882
  %v884 = vmul.f32 %v803, 1.442695
  %v885 = vpow.pop %v884
  %v886 = vmul.f32 %v804, 1.442695
  %v887 = vpow.pop %v886
  %v888 = vmul.f32 %v805, 1.442695
  %v889 = vpow.pop %v888
  %v890 = vmul.f32 %v806, 1.442695
  %v891 = vpow.pop %v890
  %v892 = vmul.f32 %v807, 1.442695
  %v893 = vpow.pop %v892
  %v894 = vmul.f32 %v808, 1.442695
  %v895 = vpow.pop %v894
  %v896 = vmul.f32 %v809, 1.442695
  %v897 = vpow.pop %v896
  %v898 = vmul.f32 %v810, 1.442695
  %v899 = vpow.pop %v898
  %v900 = vmul.f32 %v811, 1.442695
  %v901 = vpow.pop %v900
  %v902 = vmul.f32 %v812, 1.442695
  %v903 = vpow.pop %v902
  %v904 = vmul.f32 %v813, 1.442695
  %v905 = vpow.pop %v904
  %v906 = vmul.f32 %v814, 1.442695
  %v907 = vpow.pop %v906
  %v908 = vmul.f32 %v815, 1.442695
  %v909 = vpow.pop %v908
  %v910 = vmul.f32 %v816, 1.442695
  %v911 = vpow.pop %v910
  %v912 = vmul.f32 %v817, 1.442695
  %v913 = vpow.pop %v912
  %v914 = vmul.f32 %v818, 1.442695
  %v915 = vpow.pop %v914
  %v916 = vmul.f32 %v819, 1.442695
  %v917 = vpow.pop %v916
  %v918 = vmul.f32 %v820, 1.442695
  %v919 = vpow.pop %v918
  %v920 = vmul.f32 %v821, 1.442695
  %v921 = vpow.pop %v920
  %v922 = vmul.f32 %v822, 1.442695
  %v923 = vpow.pop %v922
  %v924 = vmul.f32 %v823, 1.442695
  %v925 = vpow.pop %v924
  %v926 = vmul.f32 %v824, 1.442695
  %v927 = vpow.pop %v926
  %v928 = vmul.f32 %v825, 1.442695
  %v929 = vpow.pop %v928
  %v930 = vmul.f32 %v826, 1.442695
  %v931 = vpow.pop %v930
  %v932 = vmul.f32 %v827, 1.442695
  %v933 = vpow.pop %v932
  %v934 = vmul.f32 %v828, 1.442695
  %v935 = vpow.pop %v934
  %v936 = vmul.f32 %v829, 1.442695
  %v937 = vpow.pop %v936
  %v938 = vmul.f32 %v830, 1.442695
  %v939 = vpow.pop %v938
  %v940 = vmul.f32 %v831, 1.442695
  %v941 = vpow.pop %v940
  %v942 = vmul.f32 %v832, 1.442695
  %v943 = vpow.pop %v942
  %v944 = vmul.f32 %v833, 1.442695
  %v945 = vpow.pop %v944
  %v946 = vsub.f32 %v835, 1.0
  %v947 = vsub.f32 %v837, 1.0
  %v948 = vsub.f32 %v839, 1.0
  %v949 = vsub.f32 %v841, 1.0
  %v950 = vsub.f32 %v843, 1.0
  %v951 = vsub.f32 %v845, 1.0
  %v952 = vsub.f32 %v847, 1.0
  %v953 = vsub.f32 %v849, 1.0
  %v954 = vsub.f32 %v851, 1.0
  %v955 = vsub.f32 %v853, 1.0
  %v956 = vsub.f32 %v855, 1.0
  %v957 = vsub.f32 %v857, 1.0
  %v958 = vsub.f32 %v859, 1.0
  %v959 = vsub.f32 %v861, 1.0
  %v960 = vsub.f32 %v863, 1.0
  %v961 = vsub.f32 %v865, 1.0
  %v962 = vsub.f32 %v867, 1.0
  %v963 = vsub.f32 %v869, 1.0
  %v964 = vsub.f32 %v871, 1.0
  %v965 = vsub.f32 %v873, 1.0
  %v966 = vsub.f32 %v875, 1.0
  %v967 = vsub.f32 %v877, 1.0
  %v968 = vsub.f32 %v879, 1.0
  %v969 = vsub.f32 %v881, 1.0
  %v970 = vsub.f32 %v883, 1.0
  %v971 = vsub.f32 %v885, 1.0
  %v972 = vsub.f32 %v887, 1.0
  %v973 = vsub.f32 %v889, 1.0
  %v974 = vsub.f32 %v891, 1.0
  %v975 = vsub.f32 %v893, 1.0
  %v976 = vsub.f32 %v895, 1.0
  %v977 = vsub.f32 %v897, 1.0
  %v978 = vsub.f32 %v899, 1.0
  %v979 = vsub.f32 %v901, 1.0
  %v980 = vsub.f32 %v903, 1.0
  %v981 = vsub.f32 %v905, 1.0
  %v982 = vsub.f32 %v907, 1.0
  %v983 = vsub.f32 %v909, 1.0
  %v984 = vsub.f32 %v911, 1.0
  %v985 = vsub.f32 %v913, 1.0
  %v986 = vsub.f32 %v915, 1.0
  %v987 = vsub.f32 %v917, 1.0
  %v988 = vsub.f32 %v919, 1.0
  %v989 = vsub.f32 %v921, 1.0
  %v990 = vsub.f32 %v923, 1.0
  %v991 = vsub.f32 %v925, 1.0
  %v992 = vsub.f32 %v927, 1.0
  %v993 = vsub.f32 %v929, 1.0
  %v994 = vsub.f32 %v931, 1.0
  %v995 = vsub.f32 %v933, 1.0
  %v996 = vsub.f32 %v935, 1.0
  %v997 = vsub.f32 %v937, 1.0
  %v998 = vsub.f32 %v939, 1.0
  %v999 = vsub.f32 %v941, 1.0
  %v1000 = vsub.f32 %v943, 1.0
  %v1001 = vsub.f32 %v945, 1.0
  %v1002 = vsel %vm722, %v666, %v946
  %v1003 = vsel %vm723, %v667, %v947
  %v1004 = vsel %vm724, %v668, %v948
  %v1005 = vsel %vm725, %v669, %v949
  %v1006 = vsel %vm726, %v670, %v950
  %v1007 = vsel %vm727, %v671, %v951
  %v1008 = vsel %vm728, %v672, %v952
  %v1009 = vsel %vm729, %v673, %v953
  %v1010 = vsel %vm730, %v674, %v954
  %v1011 = vsel %vm731, %v675, %v955
  %v1012 = vsel %vm732, %v676, %v956
  %v1013 = vsel %vm733, %v677, %v957
  %v1014 = vsel %vm734, %v678, %v958
  %v1015 = vsel %vm735, %v679, %v959
  %v1016 = vsel %vm736, %v680, %v960
  %v1017 = vsel %vm737, %v681, %v961
  %v1018 = vsel %vm738, %v682, %v962
  %v1019 = vsel %vm739, %v683, %v963
  %v1020 = vsel %vm740, %v684, %v964
  %v1021 = vsel %vm741, %v685, %v965
  %v1022 = vsel %vm742, %v686, %v966
  %v1023 = vsel %vm743, %v687, %v967
  %v1024 = vsel %vm744, %v688, %v968
  %v1025 = vsel %vm745, %v689, %v969
  %v1026 = vsel %vm746, %v690, %v970
  %v1027 = vsel %vm747, %v691, %v971
  %v1028 = vsel %vm748, %v692, %v972
  %v1029 = vsel %vm749, %v693, %v973
  %v1030 = vsel %vm750, %v694, %v974
  %v1031 = vsel %vm751, %v695, %v975
  %v1032 = vsel %vm752, %v696, %v976
  %v1033 = vsel %vm753, %v697, %v977
  %v1034 = vsel %vm754, %v698, %v978
  %v1035 = vsel %vm755, %v699, %v979
  %v1036 = vsel %vm756, %v700, %v980
  %v1037 = vsel %vm757, %v701, %v981
  %v1038 = vsel %vm758, %v702, %v982
  %v1039 = vsel %vm759, %v703, %v983
  %v1040 = vsel %vm760, %v704, %v984
  %v1041 = vsel %vm761, %v705, %v985
  %v1042 = vsel %vm762, %v706, %v986
  %v1043 = vsel %vm763, %v707, %v987
  %v1044 = vsel %vm764, %v708, %v988
  %v1045 = vsel %vm765, %v709, %v989
  %v1046 = vsel %vm766, %v710, %v990
  %v1047 = vsel %vm767, %v711, %v991
  %v1048 = vsel %vm768, %v712, %v992
  %v1049 = vsel %vm769, %v713, %v993
  %v1050 = vsel %vm770, %v714, %v994
  %v1051 = vsel %vm771, %v715, %v995
  %v1052 = vsel %vm772, %v716, %v996
  %v1053 = vsel %vm773, %v717, %v997
  %v1054 = vsel %vm774, %v718, %v998
  %v1055 = vsel %vm775, %v719, %v999
  %v1056 = vsel %vm776, %v720, %v1000
  %v1057 = vsel %vm777, %v721, %v1001
  %v1058 = vmax.f32 %v1002, %v1009
  %v1059 = vmax.f32 %v1003, %v1010
  %v1060 = vmax.f32 %v1004, %v1011
  %v1061 = vmax.f32 %v1005, %v1012
  %v1062 = vmax.f32 %v1006, %v1013
  %v1063 = vmax.f32 %v1007, %v1014
  %v1064 = vmax.f32 %v1008, %v1015
  %v1065 = vmax.f32 %v1016, %v1023
  %v1066 = vmax.f32 %v1017, %v1024
  %v1067 = vmax.f32 %v1018, %v1025
  %v1068 = vmax.f32 %v1019, %v1026
  %v1069 = vmax.f32 %v1020, %v1027
  %v1070 = vmax.f32 %v1021, %v1028
  %v1071 = vmax.f32 %v1022, %v1029
  %v1072 = vmax.f32 %v1058, %v1065
  %v1073 = vmax.f32 %v1059, %v1066
  %v1074 = vmax.f32 %v1060, %v1067
  %v1075 = vmax.f32 %v1061, %v1068
  %v1076 = vmax.f32 %v1062, %v1069
  %v1077 = vmax.f32 %v1063, %v1070
  %v1078 = vmax.f32 %v1064, %v1071
  %vm1079 = vcmask 130048
  %1080 = vst.msk [vmem:[%s4] sm:$0xff] %vm1079, %v1072
  %1081 = vst.msk [vmem:[%s4 + $0x8] sm:$0xff] %vm1079, %v1073
  %1082 = vst.msk [vmem:[%s4 + $0x10] sm:$0xff] %vm1079, %v1074
  %1083 = vst.msk [vmem:[%s4 + $0x18] sm:$0xff] %vm1079, %v1075
  %1084 = vst.msk [vmem:[%s4 + $0x20] sm:$0xff] %vm1079, %v1076
  %1085 = vst.msk [vmem:[%s4 + $0x28] sm:$0xff] %vm1079, %v1077
  %1086 = vst.msk [vmem:[%s4 + $0x30] sm:$0xff] %vm1079, %v1078
  %v1087 = vmax.f32 %v1030, %v1037
  %v1088 = vmax.f32 %v1031, %v1038
  %v1089 = vmax.f32 %v1032, %v1039
  %v1090 = vmax.f32 %v1033, %v1040
  %v1091 = vmax.f32 %v1034, %v1041
  %v1092 = vmax.f32 %v1035, %v1042
  %v1093 = vmax.f32 %v1036, %v1043
  %v1094 = vmax.f32 %v1044, %v1051
  %v1095 = vmax.f32 %v1045, %v1052
  %v1096 = vmax.f32 %v1046, %v1053
  %v1097 = vmax.f32 %v1047, %v1054
  %v1098 = vmax.f32 %v1048, %v1055
  %v1099 = vmax.f32 %v1049, %v1056
  %v1100 = vmax.f32 %v1050, %v1057
  %v1101 = vmax.f32 %v1087, %v1094
  %v1102 = vmax.f32 %v1088, %v1095
  %v1103 = vmax.f32 %v1089, %v1096
  %v1104 = vmax.f32 %v1090, %v1097
  %v1105 = vmax.f32 %v1091, %v1098
  %v1106 = vmax.f32 %v1092, %v1099
  %v1107 = vmax.f32 %v1093, %v1100
  %1108 = vst.msk [vmem:[%s4 + $0x38] sm:$0xff] %vm1079, %v1101
  %1109 = vst.msk [vmem:[%s4 + $0x40] sm:$0xff] %vm1079, %v1102
  %1110 = vst.msk [vmem:[%s4 + $0x48] sm:$0xff] %vm1079, %v1103
  %1111 = vst.msk [vmem:[%s4 + $0x50] sm:$0xff] %vm1079, %v1104
  %1112 = vst.msk [vmem:[%s4 + $0x58] sm:$0xff] %vm1079, %v1105
  %1113 = vst.msk [vmem:[%s4 + $0x60] sm:$0xff] %vm1079, %v1106
  %1114 = vst.msk [vmem:[%s4 + $0x68] sm:$0xff] %vm1079, %v1107
  // Predicated region
  $region18: #{forward.5} parent=0 // pred_check
    _
  $region19: #{forward.5} parent=0 // pred_check_branch
    %1116 = sbr.rel (0) target = $region21
  $region20: #{forward.5} parent=0 // pred_region
    _
  $region21: #{forward.5} parent=0 // pred_fallthru
    _
  // Predicated region
  $region22: #{forward.5} parent=0 // pred_check
    _
  $region23: #{forward.5} parent=0 // pred_check_branch
    %1118 = sbr.rel (0) target = $region25
  $region24: #{forward.5} parent=0 // pred_region
    _
  $region25: #{forward.5} parent=0 // pred_fallthru
    _

// kernel: forward.6
$region0: #{forward.6}
  #allocation0 [shape = 'u32[]', space=smem, size = 0x4, offset = 0x4, fixed_abs, tag = 'smem constant byte address 0x4 - core index']
  #allocation1 [shape = 'u32[144,128]{1,0:T(1,128)}', space=vmem, size = 0x12000, scoped, tag = 'internal scratch']
  %s0 = inlined_call_operand.vmem [shape: f32[112,144], index: 0, kind: input, shape index: {}]
  %s1 = inlined_call_operand.vmem [shape: f32[144,32], index: 1, kind: input, shape index: {}]
  %s2 = inlined_call_operand.vmem [shape: f32[1,32], index: 2, kind: input, shape index: {}]
  %s3 = inlined_call_operand.vmem [shape: f32[1,32], index: 3, kind: input, shape index: {}]
  %s4 = inlined_call_operand.vmem [shape: f32[112,32], index: 4, kind: output, shape index: {}]
  %s5 = sld [smem:[#allocation0]]
  $region26: #{forward.6} parent=0
    _
  %s7 = ssub.s32 1, %s5
  %s8 = scalar_select 0, %s7, %s5
  // Predicated region
  $region2: #{forward.6} parent=0 // pred_check
    _
  $region3: #{forward.6} parent=0 // pred_check_branch
    %10 = sbr.rel (0) target = $region5
  $region4: #{forward.6} parent=0 // pred_region
    _
  $region5: #{forward.6} parent=0 // pred_fallthru
    _
  // Predicated region
  $region6: #{forward.6} parent=0 // pred_check
    _
  $region7: #{forward.6} parent=0 // pred_check_branch
    %12 = sbr.rel (0) target = $region9
  $region8: #{forward.6} parent=0 // pred_region
    _
  $region9: #{forward.6} parent=0 // pred_fallthru
    _
  // Predicated region
  $region10: #{forward.6} parent=0 // pred_check
    _
  $region11: #{forward.6} parent=0 // pred_check_branch
    %14 = sbr.rel (0) target = $region13
  $region12: #{forward.6} parent=0 // pred_region
    _
  $region13: #{forward.6} parent=0 // pred_fallthru
    _
  // Predicated region
  $region14: #{forward.6} parent=0 // pred_check
    _
  $region15: #{forward.6} parent=0 // pred_check_branch
    %16 = sbr.rel (0) target = $region17
  $region16: #{forward.6} parent=0 // pred_region
    _
  $region17: #{forward.6} parent=0 // pred_fallthru
    _
  %v17 = vld [vmem:[%s0] sm:$0xff]
  %v18 = vld [vmem:[%s0 + $0x8] sm:$0xff]
  %v19 = vld [vmem:[%s0 + $0x10] sm:$0xff]
  %v20 = vld [vmem:[%s0 + $0x18] sm:$0xff]
  %v21 = vld [vmem:[%s0 + $0x20] sm:$0xff]
  %v22 = vld [vmem:[%s0 + $0x28] sm:$0xff]
  %v23 = vld [vmem:[%s0 + $0x30] sm:$0xff]
  %v24 = vld [vmem:[%s0 + $0x38] sm:$0xff]
  %v25 = vld [vmem:[%s0 + $0x40] sm:$0xff]
  %v26 = vld [vmem:[%s0 + $0x48] sm:$0xff]
  %v27 = vld [vmem:[%s0 + $0x50] sm:$0xff]
  %v28 = vld [vmem:[%s0 + $0x58] sm:$0xff]
  %v29 = vld [vmem:[%s0 + $0x60] sm:$0xff]
  %v30 = vld [vmem:[%s0 + $0x68] sm:$0xff]
  %v31 = vld [vmem:[%s0 + $0x70] sm:$0xff]
  %v32 = vld [vmem:[%s0 + $0x78] sm:$0xff]
  %v33 = vld [vmem:[%s0 + $0x80] sm:$0xff]
  %v34 = vld [vmem:[%s0 + $0x88] sm:$0xff]
  %v35 = vld [vmem:[%s0 + $0x90] sm:$0xff]
  %v36 = vld [vmem:[%s0 + $0x98] sm:$0xff]
  %v37 = vld [vmem:[%s0 + $0xa0] sm:$0xff]
  %v38 = vld [vmem:[%s0 + $0xa8] sm:$0xff]
  %v39 = vld [vmem:[%s0 + $0xb0] sm:$0xff]
  %v40 = vld [vmem:[%s0 + $0xb8] sm:$0xff]
  %v41 = vld [vmem:[%s0 + $0xc0] sm:$0xff]
  %v42 = vld [vmem:[%s0 + $0xc8] sm:$0xff]
  %v43 = vld [vmem:[%s0 + $0xd0] sm:$0xff]
  %v44 = vld [vmem:[%s0 + $0xd8] sm:$0xff]
  %v45 = vld [vmem:[%s1] sm:$0xff]
  %v46 = vld [vmem:[%s1 + $0x8] sm:$0xff]
  %v47 = vld [vmem:[%s1 + $0x10] sm:$0xff]
  %v48 = vld [vmem:[%s1 + $0x18] sm:$0xff]
  %v49 = vld [vmem:[%s1 + $0x20] sm:$0xff]
  %v50 = vld [vmem:[%s1 + $0x28] sm:$0xff]
  %v51 = vld [vmem:[%s1 + $0x30] sm:$0xff]
  %v52 = vld [vmem:[%s1 + $0x38] sm:$0xff]
  %v53 = vld [vmem:[%s1 + $0x40] sm:$0xff]
  %v54 = vld [vmem:[%s1 + $0x48] sm:$0xff]
  %v55 = vld [vmem:[%s1 + $0x50] sm:$0xff]
  %v56 = vld [vmem:[%s1 + $0x58] sm:$0xff]
  %v57 = vld [vmem:[%s1 + $0x60] sm:$0xff]
  %v58 = vld [vmem:[%s1 + $0x68] sm:$0xff]
  %v59 = vld [vmem:[%s1 + $0x70] sm:$0xff]
  %v60 = vld [vmem:[%s1 + $0x78] sm:$0xff]
  %v61 = vld [vmem:[%s1 + $0x80] sm:$0xff]
  %v62 = vld [vmem:[%s1 + $0x88] sm:$0xff]
  %vm63 = vcmask 130048
  %v65 = vsel %vm63, %v18, 0
  %v68 = vsel %vm63, %v20, 0
  %v71 = vsel %vm63, %v22, 0
  %v74 = vsel %vm63, %v24, 0
  %v77 = vsel %vm63, %v26, 0
  %v80 = vsel %vm63, %v28, 0
  %v83 = vsel %vm63, %v30, 0
  %v86 = vsel %vm63, %v32, 0
  %v89 = vsel %vm63, %v34, 0
  %v92 = vsel %vm63, %v36, 0
  %v95 = vsel %vm63, %v38, 0
  %v98 = vsel %vm63, %v40, 0
  %v101 = vsel %vm63, %v42, 0
  %v104 = vsel %vm63, %v44, 0
  %106 = vmatprep.subr.mxu0 0.0
  %107 = vmatpush1.msra.mxu0 %v45
  %108 = vmatprep.subr.mxu0 0.0
  %109 = vmatpush1.msra.mxu0 %v46
  %110 = vmatprep.subr.mxu0 0.0
  %111 = vmatpush1.msra.mxu0 %v47
  %112 = vmatprep.subr.mxu0 0.0
  %113 = vmatpush1.msra.mxu0 %v48
  %114 = vmatprep.subr.mxu0 0.0
  %115 = vmatpush1.msra.mxu0 %v49
  %116 = vmatprep.subr.mxu0 0.0
  %117 = vmatpush1.msra.mxu0 %v50
  %118 = vmatprep.subr.mxu0 0.0
  %119 = vmatpush1.msra.mxu0 %v51
  %120 = vmatprep.subr.mxu0 0.0
  %121 = vmatpush1.msra.mxu0 %v52
  %122 = vmatprep.subr.mxu0 0.0
  %123 = vmatpush1.msra.mxu0 %v53
  %124 = vmatprep.subr.mxu0 0.0
  %125 = vmatpush1.msra.mxu0 %v54
  %126 = vmatprep.subr.mxu0 0.0
  %127 = vmatpush1.msra.mxu0 %v55
  %128 = vmatprep.subr.mxu0 0.0
  %129 = vmatpush1.msra.mxu0 %v56
  %130 = vmatprep.subr.mxu0 0.0
  %131 = vmatpush1.msra.mxu0 %v57
  %132 = vmatprep.subr.mxu0 0.0
  %133 = vmatpush1.msra.mxu0 %v58
  %134 = vmatprep.subr.mxu0 0.0
  %135 = vmatpush1.msra.mxu0 %v59
  %136 = vmatprep.subr.mxu0 0.0
  %137 = vmatpush1.msra.mxu0 %v60
  %138 = vmatprep.subr.mxu0 0.0
  %139 = vmatpush1.msra.mxu0 %v61
  %140 = vmatprep.subr.mxu0 0.0
  %141 = vmatpush1.msra.mxu0 %v62
  %142 = vmatprep.subr.mxu0 0.0
  %143 = vmatpush1.msra.mxu0 0.0
  %144 = vmatprep.subr.mxu0 0.0
  %145 = vmatpush1.msra.mxu0 0.0
  %146 = vmatprep.subr.mxu0 0.0
  %147 = vmatpush1.msra.mxu0 0.0
  %148 = vmatprep.subr.mxu0 0.0
  %149 = vmatpush1.msra.mxu0 0.0
  %150 = vmatprep.subr.mxu0 0.0
  %151 = vmatpush1.msra.mxu0 0.0
  %152 = vmatprep.subr.mxu0 0.0
  %153 = vmatpush1.msra.mxu0 0.0
  %154 = vmatprep.subr.mxu0 0.0
  %155 = vmatpush1.msra.mxu0 0.0
  %156 = vmatprep.subr.mxu0 0.0
  %157 = vmatpush1.msra.mxu0 0.0
  %158 = vmatprep.subr.mxu0 0.0
  %159 = vmatpush1.msra.mxu0 0.0
  %160 = vmatprep.subr.mxu0 0.0
  %161 = vmatpush1.msra.mxu0 0.0
  %162 = vmatprep.subr.mxu0 0.0
  %163 = vmatpush1.msra.mxu0 0.0
  %164 = vmatprep.subr.mxu0 0.0
  %165 = vmatpush1.msra.mxu0 0.0
  %166 = vmatprep.subr.mxu0 0.0
  %167 = vmatpush1.msra.mxu0 0.0
  %168 = vmatprep.subr.mxu0 0.0
  %169 = vmatpush1.msra.mxu0 0.0
  %170 = vmatprep.mubr.f32.mxu0 %v65
  %171 = vmatmul.mubr.f32.gmra.mrb[0].mxu0 %v17
  %v172 = vpop.f32.mrb[0].mxu0
  %v173 = vadd.f32 0.0, %v172
  %v174 = vpop.f32.mrb[0].mxu0
  %175 = vmatprep.mubr.f32.mxu0 %v68
  %176 = vmatmul.mubr.f32.gmra.mrb[0].mxu0 %v19
  %v177 = vpop.f32.mrb[0].mxu0
  %v178 = vadd.f32 0.0, %v177
  %v179 = vpop.f32.mrb[0].mxu0
  %180 = vmatprep.mubr.f32.mxu0 %v71
  %181 = vmatmul.mubr.f32.gmra.mrb[0].mxu0 %v21
  %v182 = vpop.f32.mrb[0].mxu0
  %v183 = vadd.f32 0.0, %v182
  %v184 = vpop.f32.mrb[0].mxu0
  %185 = vmatprep.mubr.f32.mxu0 %v74
  %186 = vmatmul.mubr.f32.gmra.mrb[0].mxu0 %v23
  %v187 = vpop.f32.mrb[0].mxu0
  %v188 = vadd.f32 0.0, %v187
  %v189 = vpop.f32.mrb[0].mxu0
  %190 = vmatprep.mubr.f32.mxu0 %v77
  %191 = vmatmul.mubr.f32.gmra.mrb[0].mxu0 %v25
  %v192 = vpop.f32.mrb[0].mxu0
  %v193 = vadd.f32 0.0, %v192
  %v194 = vpop.f32.mrb[0].mxu0
  %195 = vmatprep.mubr.f32.mxu0 %v80
  %196 = vmatmul.mubr.f32.gmra.mrb[0].mxu0 %v27
  %v197 = vpop.f32.mrb[0].mxu0
  %v198 = vadd.f32 0.0, %v197
  %v199 = vpop.f32.mrb[0].mxu0
  %200 = vmatprep.mubr.f32.mxu0 %v83
  %201 = vmatmul.mubr.f32.gmra.mrb[0].mxu0 %v29
  %v202 = vpop.f32.mrb[0].mxu0
  %v203 = vadd.f32 0.0, %v202
  %v204 = vpop.f32.mrb[0].mxu0
  %205 = vmatprep.mubr.f32.mxu0 %v86
  %206 = vmatmul.mubr.f32.gmra.mrb[0].mxu0 %v31
  %v207 = vpop.f32.mrb[0].mxu0
  %v208 = vadd.f32 0.0, %v207
  %v209 = vpop.f32.mrb[0].mxu0
  %210 = vmatprep.mubr.f32.mxu0 %v89
  %211 = vmatmul.mubr.f32.gmra.mrb[0].mxu0 %v33
  %v212 = vpop.f32.mrb[0].mxu0
  %v213 = vadd.f32 0.0, %v212
  %v214 = vpop.f32.mrb[0].mxu0
  %215 = vmatprep.mubr.f32.mxu0 %v92
  %216 = vmatmul.mubr.f32.gmra.mrb[0].mxu0 %v35
  %v217 = vpop.f32.mrb[0].mxu0
  %v218 = vadd.f32 0.0, %v217
  %v219 = vpop.f32.mrb[0].mxu0
  %220 = vmatprep.mubr.f32.mxu0 %v95
  %221 = vmatmul.mubr.f32.gmra.mrb[0].mxu0 %v37
  %v222 = vpop.f32.mrb[0].mxu0
  %v223 = vadd.f32 0.0, %v222
  %v224 = vpop.f32.mrb[0].mxu0
  %225 = vmatprep.mubr.f32.mxu0 %v98
  %226 = vmatmul.mubr.f32.gmra.mrb[0].mxu0 %v39
  %v227 = vpop.f32.mrb[0].mxu0
  %v228 = vadd.f32 0.0, %v227
  %v229 = vpop.f32.mrb[0].mxu0
  %230 = vmatprep.mubr.f32.mxu0 %v101
  %231 = vmatmul.mubr.f32.gmra.mrb[0].mxu0 %v41
  %v232 = vpop.f32.mrb[0].mxu0
  %v233 = vadd.f32 0.0, %v232
  %v234 = vpop.f32.mrb[0].mxu0
  %235 = vmatprep.mubr.f32.mxu0 %v104
  %236 = vmatmul.mubr.f32.gmra.mrb[0].mxu0 %v43
  %v237 = vpop.f32.mrb[0].mxu0
  %v238 = vadd.f32 0.0, %v237
  %v239 = vpop.f32.mrb[0].mxu0
  %240 = vdwg.mxu0
  %v241 = vld [vmem:[%s2] sm:$0x1]
  %v243 = vlaneseq
  %v244 = vshrl.u32 %v243, 7
  %v245 = vsub.s32 0, %v244
  %v246 = vrot.slane %v241, %v245
  %v248 = vmul.f32 %v173, %v246
  %v249 = vmul.f32 %v178, %v246
  %v250 = vmul.f32 %v183, %v246
  %v251 = vmul.f32 %v188, %v246
  %v252 = vmul.f32 %v193, %v246
  %v253 = vmul.f32 %v198, %v246
  %v254 = vmul.f32 %v203, %v246
  %v255 = vmul.f32 %v208, %v246
  %v256 = vmul.f32 %v213, %v246
  %v257 = vmul.f32 %v218, %v246
  %v258 = vmul.f32 %v223, %v246
  %v259 = vmul.f32 %v228, %v246
  %v260 = vmul.f32 %v233, %v246
  %v261 = vmul.f32 %v238, %v246
  %v262 = vld [vmem:[%s3] sm:$0x1]
  %v264 = vlaneseq
  %v265 = vshrl.u32 %v264, 7
  %v266 = vsub.s32 0, %v265
  %v267 = vrot.slane %v262, %v266
  %v269 = vadd.f32 %v248, %v267
  %v270 = vadd.f32 %v249, %v267
  %v271 = vadd.f32 %v250, %v267
  %v272 = vadd.f32 %v251, %v267
  %v273 = vadd.f32 %v252, %v267
  %v274 = vadd.f32 %v253, %v267
  %v275 = vadd.f32 %v254, %v267
  %v276 = vadd.f32 %v255, %v267
  %v277 = vadd.f32 %v256, %v267
  %v278 = vadd.f32 %v257, %v267
  %v279 = vadd.f32 %v258, %v267
  %v280 = vadd.f32 %v259, %v267
  %v281 = vadd.f32 %v260, %v267
  %v282 = vadd.f32 %v261, %v267
  %vm283 = vcmp.gt.f32.partialorder %v269, 0.0
  %vm284 = vcmp.gt.f32.partialorder %v270, 0.0
  %vm285 = vcmp.gt.f32.partialorder %v271, 0.0
  %vm286 = vcmp.gt.f32.partialorder %v272, 0.0
  %vm287 = vcmp.gt.f32.partialorder %v273, 0.0
  %vm288 = vcmp.gt.f32.partialorder %v274, 0.0
  %vm289 = vcmp.gt.f32.partialorder %v275, 0.0
  %vm290 = vcmp.gt.f32.partialorder %v276, 0.0
  %vm291 = vcmp.gt.f32.partialorder %v277, 0.0
  %vm292 = vcmp.gt.f32.partialorder %v278, 0.0
  %vm293 = vcmp.gt.f32.partialorder %v279, 0.0
  %vm294 = vcmp.gt.f32.partialorder %v280, 0.0
  %vm295 = vcmp.gt.f32.partialorder %v281, 0.0
  %vm296 = vcmp.gt.f32.partialorder %v282, 0.0
  %v297 = vmin.f32 %v269, 0.0
  %v298 = vmin.f32 %v270, 0.0
  %v299 = vmin.f32 %v271, 0.0
  %v300 = vmin.f32 %v272, 0.0
  %v301 = vmin.f32 %v273, 0.0
  %v302 = vmin.f32 %v274, 0.0
  %v303 = vmin.f32 %v275, 0.0
  %v304 = vmin.f32 %v276, 0.0
  %v305 = vmin.f32 %v277, 0.0
  %v306 = vmin.f32 %v278, 0.0
  %v307 = vmin.f32 %v279, 0.0
  %v308 = vmin.f32 %v280, 0.0
  %v309 = vmin.f32 %v281, 0.0
  %v310 = vmin.f32 %v282, 0.0
  %v311 = vmul.f32 %v297, 1.442695
  %v312 = vpow.pop %v311
  %v313 = vmul.f32 %v298, 1.442695
  %v314 = vpow.pop %v313
  %v315 = vmul.f32 %v299, 1.442695
  %v316 = vpow.pop %v315
  %v317 = vmul.f32 %v300, 1.442695
  %v318 = vpow.pop %v317
  %v319 = vmul.f32 %v301, 1.442695
  %v320 = vpow.pop %v319
  %v321 = vmul.f32 %v302, 1.442695
  %v322 = vpow.pop %v321
  %v323 = vmul.f32 %v303, 1.442695
  %v324 = vpow.pop %v323
  %v325 = vmul.f32 %v304, 1.442695
  %v326 = vpow.pop %v325
  %v327 = vmul.f32 %v305, 1.442695
  %v328 = vpow.pop %v327
  %v329 = vmul.f32 %v306, 1.442695
  %v330 = vpow.pop %v329
  %v331 = vmul.f32 %v307, 1.442695
  %v332 = vpow.pop %v331
  %v333 = vmul.f32 %v308, 1.442695
  %v334 = vpow.pop %v333
  %v335 = vmul.f32 %v309, 1.442695
  %v336 = vpow.pop %v335
  %v337 = vmul.f32 %v310, 1.442695
  %v338 = vpow.pop %v337
  %v339 = vsub.f32 %v312, 1.0
  %v340 = vsub.f32 %v314, 1.0
  %v341 = vsub.f32 %v316, 1.0
  %v342 = vsub.f32 %v318, 1.0
  %v343 = vsub.f32 %v320, 1.0
  %v344 = vsub.f32 %v322, 1.0
  %v345 = vsub.f32 %v324, 1.0
  %v346 = vsub.f32 %v326, 1.0
  %v347 = vsub.f32 %v328, 1.0
  %v348 = vsub.f32 %v330, 1.0
  %v349 = vsub.f32 %v332, 1.0
  %v350 = vsub.f32 %v334, 1.0
  %v351 = vsub.f32 %v336, 1.0
  %v352 = vsub.f32 %v338, 1.0
  %v353 = vsel %vm283, %v269, %v339
  %v354 = vsel %vm284, %v270, %v340
  %v355 = vsel %vm285, %v271, %v341
  %v356 = vsel %vm286, %v272, %v342
  %v357 = vsel %vm287, %v273, %v343
  %v358 = vsel %vm288, %v274, %v344
  %v359 = vsel %vm289, %v275, %v345
  %v360 = vsel %vm290, %v276, %v346
  %v361 = vsel %vm291, %v277, %v347
  %v362 = vsel %vm292, %v278, %v348
  %v363 = vsel %vm293, %v279, %v349
  %v364 = vsel %vm294, %v280, %v350
  %v365 = vsel %vm295, %v281, %v351
  %v366 = vsel %vm296, %v282, %v352
  %vm367 = vcmask 261120
  %368 = vst.msk [vmem:[%s4] sm:$0xff] %vm367, %v353
  %369 = vst.msk [vmem:[%s4 + $0x8] sm:$0xff] %vm367, %v354
  %370 = vst.msk [vmem:[%s4 + $0x10] sm:$0xff] %vm367, %v355
  %371 = vst.msk [vmem:[%s4 + $0x18] sm:$0xff] %vm367, %v356
  %372 = vst.msk [vmem:[%s4 + $0x20] sm:$0xff] %vm367, %v357
  %373 = vst.msk [vmem:[%s4 + $0x28] sm:$0xff] %vm367, %v358
  %374 = vst.msk [vmem:[%s4 + $0x30] sm:$0xff] %vm367, %v359
  %375 = vst.msk [vmem:[%s4 + $0x38] sm:$0xff] %vm367, %v360
  %376 = vst.msk [vmem:[%s4 + $0x40] sm:$0xff] %vm367, %v361
  %377 = vst.msk [vmem:[%s4 + $0x48] sm:$0xff] %vm367, %v362
  %378 = vst.msk [vmem:[%s4 + $0x50] sm:$0xff] %vm367, %v363
  %379 = vst.msk [vmem:[%s4 + $0x58] sm:$0xff] %vm367, %v364
  %380 = vst.msk [vmem:[%s4 + $0x60] sm:$0xff] %vm367, %v365
  %381 = vst.msk [vmem:[%s4 + $0x68] sm:$0xff] %vm367, %v366
  // Predicated region
  $region18: #{forward.6} parent=0 // pred_check
    _
  $region19: #{forward.6} parent=0 // pred_check_branch
    %383 = sbr.rel (0) target = $region21
  $region20: #{forward.6} parent=0 // pred_region
    _
  $region21: #{forward.6} parent=0 // pred_fallthru
    _
  // Predicated region
  $region22: #{forward.6} parent=0 // pred_check
    _
  $region23: #{forward.6} parent=0 // pred_check_branch
    %385 = sbr.rel (0) target = $region25
  $region24: #{forward.6} parent=0 // pred_region
    _
  $region25: #{forward.6} parent=0 // pred_fallthru
    _

// kernel: forward.7
$region0: #{forward.7}
  #allocation0 [shape = 'u32[]', space=smem, size = 0x4, offset = 0x4, fixed_abs, tag = 'smem constant byte address 0x4 - core index']
  #allocation1 [shape = 'u32[144,128]{1,0:T(1,128)}', space=vmem, size = 0x12000, scoped, tag = 'internal scratch']
  %s0 = inlined_call_operand.vmem [shape: f32[2,1568], index: 0, kind: input, shape index: {}]
  %s1 = inlined_call_operand.vmem [shape: f32[1568,64], index: 1, kind: input, shape index: {}]
  %s2 = inlined_call_operand.vmem [shape: f32[1,64], index: 2, kind: input, shape index: {}]
  %s3 = inlined_call_operand.vmem [shape: f32[64,32], index: 3, kind: input, shape index: {}]
  %s4 = inlined_call_operand.vmem [shape: f32[1,32], index: 4, kind: input, shape index: {}]
  %s5 = inlined_call_operand.vmem [shape: f32[32,25], index: 5, kind: input, shape index: {}]
  %s6 = inlined_call_operand.vmem [shape: f32[1,25], index: 6, kind: input, shape index: {}]
  %s7 = inlined_call_operand.hbm [shape: f32[2,25], index: 7, kind: output, shape index: {}]
  %s8 = sld [smem:[#allocation0]]
  $region38: #{forward.7} parent=0
    _
  %s10 = ssub.s32 1, %s8
  %s11 = scalar_select 0, %s10, %s8
  $region1: #{forward.7} parent=0
    #allocation2 [shape = 'u8[1024]{0}', space=vmem, size = 0x400, scoped, tag = 'output window, operand 0, single buffered']
    #allocation3 [shape = 's32[1]{0}', space=sflag, size = 0x4, scoped, tag = 'scoped memory for forward.7']
    %12 = vsyncpa [#allocation3], 0
    // Predicated region
    $region2: #{forward.7} parent=1 // pred_check
      _
    $region3: #{forward.7} parent=1 // pred_check_branch
      %14 = sbr.rel (0) target = $region5
    $region4: #{forward.7} parent=1 // pred_region
      _
    $region5: #{forward.7} parent=1 // pred_fallthru
      _
    // Predicated region
    $region6: #{forward.7} parent=1 // pred_check
      _
    $region7: #{forward.7} parent=1 // pred_check_branch
      %16 = sbr.rel (0) target = $region9
    $region8: #{forward.7} parent=1 // pred_region
      _
    $region9: #{forward.7} parent=1 // pred_fallthru
      _
    // Predicated region
    $region10: #{forward.7} parent=1 // pred_check
      _
    $region11: #{forward.7} parent=1 // pred_check_branch
      %18 = sbr.rel (0) target = $region13
    $region12: #{forward.7} parent=1 // pred_region
      _
    $region13: #{forward.7} parent=1 // pred_fallthru
      _
    // Predicated region
    $region14: #{forward.7} parent=1 // pred_check
      _
    $region15: #{forward.7} parent=1 // pred_check_branch
      %20 = sbr.rel (0) target = $region17
    $region16: #{forward.7} parent=1 // pred_region
      _
    $region17: #{forward.7} parent=1 // pred_fallthru
      _
    // Predicated region
    $region18: #{forward.7} parent=1 // pred_check
      _
    $region19: #{forward.7} parent=1 // pred_check_branch
      %22 = sbr.rel (0) target = $region21
    $region20: #{forward.7} parent=1 // pred_region
      _
    $region21: #{forward.7} parent=1 // pred_fallthru
      _
    // Predicated region
    $region22: #{forward.7} parent=1 // pred_check
      _
    $region23: #{forward.7} parent=1 // pred_check_branch
      %24 = sbr.rel (0) target = $region25
    $region24: #{forward.7} parent=1 // pred_region
      _
    $region25: #{forward.7} parent=1 // pred_fallthru
      _
    // Predicated region
    $region26: #{forward.7} parent=1 // pred_check
      _
    $region27: #{forward.7} parent=1 // pred_check_branch
      %26 = sbr.rel (0) target = $region29
    $region28: #{forward.7} parent=1 // pred_region
      _
    $region29: #{forward.7} parent=1 // pred_fallthru
      _
    %v27 = vld [vmem:[%s0] sm:$0xff]
    %v28 = vld [vmem:[%s0 + $0x8] sm:$0xff]
    %v29 = vld [vmem:[%s0 + $0x10] sm:$0xff]
    %v30 = vld [vmem:[%s0 + $0x18] sm:$0x3]
    %v31 = vld [vmem:[%s1] sm:$0xff]
    %v32 = vld [vmem:[%s1 + $0x8] sm:$0xff]
    %v33 = vld [vmem:[%s1 + $0x10] sm:$0xff]
    %v34 = vld [vmem:[%s1 + $0x18] sm:$0xff]
    %v35 = vld [vmem:[%s1 + $0x20] sm:$0xff]
    %v36 = vld [vmem:[%s1 + $0x28] sm:$0xff]
    %v37 = vld [vmem:[%s1 + $0x30] sm:$0xff]
    %v38 = vld [vmem:[%s1 + $0x38] sm:$0xff]
    %v39 = vld [vmem:[%s1 + $0x40] sm:$0xff]
    %v40 = vld [vmem:[%s1 + $0x48] sm:$0xff]
    %v41 = vld [vmem:[%s1 + $0x50] sm:$0xff]
    %v42 = vld [vmem:[%s1 + $0x58] sm:$0xff]
    %v43 = vld [vmem:[%s1 + $0x60] sm:$0xff]
    %v44 = vld [vmem:[%s1 + $0x68] sm:$0xff]
    %v45 = vld [vmem:[%s1 + $0x70] sm:$0xff]
    %v46 = vld [vmem:[%s1 + $0x78] sm:$0xff]
    %v47 = vld [vmem:[%s1 + $0x80] sm:$0xff]
    %v48 = vld [vmem:[%s1 + $0x88] sm:$0xff]
    %v49 = vld [vmem:[%s1 + $0x90] sm:$0xff]
    %v50 = vld [vmem:[%s1 + $0x98] sm:$0xff]
    %v51 = vld [vmem:[%s1 + $0xa0] sm:$0xff]
    %v52 = vld [vmem:[%s1 + $0xa8] sm:$0xff]
    %v53 = vld [vmem:[%s1 + $0xb0] sm:$0xff]
    %v54 = vld [vmem:[%s1 + $0xb8] sm:$0xff]
    %v55 = vld [vmem:[%s1 + $0xc0] sm:$0xff]
    %v56 = vld [vmem:[%s1 + $0xc8] sm:$0xff]
    %v57 = vld [vmem:[%s1 + $0xd0] sm:$0xff]
    %v58 = vld [vmem:[%s1 + $0xd8] sm:$0xff]
    %v59 = vld [vmem:[%s1 + $0xe0] sm:$0xff]
    %v60 = vld [vmem:[%s1 + $0xe8] sm:$0xff]
    %v61 = vld [vmem:[%s1 + $0xf0] sm:$0xff]
    %v62 = vld [vmem:[%s1 + $0xf8] sm:$0xff]
    %v63 = vld [vmem:[%s1 + $0x100] sm:$0xff]
    %v64 = vld [vmem:[%s1 + $0x108] sm:$0xff]
    %v65 = vld [vmem:[%s1 + $0x110] sm:$0xff]
    %v66 = vld [vmem:[%s1 + $0x118] sm:$0xff]
    %v67 = vld [vmem:[%s1 + $0x120] sm:$0xff]
    %v68 = vld [vmem:[%s1 + $0x128] sm:$0xff]
    %v69 = vld [vmem:[%s1 + $0x130] sm:$0xff]
    %v70 = vld [vmem:[%s1 + $0x138] sm:$0xff]
    %v71 = vld [vmem:[%s1 + $0x140] sm:$0xff]
    %v72 = vld [vmem:[%s1 + $0x148] sm:$0xff]
    %v73 = vld [vmem:[%s1 + $0x150] sm:$0xff]
    %v74 = vld [vmem:[%s1 + $0x158] sm:$0xff]
    %v75 = vld [vmem:[%s1 + $0x160] sm:$0xff]
    %v76 = vld [vmem:[%s1 + $0x168] sm:$0xff]
    %v77 = vld [vmem:[%s1 + $0x170] sm:$0xff]
    %v78 = vld [vmem:[%s1 + $0x178] sm:$0xff]
    %v79 = vld [vmem:[%s1 + $0x180] sm:$0xff]
    %v80 = vld [vmem:[%s1 + $0x188] sm:$0xff]
    %v81 = vld [vmem:[%s1 + $0x190] sm:$0xff]
    %v82 = vld [vmem:[%s1 + $0x198] sm:$0xff]
    %v83 = vld [vmem:[%s1 + $0x1a0] sm:$0xff]
    %v84 = vld [vmem:[%s1 + $0x1a8] sm:$0xff]
    %v85 = vld [vmem:[%s1 + $0x1b0] sm:$0xff]
    %v86 = vld [vmem:[%s1 + $0x1b8] sm:$0xff]
    %v87 = vld [vmem:[%s1 + $0x1c0] sm:$0xff]
    %v88 = vld [vmem:[%s1 + $0x1c8] sm:$0xff]
    %v89 = vld [vmem:[%s1 + $0x1d0] sm:$0xff]
    %v90 = vld [vmem:[%s1 + $0x1d8] sm:$0xff]
    %v91 = vld [vmem:[%s1 + $0x1e0] sm:$0xff]
    %v92 = vld [vmem:[%s1 + $0x1e8] sm:$0xff]
    %v93 = vld [vmem:[%s1 + $0x1f0] sm:$0xff]
    %v94 = vld [vmem:[%s1 + $0x1f8] sm:$0xff]
    %v95 = vld [vmem:[%s1 + $0x200] sm:$0xff]
    %v96 = vld [vmem:[%s1 + $0x208] sm:$0xff]
    %v97 = vld [vmem:[%s1 + $0x210] sm:$0xff]
    %v98 = vld [vmem:[%s1 + $0x218] sm:$0xff]
    %v99 = vld [vmem:[%s1 + $0x220] sm:$0xff]
    %v100 = vld [vmem:[%s1 + $0x228] sm:$0xff]
    %v101 = vld [vmem:[%s1 + $0x230] sm:$0xff]
    %v102 = vld [vmem:[%s1 + $0x238] sm:$0xff]
    %v103 = vld [vmem:[%s1 + $0x240] sm:$0xff]
    %v104 = vld [vmem:[%s1 + $0x248] sm:$0xff]
    %v105 = vld [vmem:[%s1 + $0x250] sm:$0xff]
    %v106 = vld [vmem:[%s1 + $0x258] sm:$0xff]
    %v107 = vld [vmem:[%s1 + $0x260] sm:$0xff]
    %v108 = vld [vmem:[%s1 + $0x268] sm:$0xff]
    %v109 = vld [vmem:[%s1 + $0x270] sm:$0xff]
    %v110 = vld [vmem:[%s1 + $0x278] sm:$0xff]
    %v111 = vld [vmem:[%s1 + $0x280] sm:$0xff]
    %v112 = vld [vmem:[%s1 + $0x288] sm:$0xff]
    %v113 = vld [vmem:[%s1 + $0x290] sm:$0xff]
    %v114 = vld [vmem:[%s1 + $0x298] sm:$0xff]
    %v115 = vld [vmem:[%s1 + $0x2a0] sm:$0xff]
    %v116 = vld [vmem:[%s1 + $0x2a8] sm:$0xff]
    %v117 = vld [vmem:[%s1 + $0x2b0] sm:$0xff]
    %v118 = vld [vmem:[%s1 + $0x2b8] sm:$0xff]
    %v119 = vld [vmem:[%s1 + $0x2c0] sm:$0xff]
    %v120 = vld [vmem:[%s1 + $0x2c8] sm:$0xff]
    %v121 = vld [vmem:[%s1 + $0x2d0] sm:$0xff]
    %v122 = vld [vmem:[%s1 + $0x2d8] sm:$0xff]
    %v123 = vld [vmem:[%s1 + $0x2e0] sm:$0xff]
    %v124 = vld [vmem:[%s1 + $0x2e8] sm:$0xff]
    %v125 = vld [vmem:[%s1 + $0x2f0] sm:$0xff]
    %v126 = vld [vmem:[%s1 + $0x2f8] sm:$0xff]
    %v127 = vld [vmem:[%s1 + $0x300] sm:$0xff]
    %v128 = vld [vmem:[%s1 + $0x308] sm:$0xff]
    %v129 = vld [vmem:[%s1 + $0x310] sm:$0xff]
    %v130 = vld [vmem:[%s1 + $0x318] sm:$0xff]
    %v131 = vld [vmem:[%s1 + $0x320] sm:$0xff]
    %v132 = vld [vmem:[%s1 + $0x328] sm:$0xff]
    %v133 = vld [vmem:[%s1 + $0x330] sm:$0xff]
    %v134 = vld [vmem:[%s1 + $0x338] sm:$0xff]
    %v135 = vld [vmem:[%s1 + $0x340] sm:$0xff]
    %v136 = vld [vmem:[%s1 + $0x348] sm:$0xff]
    %v137 = vld [vmem:[%s1 + $0x350] sm:$0xff]
    %v138 = vld [vmem:[%s1 + $0x358] sm:$0xff]
    %v139 = vld [vmem:[%s1 + $0x360] sm:$0xff]
    %v140 = vld [vmem:[%s1 + $0x368] sm:$0xff]
    %v141 = vld [vmem:[%s1 + $0x370] sm:$0xff]
    %v142 = vld [vmem:[%s1 + $0x378] sm:$0xff]
    %v143 = vld [vmem:[%s1 + $0x380] sm:$0xff]
    %v144 = vld [vmem:[%s1 + $0x388] sm:$0xff]
    %v145 = vld [vmem:[%s1 + $0x390] sm:$0xff]
    %v146 = vld [vmem:[%s1 + $0x398] sm:$0xff]
    %v147 = vld [vmem:[%s1 + $0x3a0] sm:$0xff]
    %v148 = vld [vmem:[%s1 + $0x3a8] sm:$0xff]
    %v149 = vld [vmem:[%s1 + $0x3b0] sm:$0xff]
    %v150 = vld [vmem:[%s1 + $0x3b8] sm:$0xff]
    %v151 = vld [vmem:[%s1 + $0x3c0] sm:$0xff]
    %v152 = vld [vmem:[%s1 + $0x3c8] sm:$0xff]
    %v153 = vld [vmem:[%s1 + $0x3d0] sm:$0xff]
    %v154 = vld [vmem:[%s1 + $0x3d8] sm:$0xff]
    %v155 = vld [vmem:[%s1 + $0x3e0] sm:$0xff]
    %v156 = vld [vmem:[%s1 + $0x3e8] sm:$0xff]
    %v157 = vld [vmem:[%s1 + $0x3f0] sm:$0xff]
    %v158 = vld [vmem:[%s1 + $0x3f8] sm:$0xff]
    %v159 = vld [vmem:[%s1 + $0x400] sm:$0xff]
    %v160 = vld [vmem:[%s1 + $0x408] sm:$0xff]
    %v161 = vld [vmem:[%s1 + $0x410] sm:$0xff]
    %v162 = vld [vmem:[%s1 + $0x418] sm:$0xff]
    %v163 = vld [vmem:[%s1 + $0x420] sm:$0xff]
    %v164 = vld [vmem:[%s1 + $0x428] sm:$0xff]
    %v165 = vld [vmem:[%s1 + $0x430] sm:$0xff]
    %v166 = vld [vmem:[%s1 + $0x438] sm:$0xff]
    %v167 = vld [vmem:[%s1 + $0x440] sm:$0xff]
    %v168 = vld [vmem:[%s1 + $0x448] sm:$0xff]
    %v169 = vld [vmem:[%s1 + $0x450] sm:$0xff]
    %v170 = vld [vmem:[%s1 + $0x458] sm:$0xff]
    %v171 = vld [vmem:[%s1 + $0x460] sm:$0xff]
    %v172 = vld [vmem:[%s1 + $0x468] sm:$0xff]
    %v173 = vld [vmem:[%s1 + $0x470] sm:$0xff]
    %v174 = vld [vmem:[%s1 + $0x478] sm:$0xff]
    %v175 = vld [vmem:[%s1 + $0x480] sm:$0xff]
    %v176 = vld [vmem:[%s1 + $0x488] sm:$0xff]
    %v177 = vld [vmem:[%s1 + $0x490] sm:$0xff]
    %v178 = vld [vmem:[%s1 + $0x498] sm:$0xff]
    %v179 = vld [vmem:[%s1 + $0x4a0] sm:$0xff]
    %v180 = vld [vmem:[%s1 + $0x4a8] sm:$0xff]
    %v181 = vld [vmem:[%s1 + $0x4b0] sm:$0xff]
    %v182 = vld [vmem:[%s1 + $0x4b8] sm:$0xff]
    %v183 = vld [vmem:[%s1 + $0x4c0] sm:$0xff]
    %v184 = vld [vmem:[%s1 + $0x4c8] sm:$0xff]
    %v185 = vld [vmem:[%s1 + $0x4d0] sm:$0xff]
    %v186 = vld [vmem:[%s1 + $0x4d8] sm:$0xff]
    %v187 = vld [vmem:[%s1 + $0x4e0] sm:$0xff]
    %v188 = vld [vmem:[%s1 + $0x4e8] sm:$0xff]
    %v189 = vld [vmem:[%s1 + $0x4f0] sm:$0xff]
    %v190 = vld [vmem:[%s1 + $0x4f8] sm:$0xff]
    %v191 = vld [vmem:[%s1 + $0x500] sm:$0xff]
    %v192 = vld [vmem:[%s1 + $0x508] sm:$0xff]
    %v193 = vld [vmem:[%s1 + $0x510] sm:$0xff]
    %v194 = vld [vmem:[%s1 + $0x518] sm:$0xff]
    %v195 = vld [vmem:[%s1 + $0x520] sm:$0xff]
    %v196 = vld [vmem:[%s1 + $0x528] sm:$0xff]
    %v197 = vld [vmem:[%s1 + $0x530] sm:$0xff]
    %v198 = vld [vmem:[%s1 + $0x538] sm:$0xff]
    %v199 = vld [vmem:[%s1 + $0x540] sm:$0xff]
    %v200 = vld [vmem:[%s1 + $0x548] sm:$0xff]
    %v201 = vld [vmem:[%s1 + $0x550] sm:$0xff]
    %v202 = vld [vmem:[%s1 + $0x558] sm:$0xff]
    %v203 = vld [vmem:[%s1 + $0x560] sm:$0xff]
    %v204 = vld [vmem:[%s1 + $0x568] sm:$0xff]
    %v205 = vld [vmem:[%s1 + $0x570] sm:$0xff]
    %v206 = vld [vmem:[%s1 + $0x578] sm:$0xff]
    %v207 = vld [vmem:[%s1 + $0x580] sm:$0xff]
    %v208 = vld [vmem:[%s1 + $0x588] sm:$0xff]
    %v209 = vld [vmem:[%s1 + $0x590] sm:$0xff]
    %v210 = vld [vmem:[%s1 + $0x598] sm:$0xff]
    %v211 = vld [vmem:[%s1 + $0x5a0] sm:$0xff]
    %v212 = vld [vmem:[%s1 + $0x5a8] sm:$0xff]
    %v213 = vld [vmem:[%s1 + $0x5b0] sm:$0xff]
    %v214 = vld [vmem:[%s1 + $0x5b8] sm:$0xff]
    %v215 = vld [vmem:[%s1 + $0x5c0] sm:$0xff]
    %v216 = vld [vmem:[%s1 + $0x5c8] sm:$0xff]
    %v217 = vld [vmem:[%s1 + $0x5d0] sm:$0xff]
    %v218 = vld [vmem:[%s1 + $0x5d8] sm:$0xff]
    %v219 = vld [vmem:[%s1 + $0x5e0] sm:$0xff]
    %v220 = vld [vmem:[%s1 + $0x5e8] sm:$0xff]
    %v221 = vld [vmem:[%s1 + $0x5f0] sm:$0xff]
    %v222 = vld [vmem:[%s1 + $0x5f8] sm:$0xff]
    %v223 = vld [vmem:[%s1 + $0x600] sm:$0xff]
    %v224 = vld [vmem:[%s1 + $0x608] sm:$0xff]
    %v225 = vld [vmem:[%s1 + $0x610] sm:$0xff]
    %v226 = vld [vmem:[%s1 + $0x618] sm:$0xff]
    %v227 = vld [vmem:[%s2] sm:$0x1]
    %v229 = vlaneseq
    %v230 = vshrl.u32 %v229, 7
    %v231 = vsub.s32 0, %v230
    %v232 = vrot.slane %v227, %v231
    %v238 = vcombine.high %v27, %v27
    %v240 = vunpack.c.l.s4 1983009808
    %v241 = vunpack.c.0.s8 %v240
    %v242 = vlaneseq
    %v243 = vshrl.u32 %v242, 7
    %v244 = vsub.s32 %v241, %v243
    %v245 = vrot.slane %v27, %v244
    %v247 = vunpack.c.l.s4 1983009808
    %v248 = vunpack.c.0.s8 %v247
    %v249 = vlaneseq
    %v250 = vshrl.u32 %v249, 7
    %v251 = vsub.s32 %v248, %v250
    %v252 = vrot.slane %v238, %v251
    %v253 = vcombine.high %v245, %v245
    %v254 = vcombine.high %v252, %v252
    %v255 = vcombine.high %v28, %v28
    %v257 = vunpack.c.l.s4 1983009808
    %v258 = vunpack.c.0.s8 %v257
    %v259 = vlaneseq
    %v260 = vshrl.u32 %v259, 7
    %v261 = vsub.s32 %v258, %v260
    %v262 = vrot.slane %v28, %v261
    %v264 = vunpack.c.l.s4 1983009808
    %v265 = vunpack.c.0.s8 %v264
    %v266 = vlaneseq
    %v267 = vshrl.u32 %v266, 7
    %v268 = vsub.s32 %v265, %v267
    %v269 = vrot.slane %v255, %v268
    %v270 = vcombine.high %v262, %v262
    %v271 = vcombine.high %v269, %v269
    %v272 = vcombine.high %v29, %v29
    %v274 = vunpack.c.l.s4 1983009808
    %v275 = vunpack.c.0.s8 %v274
    %v276 = vlaneseq
    %v277 = vshrl.u32 %v276, 7
    %v278 = vsub.s32 %v275, %v277
    %v279 = vrot.slane %v29, %v278
    %v281 = vunpack.c.l.s4 1983009808
    %v282 = vunpack.c.0.s8 %v281
    %v283 = vlaneseq
    %v284 = vshrl.u32 %v283, 7
    %v285 = vsub.s32 %v282, %v284
    %v286 = vrot.slane %v272, %v285
    %v287 = vcombine.high %v279, %v279
    %v288 = vcombine.high %v286, %v286
    %v290 = vunpack.c.l.s4 1983009808
    %v291 = vunpack.c.0.s8 %v290
    %v292 = vlaneseq
    %v293 = vshrl.u32 %v292, 7
    %v294 = vsub.s32 %v291, %v293
    %v295 = vrot.slane %v30, %v294
    %vm308 = vcmask 261120
    %v309 = vsel %vm308, %v295, 0
    %311 = vmatprep.subr.mxu0 0.0
    %312 = vmatpush1.msra.mxu0 %v31
    %313 = vmatprep.subr.mxu0 0.0
    %314 = vmatpush1.msra.mxu0 %v32
    %315 = vmatprep.subr.mxu0 0.0
    %316 = vmatpush1.msra.mxu0 %v33
    %317 = vmatprep.subr.mxu0 0.0
    %318 = vmatpush1.msra.mxu0 %v34
    %319 = vmatprep.subr.mxu0 0.0
    %320 = vmatpush1.msra.mxu0 %v35
    %321 = vmatprep.subr.mxu0 0.0
    %322 = vmatpush1.msra.mxu0 %v36
    %323 = vmatprep.subr.mxu0 0.0
    %324 = vmatpush1.msra.mxu0 %v37
    %325 = vmatprep.subr.mxu0 0.0
    %326 = vmatpush1.msra.mxu0 %v38
    %327 = vmatprep.subr.mxu0 0.0
    %328 = vmatpush1.msra.mxu0 %v39
    %329 = vmatprep.subr.mxu0 0.0
    %330 = vmatpush1.msra.mxu0 %v40
    %331 = vmatprep.subr.mxu0 0.0
    %332 = vmatpush1.msra.mxu0 %v41
    %333 = vmatprep.subr.mxu0 0.0
    %334 = vmatpush1.msra.mxu0 %v42
    %335 = vmatprep.subr.mxu0 0.0
    %336 = vmatpush1.msra.mxu0 %v43
    %337 = vmatprep.subr.mxu0 0.0
    %338 = vmatpush1.msra.mxu0 %v44
    %339 = vmatprep.subr.mxu0 0.0
    %340 = vmatpush1.msra.mxu0 %v45
    %341 = vmatprep.subr.mxu0 0.0
    %342 = vmatpush1.msra.mxu0 %v46
    %343 = vmatprep.subr.mxu0 0.0
    %344 = vmatpush1.msra.mxu0 %v47
    %345 = vmatprep.subr.mxu0 0.0
    %346 = vmatpush1.msra.mxu0 %v48
    %347 = vmatprep.subr.mxu0 0.0
    %348 = vmatpush1.msra.mxu0 %v49
    %349 = vmatprep.subr.mxu0 0.0
    %350 = vmatpush1.msra.mxu0 %v50
    %351 = vmatprep.subr.mxu0 0.0
    %352 = vmatpush1.msra.mxu0 %v51
    %353 = vmatprep.subr.mxu0 0.0
    %354 = vmatpush1.msra.mxu0 %v52
    %355 = vmatprep.subr.mxu0 0.0
    %356 = vmatpush1.msra.mxu0 %v53
    %357 = vmatprep.subr.mxu0 0.0
    %358 = vmatpush1.msra.mxu0 %v54
    %359 = vmatprep.subr.mxu0 0.0
    %360 = vmatpush1.msra.mxu0 %v55
    %361 = vmatprep.subr.mxu0 0.0
    %362 = vmatpush1.msra.mxu0 %v56
    %363 = vmatprep.subr.mxu0 0.0
    %364 = vmatpush1.msra.mxu0 %v57
    %365 = vmatprep.subr.mxu0 0.0
    %366 = vmatpush1.msra.mxu0 %v58
    %367 = vmatprep.subr.mxu0 0.0
    %368 = vmatpush1.msra.mxu0 %v59
    %369 = vmatprep.subr.mxu0 0.0
    %370 = vmatpush1.msra.mxu0 %v60
    %371 = vmatprep.subr.mxu0 0.0
    %372 = vmatpush1.msra.mxu0 %v61
    %373 = vmatprep.subr.mxu0 0.0
    %374 = vmatpush1.msra.mxu0 %v62
    %375 = vmatprep.mubr.f32.mxu0 %v253
    %376 = vmatmul.mubr.f32.gmra.mrb[0].mxu0 %v245
    %v377 = vpop.f32.mrb[0].mxu0
    %v378 = vadd.f32 %v232, %v377
    %v379 = vpop.f32.mrb[0].mxu0
    %380 = vdwg.mxu0
    %381 = vmatprep.subr.mxu0 0.0
    %382 = vmatpush1.msra.mxu0 %v63
    %383 = vmatprep.subr.mxu0 0.0
    %384 = vmatpush1.msra.mxu0 %v64
    %385 = vmatprep.subr.mxu0 0.0
    %386 = vmatpush1.msra.mxu0 %v65
    %387 = vmatprep.subr.mxu0 0.0
    %388 = vmatpush1.msra.mxu0 %v66
    %389 = vmatprep.subr.mxu0 0.0
    %390 = vmatpush1.msra.mxu0 %v67
    %391 = vmatprep.subr.mxu0 0.0
    %392 = vmatpush1.msra.mxu0 %v68
    %393 = vmatprep.subr.mxu0 0.0
    %394 = vmatpush1.msra.mxu0 %v69
    %395 = vmatprep.subr.mxu0 0.0
    %396 = vmatpush1.msra.mxu0 %v70
    %397 = vmatprep.subr.mxu0 0.0
    %398 = vmatpush1.msra.mxu0 %v71
    %399 = vmatprep.subr.mxu0 0.0
    %400 = vmatpush1.msra.mxu0 %v72
    %401 = vmatprep.subr.mxu0 0.0
    %402 = vmatpush1.msra.mxu0 %v73
    %403 = vmatprep.subr.mxu0 0.0
    %404 = vmatpush1.msra.mxu0 %v74
    %405 = vmatprep.subr.mxu0 0.0
    %406 = vmatpush1.msra.mxu0 %v75
    %407 = vmatprep.subr.mxu0 0.0
    %408 = vmatpush1.msra.mxu0 %v76
    %409 = vmatprep.subr.mxu0 0.0
    %410 = vmatpush1.msra.mxu0 %v77
    %411 = vmatprep.subr.mxu0 0.0
    %412 = vmatpush1.msra.mxu0 %v78
    %413 = vmatprep.subr.mxu0 0.0
    %414 = vmatpush1.msra.mxu0 %v79
    %415 = vmatprep.subr.mxu0 0.0
    %416 = vmatpush1.msra.mxu0 %v80
    %417 = vmatprep.subr.mxu0 0.0
    %418 = vmatpush1.msra.mxu0 %v81
    %419 = vmatprep.subr.mxu0 0.0
    %420 = vmatpush1.msra.mxu0 %v82
    %421 = vmatprep.subr.mxu0 0.0
    %422 = vmatpush1.msra.mxu0 %v83
    %423 = vmatprep.subr.mxu0 0.0
    %424 = vmatpush1.msra.mxu0 %v84
    %425 = vmatprep.subr.mxu0 0.0
    %426 = vmatpush1.msra.mxu0 %v85
    %427 = vmatprep.subr.mxu0 0.0
    %428 = vmatpush1.msra.mxu0 %v86
    %429 = vmatprep.subr.mxu0 0.0
    %430 = vmatpush1.msra.mxu0 %v87
    %431 = vmatprep.subr.mxu0 0.0
    %432 = vmatpush1.msra.mxu0 %v88
    %433 = vmatprep.subr.mxu0 0.0
    %434 = vmatpush1.msra.mxu0 %v89
    %435 = vmatprep.subr.mxu0 0.0
    %436 = vmatpush1.msra.mxu0 %v90
    %437 = vmatprep.subr.mxu0 0.0
    %438 = vmatpush1.msra.mxu0 %v91
    %439 = vmatprep.subr.mxu0 0.0
    %440 = vmatpush1.msra.mxu0 %v92
    %441 = vmatprep.subr.mxu0 0.0
    %442 = vmatpush1.msra.mxu0 %v93
    %443 = vmatprep.subr.mxu0 0.0
    %444 = vmatpush1.msra.mxu0 %v94
    %445 = vmatprep.mubr.f32.mxu0 %v254
    %446 = vmatmul.mubr.f32.gmra.mrb[0].mxu0 %v252
    %v447 = vpop.f32.mrb[0].mxu0
    %v448 = vadd.f32 %v378, %v447
    %v449 = vpop.f32.mrb[0].mxu0
    %450 = vdwg.mxu0
    %451 = vmatprep.subr.mxu0 0.0
    %452 = vmatpush1.msra.mxu0 %v95
    %453 = vmatprep.subr.mxu0 0.0
    %454 = vmatpush1.msra.mxu0 %v96
    %455 = vmatprep.subr.mxu0 0.0
    %456 = vmatpush1.msra.mxu0 %v97
    %457 = vmatprep.subr.mxu0 0.0
    %458 = vmatpush1.msra.mxu0 %v98
    %459 = vmatprep.subr.mxu0 0.0
    %460 = vmatpush1.msra.mxu0 %v99
    %461 = vmatprep.subr.mxu0 0.0
    %462 = vmatpush1.msra.mxu0 %v100
    %463 = vmatprep.subr.mxu0 0.0
    %464 = vmatpush1.msra.mxu0 %v101
    %465 = vmatprep.subr.mxu0 0.0
    %466 = vmatpush1.msra.mxu0 %v102
    %467 = vmatprep.subr.mxu0 0.0
    %468 = vmatpush1.msra.mxu0 %v103
    %469 = vmatprep.subr.mxu0 0.0
    %470 = vmatpush1.msra.mxu0 %v104
    %471 = vmatprep.subr.mxu0 0.0
    %472 = vmatpush1.msra.mxu0 %v105
    %473 = vmatprep.subr.mxu0 0.0
    %474 = vmatpush1.msra.mxu0 %v106
    %475 = vmatprep.subr.mxu0 0.0
    %476 = vmatpush1.msra.mxu0 %v107
    %477 = vmatprep.subr.mxu0 0.0
    %478 = vmatpush1.msra.mxu0 %v108
    %479 = vmatprep.subr.mxu0 0.0
    %480 = vmatpush1.msra.mxu0 %v109
    %481 = vmatprep.subr.mxu0 0.0
    %482 = vmatpush1.msra.mxu0 %v110
    %483 = vmatprep.subr.mxu0 0.0
    %484 = vmatpush1.msra.mxu0 %v111
    %485 = vmatprep.subr.mxu0 0.0
    %486 = vmatpush1.msra.mxu0 %v112
    %487 = vmatprep.subr.mxu0 0.0
    %488 = vmatpush1.msra.mxu0 %v113
    %489 = vmatprep.subr.mxu0 0.0
    %490 = vmatpush1.msra.mxu0 %v114
    %491 = vmatprep.subr.mxu0 0.0
    %492 = vmatpush1.msra.mxu0 %v115
    %493 = vmatprep.subr.mxu0 0.0
    %494 = vmatpush1.msra.mxu0 %v116
    %495 = vmatprep.subr.mxu0 0.0
    %496 = vmatpush1.msra.mxu0 %v117
    %497 = vmatprep.subr.mxu0 0.0
    %498 = vmatpush1.msra.mxu0 %v118
    %499 = vmatprep.subr.mxu0 0.0
    %500 = vmatpush1.msra.mxu0 %v119
    %501 = vmatprep.subr.mxu0 0.0
    %502 = vmatpush1.msra.mxu0 %v120
    %503 = vmatprep.subr.mxu0 0.0
    %504 = vmatpush1.msra.mxu0 %v121
    %505 = vmatprep.subr.mxu0 0.0
    %506 = vmatpush1.msra.mxu0 %v122
    %507 = vmatprep.subr.mxu0 0.0
    %508 = vmatpush1.msra.mxu0 %v123
    %509 = vmatprep.subr.mxu0 0.0
    %510 = vmatpush1.msra.mxu0 %v124
    %511 = vmatprep.subr.mxu0 0.0
    %512 = vmatpush1.msra.mxu0 %v125
    %513 = vmatprep.subr.mxu0 0.0
    %514 = vmatpush1.msra.mxu0 %v126
    %515 = vmatprep.mubr.f32.mxu0 %v270
    %516 = vmatmul.mubr.f32.gmra.mrb[0].mxu0 %v262
    %v517 = vpop.f32.mrb[0].mxu0
    %v518 = vadd.f32 %v448, %v517
    %v519 = vpop.f32.mrb[0].mxu0
    %520 = vdwg.mxu0
    %521 = vmatprep.subr.mxu0 0.0
    %522 = vmatpush1.msra.mxu0 %v127
    %523 = vmatprep.subr.mxu0 0.0
    %524 = vmatpush1.msra.mxu0 %v128
    %525 = vmatprep.subr.mxu0 0.0
    %526 = vmatpush1.msra.mxu0 %v129
    %527 = vmatprep.subr.mxu0 0.0
    %528 = vmatpush1.msra.mxu0 %v130
    %529 = vmatprep.subr.mxu0 0.0
    %530 = vmatpush1.msra.mxu0 %v131
    %531 = vmatprep.subr.mxu0 0.0
    %532 = vmatpush1.msra.mxu0 %v132
    %533 = vmatprep.subr.mxu0 0.0
    %534 = vmatpush1.msra.mxu0 %v133
    %535 = vmatprep.subr.mxu0 0.0
    %536 = vmatpush1.msra.mxu0 %v134
    %537 = vmatprep.subr.mxu0 0.0
    %538 = vmatpush1.msra.mxu0 %v135
    %539 = vmatprep.subr.mxu0 0.0
    %540 = vmatpush1.msra.mxu0 %v136
    %541 = vmatprep.subr.mxu0 0.0
    %542 = vmatpush1.msra.mxu0 %v137
    %543 = vmatprep.subr.mxu0 0.0
    %544 = vmatpush1.msra.mxu0 %v138
    %545 = vmatprep.subr.mxu0 0.0
    %546 = vmatpush1.msra.mxu0 %v139
    %547 = vmatprep.subr.mxu0 0.0
    %548 = vmatpush1.msra.mxu0 %v140
    %549 = vmatprep.subr.mxu0 0.0
    %550 = vmatpush1.msra.mxu0 %v141
    %551 = vmatprep.subr.mxu0 0.0
    %552 = vmatpush1.msra.mxu0 %v142
    %553 = vmatprep.subr.mxu0 0.0
    %554 = vmatpush1.msra.mxu0 %v143
    %555 = vmatprep.subr.mxu0 0.0
    %556 = vmatpush1.msra.mxu0 %v144
    %557 = vmatprep.subr.mxu0 0.0
    %558 = vmatpush1.msra.mxu0 %v145
    %559 = vmatprep.subr.mxu0 0.0
    %560 = vmatpush1.msra.mxu0 %v146
    %561 = vmatprep.subr.mxu0 0.0
    %562 = vmatpush1.msra.mxu0 %v147
    %563 = vmatprep.subr.mxu0 0.0
    %564 = vmatpush1.msra.mxu0 %v148
    %565 = vmatprep.subr.mxu0 0.0
    %566 = vmatpush1.msra.mxu0 %v149
    %567 = vmatprep.subr.mxu0 0.0
    %568 = vmatpush1.msra.mxu0 %v150
    %569 = vmatprep.subr.mxu0 0.0
    %570 = vmatpush1.msra.mxu0 %v151
    %571 = vmatprep.subr.mxu0 0.0
    %572 = vmatpush1.msra.mxu0 %v152
    %573 = vmatprep.subr.mxu0 0.0
    %574 = vmatpush1.msra.mxu0 %v153
    %575 = vmatprep.subr.mxu0 0.0
    %576 = vmatpush1.msra.mxu0 %v154
    %577 = vmatprep.subr.mxu0 0.0
    %578 = vmatpush1.msra.mxu0 %v155
    %579 = vmatprep.subr.mxu0 0.0
    %580 = vmatpush1.msra.mxu0 %v156
    %581 = vmatprep.subr.mxu0 0.0
    %582 = vmatpush1.msra.mxu0 %v157
    %583 = vmatprep.subr.mxu0 0.0
    %584 = vmatpush1.msra.mxu0 %v158
    %585 = vmatprep.mubr.f32.mxu0 %v271
    %586 = vmatmul.mubr.f32.gmra.mrb[0].mxu0 %v269
    %v587 = vpop.f32.mrb[0].mxu0
    %v588 = vadd.f32 %v518, %v587
    %v589 = vpop.f32.mrb[0].mxu0
    %590 = vdwg.mxu0
    %591 = vmatprep.subr.mxu0 0.0
    %592 = vmatpush1.msra.mxu0 %v159
    %593 = vmatprep.subr.mxu0 0.0
    %594 = vmatpush1.msra.mxu0 %v160
    %595 = vmatprep.subr.mxu0 0.0
    %596 = vmatpush1.msra.mxu0 %v161
    %597 = vmatprep.subr.mxu0 0.0
    %598 = vmatpush1.msra.mxu0 %v162
    %599 = vmatprep.subr.mxu0 0.0
    %600 = vmatpush1.msra.mxu0 %v163
    %601 = vmatprep.subr.mxu0 0.0
    %602 = vmatpush1.msra.mxu0 %v164
    %603 = vmatprep.subr.mxu0 0.0
    %604 = vmatpush1.msra.mxu0 %v165
    %605 = vmatprep.subr.mxu0 0.0
    %606 = vmatpush1.msra.mxu0 %v166
    %607 = vmatprep.subr.mxu0 0.0
    %608 = vmatpush1.msra.mxu0 %v167
    %609 = vmatprep.subr.mxu0 0.0
    %610 = vmatpush1.msra.mxu0 %v168
    %611 = vmatprep.subr.mxu0 0.0
    %612 = vmatpush1.msra.mxu0 %v169
    %613 = vmatprep.subr.mxu0 0.0
    %614 = vmatpush1.msra.mxu0 %v170
    %615 = vmatprep.subr.mxu0 0.0
    %616 = vmatpush1.msra.mxu0 %v171
    %617 = vmatprep.subr.mxu0 0.0
    %618 = vmatpush1.msra.mxu0 %v172
    %619 = vmatprep.subr.mxu0 0.0
    %620 = vmatpush1.msra.mxu0 %v173
    %621 = vmatprep.subr.mxu0 0.0
    %622 = vmatpush1.msra.mxu0 %v174
    %623 = vmatprep.subr.mxu0 0.0
    %624 = vmatpush1.msra.mxu0 %v175
    %625 = vmatprep.subr.mxu0 0.0
    %626 = vmatpush1.msra.mxu0 %v176
    %627 = vmatprep.subr.mxu0 0.0
    %628 = vmatpush1.msra.mxu0 %v177
    %629 = vmatprep.subr.mxu0 0.0
    %630 = vmatpush1.msra.mxu0 %v178
    %631 = vmatprep.subr.mxu0 0.0
    %632 = vmatpush1.msra.mxu0 %v179
    %633 = vmatprep.subr.mxu0 0.0
    %634 = vmatpush1.msra.mxu0 %v180
    %635 = vmatprep.subr.mxu0 0.0
    %636 = vmatpush1.msra.mxu0 %v181
    %637 = vmatprep.subr.mxu0 0.0
    %638 = vmatpush1.msra.mxu0 %v182
    %639 = vmatprep.subr.mxu0 0.0
    %640 = vmatpush1.msra.mxu0 %v183
    %641 = vmatprep.subr.mxu0 0.0
    %642 = vmatpush1.msra.mxu0 %v184
    %643 = vmatprep.subr.mxu0 0.0
    %644 = vmatpush1.msra.mxu0 %v185
    %645 = vmatprep.subr.mxu0 0.0
    %646 = vmatpush1.msra.mxu0 %v186
    %647 = vmatprep.subr.mxu0 0.0
    %648 = vmatpush1.msra.mxu0 %v187
    %649 = vmatprep.subr.mxu0 0.0
    %650 = vmatpush1.msra.mxu0 %v188
    %651 = vmatprep.subr.mxu0 0.0
    %652 = vmatpush1.msra.mxu0 %v189
    %653 = vmatprep.subr.mxu0 0.0
    %654 = vmatpush1.msra.mxu0 %v190
    %655 = vmatprep.mubr.f32.mxu0 %v287
    %656 = vmatmul.mubr.f32.gmra.mrb[0].mxu0 %v279
    %v657 = vpop.f32.mrb[0].mxu0
    %v658 = vadd.f32 %v588, %v657
    %v659 = vpop.f32.mrb[0].mxu0
    %660 = vdwg.mxu0
    %661 = vmatprep.subr.mxu0 0.0
    %662 = vmatpush1.msra.mxu0 %v191
    %663 = vmatprep.subr.mxu0 0.0
    %664 = vmatpush1.msra.mxu0 %v192
    %665 = vmatprep.subr.mxu0 0.0
    %666 = vmatpush1.msra.mxu0 %v193
    %667 = vmatprep.subr.mxu0 0.0
    %668 = vmatpush1.msra.mxu0 %v194
    %669 = vmatprep.subr.mxu0 0.0
    %670 = vmatpush1.msra.mxu0 %v195
    %671 = vmatprep.subr.mxu0 0.0
    %672 = vmatpush1.msra.mxu0 %v196
    %673 = vmatprep.subr.mxu0 0.0
    %674 = vmatpush1.msra.mxu0 %v197
    %675 = vmatprep.subr.mxu0 0.0
    %676 = vmatpush1.msra.mxu0 %v198
    %677 = vmatprep.subr.mxu0 0.0
    %678 = vmatpush1.msra.mxu0 %v199
    %679 = vmatprep.subr.mxu0 0.0
    %680 = vmatpush1.msra.mxu0 %v200
    %681 = vmatprep.subr.mxu0 0.0
    %682 = vmatpush1.msra.mxu0 %v201
    %683 = vmatprep.subr.mxu0 0.0
    %684 = vmatpush1.msra.mxu0 %v202
    %685 = vmatprep.subr.mxu0 0.0
    %686 = vmatpush1.msra.mxu0 %v203
    %687 = vmatprep.subr.mxu0 0.0
    %688 = vmatpush1.msra.mxu0 %v204
    %689 = vmatprep.subr.mxu0 0.0
    %690 = vmatpush1.msra.mxu0 %v205
    %691 = vmatprep.subr.mxu0 0.0
    %692 = vmatpush1.msra.mxu0 %v206
    %693 = vmatprep.subr.mxu0 0.0
    %694 = vmatpush1.msra.mxu0 %v207
    %695 = vmatprep.subr.mxu0 0.0
    %696 = vmatpush1.msra.mxu0 %v208
    %697 = vmatprep.subr.mxu0 0.0
    %698 = vmatpush1.msra.mxu0 %v209
    %699 = vmatprep.subr.mxu0 0.0
    %700 = vmatpush1.msra.mxu0 %v210
    %701 = vmatprep.subr.mxu0 0.0
    %702 = vmatpush1.msra.mxu0 %v211
    %703 = vmatprep.subr.mxu0 0.0
    %704 = vmatpush1.msra.mxu0 %v212
    %705 = vmatprep.subr.mxu0 0.0
    %706 = vmatpush1.msra.mxu0 %v213
    %707 = vmatprep.subr.mxu0 0.0
    %708 = vmatpush1.msra.mxu0 %v214
    %709 = vmatprep.subr.mxu0 0.0
    %710 = vmatpush1.msra.mxu0 %v215
    %711 = vmatprep.subr.mxu0 0.0
    %712 = vmatpush1.msra.mxu0 %v216
    %713 = vmatprep.subr.mxu0 0.0
    %714 = vmatpush1.msra.mxu0 %v217
    %715 = vmatprep.subr.mxu0 0.0
    %716 = vmatpush1.msra.mxu0 %v218
    %717 = vmatprep.subr.mxu0 0.0
    %718 = vmatpush1.msra.mxu0 %v219
    %719 = vmatprep.subr.mxu0 0.0
    %720 = vmatpush1.msra.mxu0 %v220
    %721 = vmatprep.subr.mxu0 0.0
    %722 = vmatpush1.msra.mxu0 %v221
    %723 = vmatprep.subr.mxu0 0.0
    %724 = vmatpush1.msra.mxu0 %v222
    %725 = vmatprep.mubr.f32.mxu0 %v288
    %726 = vmatmul.mubr.f32.gmra.mrb[0].mxu0 %v286
    %v727 = vpop.f32.mrb[0].mxu0
    %v728 = vadd.f32 %v658, %v727
    %v729 = vpop.f32.mrb[0].mxu0
    %730 = vdwg.mxu0
    %731 = vmatprep.subr.mxu0 0.0
    %732 = vmatpush1.msra.mxu0 %v223
    %733 = vmatprep.subr.mxu0 0.0
    %734 = vmatpush1.msra.mxu0 %v224
    %735 = vmatprep.subr.mxu0 0.0
    %736 = vmatpush1.msra.mxu0 %v225
    %737 = vmatprep.subr.mxu0 0.0
    %738 = vmatpush1.msra.mxu0 %v226
    %739 = vmatprep.subr.mxu0 0.0
    %740 = vmatpush1.msra.mxu0 0.0
    %741 = vmatprep.subr.mxu0 0.0
    %742 = vmatpush1.msra.mxu0 0.0
    %743 = vmatprep.subr.mxu0 0.0
    %744 = vmatpush1.msra.mxu0 0.0
    %745 = vmatprep.subr.mxu0 0.0
    %746 = vmatpush1.msra.mxu0 0.0
    %747 = vmatprep.subr.mxu0 0.0
    %748 = vmatpush1.msra.mxu0 0.0
    %749 = vmatprep.subr.mxu0 0.0
    %750 = vmatpush1.msra.mxu0 0.0
    %751 = vmatprep.subr.mxu0 0.0
    %752 = vmatpush1.msra.mxu0 0.0
    %753 = vmatprep.subr.mxu0 0.0
    %754 = vmatpush1.msra.mxu0 0.0
    %755 = vmatprep.subr.mxu0 0.0
    %756 = vmatpush1.msra.mxu0 0.0
    %757 = vmatprep.subr.mxu0 0.0
    %758 = vmatpush1.msra.mxu0 0.0
    %759 = vmatprep.subr.mxu0 0.0
    %760 = vmatpush1.msra.mxu0 0.0
    %761 = vmatprep.subr.mxu0 0.0
    %762 = vmatpush1.msra.mxu0 0.0
    %763 = vmatprep.subr.mxu0 0.0
    %764 = vmatpush1.msra.mxu0 0.0
    %765 = vmatprep.subr.mxu0 0.0
    %766 = vmatpush1.msra.mxu0 0.0
    %767 = vmatprep.subr.mxu0 0.0
    %768 = vmatpush1.msra.mxu0 0.0
    %769 = vmatprep.subr.mxu0 0.0
    %770 = vmatpush1.msra.mxu0 0.0
    %771 = vmatprep.subr.mxu0 0.0
    %772 = vmatpush1.msra.mxu0 0.0
    %773 = vmatprep.subr.mxu0 0.0
    %774 = vmatpush1.msra.mxu0 0.0
    %775 = vmatprep.subr.mxu0 0.0
    %776 = vmatpush1.msra.mxu0 0.0
    %777 = vmatprep.subr.mxu0 0.0
    %778 = vmatpush1.msra.mxu0 0.0
    %779 = vmatprep.subr.mxu0 0.0
    %780 = vmatpush1.msra.mxu0 0.0
    %781 = vmatprep.subr.mxu0 0.0
    %782 = vmatpush1.msra.mxu0 0.0
    %783 = vmatprep.subr.mxu0 0.0
    %784 = vmatpush1.msra.mxu0 0.0
    %785 = vmatprep.subr.mxu0 0.0
    %786 = vmatpush1.msra.mxu0 0.0
    %787 = vmatprep.subr.mxu0 0.0
    %788 = vmatpush1.msra.mxu0 0.0
    %789 = vmatprep.subr.mxu0 0.0
    %790 = vmatpush1.msra.mxu0 0.0
    %791 = vmatprep.subr.mxu0 0.0
    %792 = vmatpush1.msra.mxu0 0.0
    %793 = vmatprep.subr.mxu0 0.0
    %794 = vmatpush1.msra.mxu0 0.0
    %795 = vmatprep.mubr.f32.mxu0 0.0
    %796 = vmatmul.mubr.f32.gmra.mrb[0].mxu0 %v309
    %v797 = vpop.f32.mrb[0].mxu0
    %v798 = vadd.f32 %v728, %v797
    %v799 = vpop.f32.mrb[0].mxu0
    %800 = vdwg.mxu0
    %vm801 = vcmp.gt.f32.partialorder %v798, 0.0
    %v802 = vmin.f32 %v798, 0.0
    %v803 = vmul.f32 %v802, 1.442695
    %v804 = vpow.pop %v803
    %v805 = vsub.f32 %v804, 1.0
    %v806 = vsel %vm801, %v798, %v805
    %v807 = vld [vmem:[%s3] sm:$0xff]
    %v808 = vld [vmem:[%s3 + $0x8] sm:$0xff]
    %v809 = vld [vmem:[%s3 + $0x10] sm:$0xff]
    %v810 = vld [vmem:[%s3 + $0x18] sm:$0xff]
    %v811 = vld [vmem:[%s3 + $0x20] sm:$0xff]
    %v812 = vld [vmem:[%s3 + $0x28] sm:$0xff]
    %v813 = vld [vmem:[%s3 + $0x30] sm:$0xff]
    %v814 = vld [vmem:[%s3 + $0x38] sm:$0xff]
    %v815 = vld [vmem:[%s4] sm:$0x1]
    %v817 = vlaneseq
    %v818 = vshrl.u32 %v817, 7
    %v819 = vsub.s32 0, %v818
    %v820 = vrot.slane %v815, %v819
    %vm822 = vcmask 523264
    %v824 = vsel %vm822, %v806, 0
    %826 = vmatprep.subr.mxu0 0.0
    %827 = vmatpush1.msra.mxu0 %v807
    %828 = vmatprep.subr.mxu0 0.0
    %829 = vmatpush1.msra.mxu0 %v808
    %830 = vmatprep.subr.mxu0 0.0
    %831 = vmatpush1.msra.mxu0 %v809
    %832 = vmatprep.subr.mxu0 0.0
    %833 = vmatpush1.msra.mxu0 %v810
    %834 = vmatprep.subr.mxu0 0.0
    %835 = vmatpush1.msra.mxu0 %v811
    %836 = vmatprep.subr.mxu0 0.0
    %837 = vmatpush1.msra.mxu0 %v812
    %838 = vmatprep.subr.mxu0 0.0
    %839 = vmatpush1.msra.mxu0 %v813
    %840 = vmatprep.subr.mxu0 0.0
    %841 = vmatpush1.msra.mxu0 %v814
    %842 = vmatprep.subr.mxu0 0.0
    %843 = vmatpush1.msra.mxu0 0.0
    %844 = vmatprep.subr.mxu0 0.0
    %845 = vmatpush1.msra.mxu0 0.0
    %846 = vmatprep.subr.mxu0 0.0
    %847 = vmatpush1.msra.mxu0 0.0
    %848 = vmatprep.subr.mxu0 0.0
    %849 = vmatpush1.msra.mxu0 0.0
    %850 = vmatprep.subr.mxu0 0.0
    %851 = vmatpush1.msra.mxu0 0.0
    %852 = vmatprep.subr.mxu0 0.0
    %853 = vmatpush1.msra.mxu0 0.0
    %854 = vmatprep.subr.mxu0 0.0
    %855 = vmatpush1.msra.mxu0 0.0
    %856 = vmatprep.subr.mxu0 0.0
    %857 = vmatpush1.msra.mxu0 0.0
    %858 = vmatprep.subr.mxu0 0.0
    %859 = vmatpush1.msra.mxu0 0.0
    %860 = vmatprep.subr.mxu0 0.0
    %861 = vmatpush1.msra.mxu0 0.0
    %862 = vmatprep.subr.mxu0 0.0
    %863 = vmatpush1.msra.mxu0 0.0
    %864 = vmatprep.subr.mxu0 0.0
    %865 = vmatpush1.msra.mxu0 0.0
    %866 = vmatprep.subr.mxu0 0.0
    %867 = vmatpush1.msra.mxu0 0.0
    %868 = vmatprep.subr.mxu0 0.0
    %869 = vmatpush1.msra.mxu0 0.0
    %870 = vmatprep.subr.mxu0 0.0
    %871 = vmatpush1.msra.mxu0 0.0
    %872 = vmatprep.subr.mxu0 0.0
    %873 = vmatpush1.msra.mxu0 0.0
    %874 = vmatprep.subr.mxu0 0.0
    %875 = vmatpush1.msra.mxu0 0.0
    %876 = vmatprep.subr.mxu0 0.0
    %877 = vmatpush1.msra.mxu0 0.0
    %878 = vmatprep.subr.mxu0 0.0
    %879 = vmatpush1.msra.mxu0 0.0
    %880 = vmatprep.subr.mxu0 0.0
    %881 = vmatpush1.msra.mxu0 0.0
    %882 = vmatprep.subr.mxu0 0.0
    %883 = vmatpush1.msra.mxu0 0.0
    %884 = vmatprep.subr.mxu0 0.0
    %885 = vmatpush1.msra.mxu0 0.0
    %886 = vmatprep.subr.mxu0 0.0
    %887 = vmatpush1.msra.mxu0 0.0
    %888 = vmatprep.subr.mxu0 0.0
    %889 = vmatpush1.msra.mxu0 0.0
    %890 = vmatprep.mubr.f32.mxu0 0.0
    %891 = vmatmul.mubr.f32.gmra.mrb[0].mxu0 %v824
    %v892 = vpop.f32.mrb[0].mxu0
    %v893 = vadd.f32 %v820, %v892
    %v894 = vpop.f32.mrb[0].mxu0
    %895 = vdwg.mxu0
    %vm896 = vcmp.gt.f32.partialorder %v893, 0.0
    %v897 = vmin.f32 %v893, 0.0
    %v898 = vmul.f32 %v897, 1.442695
    %v899 = vpow.pop %v898
    %v900 = vsub.f32 %v899, 1.0
    %v901 = vsel %vm896, %v893, %v900
    %v902 = vld [vmem:[%s5] sm:$0xff]
    %v903 = vld [vmem:[%s5 + $0x8] sm:$0xff]
    %v904 = vld [vmem:[%s5 + $0x10] sm:$0xff]
    %v905 = vld [vmem:[%s5 + $0x18] sm:$0xff]
    %v906 = vld [vmem:[%s6] sm:$0x1]
    %v908 = vlaneseq
    %v909 = vshrl.u32 %v908, 7
    %v910 = vsub.s32 0, %v909
    %v911 = vrot.slane %v906, %v910
    %v914 = vsel %vm308, %v901, 0
    %916 = vmatprep.subr.mxu0 0.0
    %917 = vmatpush1.msra.mxu0 %v902
    %918 = vmatprep.subr.mxu0 0.0
    %919 = vmatpush1.msra.mxu0 %v903
    %920 = vmatprep.subr.mxu0 0.0
    %921 = vmatpush1.msra.mxu0 %v904
    %922 = vmatprep.subr.mxu0 0.0
    %923 = vmatpush1.msra.mxu0 %v905
    %924 = vmatprep.subr.mxu0 0.0
    %925 = vmatpush1.msra.mxu0 0.0
    %926 = vmatprep.subr.mxu0 0.0
    %927 = vmatpush1.msra.mxu0 0.0
    %928 = vmatprep.subr.mxu0 0.0
    %929 = vmatpush1.msra.mxu0 0.0
    %930 = vmatprep.subr.mxu0 0.0
    %931 = vmatpush1.msra.mxu0 0.0
    %932 = vmatprep.subr.mxu0 0.0
    %933 = vmatpush1.msra.mxu0 0.0
    %934 = vmatprep.subr.mxu0 0.0
    %935 = vmatpush1.msra.mxu0 0.0
    %936 = vmatprep.subr.mxu0 0.0
    %937 = vmatpush1.msra.mxu0 0.0
    %938 = vmatprep.subr.mxu0 0.0
    %939 = vmatpush1.msra.mxu0 0.0
    %940 = vmatprep.subr.mxu0 0.0
    %941 = vmatpush1.msra.mxu0 0.0
    %942 = vmatprep.subr.mxu0 0.0
    %943 = vmatpush1.msra.mxu0 0.0
    %944 = vmatprep.subr.mxu0 0.0
    %945 = vmatpush1.msra.mxu0 0.0
    %946 = vmatprep.subr.mxu0 0.0
    %947 = vmatpush1.msra.mxu0 0.0
    %948 = vmatprep.subr.mxu0 0.0
    %949 = vmatpush1.msra.mxu0 0.0
    %950 = vmatprep.subr.mxu0 0.0
    %951 = vmatpush1.msra.mxu0 0.0
    %952 = vmatprep.subr.mxu0 0.0
    %953 = vmatpush1.msra.mxu0 0.0
    %954 = vmatprep.subr.mxu0 0.0
    %955 = vmatpush1.msra.mxu0 0.0
    %956 = vmatprep.subr.mxu0 0.0
    %957 = vmatpush1.msra.mxu0 0.0
    %958 = vmatprep.subr.mxu0 0.0
    %959 = vmatpush1.msra.mxu0 0.0
    %960 = vmatprep.subr.mxu0 0.0
    %961 = vmatpush1.msra.mxu0 0.0
    %962 = vmatprep.subr.mxu0 0.0
    %963 = vmatpush1.msra.mxu0 0.0
    %964 = vmatprep.subr.mxu0 0.0
    %965 = vmatpush1.msra.mxu0 0.0
    %966 = vmatprep.subr.mxu0 0.0
    %967 = vmatpush1.msra.mxu0 0.0
    %968 = vmatprep.subr.mxu0 0.0
    %969 = vmatpush1.msra.mxu0 0.0
    %970 = vmatprep.subr.mxu0 0.0
    %971 = vmatpush1.msra.mxu0 0.0
    %972 = vmatprep.subr.mxu0 0.0
    %973 = vmatpush1.msra.mxu0 0.0
    %974 = vmatprep.subr.mxu0 0.0
    %975 = vmatpush1.msra.mxu0 0.0
    %976 = vmatprep.subr.mxu0 0.0
    %977 = vmatpush1.msra.mxu0 0.0
    %978 = vmatprep.subr.mxu0 0.0
    %979 = vmatpush1.msra.mxu0 0.0
    %980 = vmatprep.mubr.f32.mxu0 0.0
    %981 = vmatmul.mubr.f32.gmra.mrb[0].mxu0 %v914
    %v982 = vpop.f32.mrb[0].mxu0
    %v983 = vadd.f32 %v911, %v982
    %v984 = vpop.f32.mrb[0].mxu0
    %985 = vdwg.mxu0
    %vm986 = vcmask 197632
    %987 = vst.msk [vmem:[#allocation2] sm:$0x3] %vm986, %v983
    // Predicated region
    $region30: #{forward.7} parent=1 // pred_check
      _
    $region31: #{forward.7} parent=1 // pred_check_branch
      %989 = sbr.rel (0) target = $region33
    $region32: #{forward.7} parent=1 // pred_region
      %s991 = ssub.s32 32, 32
      %992 = vsyncadd [#allocation3], %s991
      %s994 = sshll.u32 [#allocation2], 4
      %s995 = int_to_ptr.vmem [resolvable:$true] %s994
      %997 = dma.vmem_to_hbm [thread:$0]  %s995, 32, %s7, [#allocation3]
    $region33: #{forward.7} parent=1 // pred_fallthru
      _
    // Predicated region
    $region34: #{forward.7} parent=1 // pred_check
      _
    $region35: #{forward.7} parent=1 // pred_check_branch
      %999 = sbr.rel (0) target = $region37
    $region36: #{forward.7} parent=1 // pred_region
      %1000 = dma.done [#allocation3], 32
    $region37: #{forward.7} parent=1 // pred_fallthru
      _
    %1001 = vsyncpa [#allocation3], 1

</llo_original>
